<compile_context>
chip_gen: v7x
topology: tpu7x:2x2x1
jax: 0.10.0
libtpu: 0.0.40
codegen_flags: <defaults>
</compile_context>

<pallas_src>
import functools

import jax
import jax.numpy as jnp
from jax.experimental import pallas as pl
from jax.experimental.pallas import tpu as pltpu

# Safe on every generation: v7x has 64 MiB physical VMEM per TensorCore.
VMEM_LIMIT = 48 * 1024 * 1024
BN_EPS = 1e-5


def _round_up(x, m):
    return (x + m - 1) // m * m


def _sigmoid(y):
    # exact sigmoid via tanh (EUP op, no inf intermediate for large |y|)
    return 0.5 * (jnp.tanh(0.5 * y) + 1.0)


# ----------------------------------------------------------------------------
# Tiled matmul + bias + activation kernel (bf16 MXU, f32 accumulator)
# ----------------------------------------------------------------------------

def _matmul_kernel(x_ref, w_ref, b_ref, o_ref, acc_ref, *, act):
    k = pl.program_id(2)

    @pl.when(k == 0)
    def _():
        acc_ref[...] = jnp.zeros_like(acc_ref)

    acc_ref[...] += jnp.dot(x_ref[...], w_ref[...],
                            preferred_element_type=jnp.float32)

    @pl.when(k == pl.num_programs(2) - 1)
    def _():
        y = acc_ref[...] + b_ref[...]
        if act == "leaky":
            y = jnp.where(y > 0, y, 0.2 * y)
        elif act == "sigmoid":
            y = _sigmoid(y)
        o_ref[...] = y.astype(o_ref.dtype)


def matmul_bias_act(x, w, b, act="none"):
    """x: (M, K) f32/bf16, w: (K, N), b: (N,) -> (M, N) f32.

    Operands are zero-padded to lane/tile friendly sizes and cast to bf16;
    accumulation is f32 in VMEM scratch.
    """
    M, K = x.shape
    N = w.shape[1]

    tm = min(256, _round_up(M, 8))
    tn = min(256, _round_up(N, 128))
    tk = min(512, _round_up(K, 128))
    Mp, Kp, Np = _round_up(M, tm), _round_up(K, tk), _round_up(N, tn)

    xp = jnp.pad(x, ((0, Mp - M), (0, Kp - K))).astype(jnp.bfloat16)
    wp = jnp.pad(w, ((0, Kp - K), (0, Np - N))).astype(jnp.bfloat16)
    bp = jnp.pad(b.reshape(1, -1), ((0, 0), (0, Np - N))).astype(jnp.float32)

    grid = (Mp // tm, Np // tn, Kp // tk)
    cost = pl.CostEstimate(
        flops=2 * Mp * Np * Kp,
        transcendentals=Mp * Np if act == "sigmoid" else 0,
        bytes_accessed=xp.size * 2 + wp.size * 2 + Mp * Np * 4,
    )

    out = pl.pallas_call(
        functools.partial(_matmul_kernel, act=act),
        out_shape=jax.ShapeDtypeStruct((Mp, Np), jnp.float32),
        grid_spec=pltpu.PrefetchScalarGridSpec(
            num_scalar_prefetch=0,
            grid=grid,
            in_specs=[
                pl.BlockSpec((tm, tk), lambda i, j, k: (i, k)),
                pl.BlockSpec((tk, tn), lambda i, j, k: (k, j)),
                pl.BlockSpec((1, tn), lambda i, j, k: (0, j)),
            ],
            out_specs=pl.BlockSpec((tm, tn), lambda i, j, k: (i, j)),
            scratch_shapes=[pltpu.VMEM((tm, tn), jnp.float32)],
        ),
        compiler_params=pltpu.CompilerParams(
            dimension_semantics=("parallel", "parallel", "arbitrary"),
            vmem_limit_bytes=VMEM_LIMIT,
        ),
        cost_estimate=cost,
    )(xp, wp, bp)
    return out[:M, :N]


# ----------------------------------------------------------------------------
# BatchNorm2d (training mode) + LeakyReLU, channel-last rows (M = N*H*W, C)
# Single-pass stats (sum / sum-of-squares), tiled over channel groups of 128.
# ----------------------------------------------------------------------------

def _bn_lrelu_kernel(x_ref, o_ref, *, eps):
    x = x_ref[...]
    mean = jnp.mean(x, axis=0, keepdims=True)
    msq = jnp.mean(x * x, axis=0, keepdims=True)
    var = jnp.maximum(msq - mean * mean, 0.0)
    y = (x - mean) * jax.lax.rsqrt(var + eps)
    o_ref[...] = jnp.where(y > 0, y, 0.2 * y).astype(o_ref.dtype)


def batchnorm2d_lrelu(x, eps=BN_EPS):
    """x: (M, C) f32, stats over M per channel; C must be a multiple of 128."""
    M, C = x.shape
    tc = 128
    assert C % tc == 0
    return pl.pallas_call(
        functools.partial(_bn_lrelu_kernel, eps=eps),
        out_shape=jax.ShapeDtypeStruct((M, C), jnp.float32),
        grid_spec=pltpu.PrefetchScalarGridSpec(
            num_scalar_prefetch=0,
            grid=(C // tc,),
            in_specs=[pl.BlockSpec((M, tc), lambda j: (0, j))],
            out_specs=pl.BlockSpec((M, tc), lambda j: (0, j)),
        ),
        compiler_params=pltpu.CompilerParams(
            dimension_semantics=("parallel",),
            vmem_limit_bytes=VMEM_LIMIT,
        ),
    )(x)


# ----------------------------------------------------------------------------
# Fused tail: fc1 -> BatchNorm1d -> LeakyReLU -> fc2 -> ln -> Sigmoid
# Single pallas_call: grid over fc1's K, f32 accumulator in VMEM, everything
# after the fc1 reduction runs in the epilogue on VMEM-resident data.
# ----------------------------------------------------------------------------

def _tail_kernel(x_ref, w1_ref, b1_ref, w2_ref, b2_ref, w3_ref, b3_ref,
                 feat_ref, out_ref, acc_ref, *, eps):
    k = pl.program_id(0)

    @pl.when(k == 0)
    def _():
        acc_ref[...] = jnp.zeros_like(acc_ref)

    acc_ref[...] += jnp.dot(x_ref[...], w1_ref[...],
                            preferred_element_type=jnp.float32)

    @pl.when(k == pl.num_programs(0) - 1)
    def _():
        h = acc_ref[...] + b1_ref[...]
        # BatchNorm1d, training-mode batch stats (biased variance), gamma=1 beta=0
        mean = jnp.mean(h, axis=0, keepdims=True)
        msq = jnp.mean(h * h, axis=0, keepdims=True)
        var = jnp.maximum(msq - mean * mean, 0.0)
        h = (h - mean) * jax.lax.rsqrt(var + eps)
        h = jnp.where(h > 0, h, 0.2 * h)
        # fc2: Linear(1024, 500)   (columns padded to 512)
        feats = jnp.dot(h.astype(jnp.bfloat16), w2_ref[...],
                        preferred_element_type=jnp.float32) + b2_ref[...]
        feat_ref[...] = feats
        # ln: Linear(500, out_dim) + Sigmoid   (columns padded to 128)
        logits = jnp.dot(feats.astype(jnp.bfloat16), w3_ref[...],
                         preferred_element_type=jnp.float32) + b3_ref[...]
        out_ref[...] = _sigmoid(logits)


def tail_fused(x2, fc1_w, fc1_b, fc2_w, fc2_b, ln_w, ln_b, eps=BN_EPS):
    """x2: (B, K) flattened conv features -> (features (B,500), out (B,out_dim))."""
    M, K = x2.shape
    H = fc1_w.shape[1]          # 1024
    F = fc2_w.shape[1]          # 500
    O = ln_w.shape[1]           # output_dim

    tk = min(512, _round_up(K, 128))
    Kp = _round_up(K, tk)
    Fp = _round_up(F, 128)      # 512
    Op = _round_up(O, 128)      # 128

    x2p = jnp.pad(x2, ((0, 0), (0, Kp - K))).astype(jnp.bfloat16)
    w1p = jnp.pad(fc1_w, ((0, Kp - K), (0, 0))).astype(jnp.bfloat16)
    b1p = fc1_b.reshape(1, -1).astype(jnp.float32)
    w2p = jnp.pad(fc2_w, ((0, 0), (0, Fp - F))).astype(jnp.bfloat16)
    b2p = jnp.pad(fc2_b.reshape(1, -1), ((0, 0), (0, Fp - F))).astype(jnp.float32)
    w3p = jnp.pad(ln_w, ((0, Fp - F), (0, Op - O))).astype(jnp.bfloat16)
    b3p = jnp.pad(ln_b.reshape(1, -1), ((0, 0), (0, Op - O))).astype(jnp.float32)

    cost = pl.CostEstimate(
        flops=2 * M * (Kp * H + H * Fp + Fp * Op),
        transcendentals=M * (H + Op),
        bytes_accessed=(x2p.size + w1p.size + w2p.size + w3p.size) * 2
                       + (M * Fp + M * Op) * 4,
    )

    feats, out = pl.pallas_call(
        functools.partial(_tail_kernel, eps=eps),
        out_shape=(jax.ShapeDtypeStruct((M, Fp), jnp.float32),
                   jax.ShapeDtypeStruct((M, Op), jnp.float32)),
        grid_spec=pltpu.PrefetchScalarGridSpec(
            num_scalar_prefetch=0,
            grid=(Kp // tk,),
            in_specs=[
                pl.BlockSpec((M, tk), lambda k: (0, k)),     # x2 tile
                pl.BlockSpec((tk, H), lambda k: (k, 0)),     # fc1_w tile
                pl.BlockSpec((1, H), lambda k: (0, 0)),      # fc1_b
                pl.BlockSpec((H, Fp), lambda k: (0, 0)),     # fc2_w (resident)
                pl.BlockSpec((1, Fp), lambda k: (0, 0)),     # fc2_b
                pl.BlockSpec((Fp, Op), lambda k: (0, 0)),    # ln_w (resident)
                pl.BlockSpec((1, Op), lambda k: (0, 0)),     # ln_b
            ],
            out_specs=(pl.BlockSpec((M, Fp), lambda k: (0, 0)),
                       pl.BlockSpec((M, Op), lambda k: (0, 0))),
            scratch_shapes=[pltpu.VMEM((M, H), jnp.float32)],
        ),
        compiler_params=pltpu.CompilerParams(
            dimension_semantics=("arbitrary",),
            vmem_limit_bytes=VMEM_LIMIT,
        ),
        cost_estimate=cost,
    )(x2p, w1p, b1p, w2p, b2p, w3p, b3p)
    return feats[:, :F], out[:, :O]


# ----------------------------------------------------------------------------
# Conv glue: NHWC im2col (channel-last end to end; no NCHW round trips)
# ----------------------------------------------------------------------------

def im2col_nhwc(x, kh, kw, stride, pad):
    """x: (N, H, W, C) -> (N*Ho*Wo, kh*kw*C), column order (i, j, c)."""
    N, H, W, C = x.shape
    xp = jnp.pad(x, ((0, 0), (pad, pad), (pad, pad), (0, 0)))
    Ho = (H + 2 * pad - kh) // stride + 1
    Wo = (W + 2 * pad - kw) // stride + 1
    cols = []
    for i in range(kh):
        for j in range(kw):
            cols.append(xp[:, i:i + stride * Ho:stride, j:j + stride * Wo:stride, :])
    col = jnp.stack(cols, axis=3)                      # (N, Ho, Wo, kh*kw, C)
    col = col.reshape(N * Ho * Wo, kh * kw * C)
    return col, Ho, Wo


def conv_w_to_mat(w, pad_out=0, pad_in=0):
    """(C_out, C_in, kh, kw) -> (kh*kw*C_in_pad, C_out_pad), matching im2col_nhwc order."""
    w = jnp.pad(w, ((0, pad_out), (0, pad_in), (0, 0), (0, 0)))
    c_out = w.shape[0]
    return jnp.transpose(w, (2, 3, 1, 0)).reshape(-1, c_out)


# ----------------------------------------------------------------------------
# Parameters (deterministic synthetic init: normal(0, 0.02), zero bias)
# ----------------------------------------------------------------------------

def init_params(key, input_dim, output_dim, input_size):
    s4 = input_size // 4
    fc_in = 128 * s4 * s4
    ks = jax.random.split(key, 5)
    p = {
        "conv1_w": 0.02 * jax.random.normal(ks[0], (64, input_dim, 4, 4), jnp.float32),
        "conv1_b": jnp.zeros((64,), jnp.float32),
        "conv2_w": 0.02 * jax.random.normal(ks[1], (128, 64, 4, 4), jnp.float32),
        "conv2_b": jnp.zeros((128,), jnp.float32),
        # stored already transposed to (in, out) matmul layout
        "fc1_w": 0.02 * jax.random.normal(ks[2], (fc_in, 1024), jnp.float32),
        "fc1_b": jnp.zeros((1024,), jnp.float32),
        "fc2_w": 0.02 * jax.random.normal(ks[3], (1024, 500), jnp.float32),
        "fc2_b": jnp.zeros((500,), jnp.float32),
        "ln_w": 0.02 * jax.random.normal(ks[4], (500, output_dim), jnp.float32),
        "ln_b": jnp.zeros((output_dim,), jnp.float32),
    }
    return p


def convert_params(p):
    """Add im2col/lane-padded matmul layouts for the conv weights."""
    q = dict(p)
    # conv1: pad output channels 64 -> 128 (lane-dense output, LeakyReLU(0)=0)
    q["conv1_w_mat"] = conv_w_to_mat(p["conv1_w"], pad_out=64)
    q["conv1_b_pad"] = jnp.pad(p["conv1_b"], (0, 64))
    # conv2: pad input channels 64 -> 128 with zeros to match the padded conv1 output
    q["conv2_w_mat"] = conv_w_to_mat(p["conv2_w"], pad_in=64)
    return q


# ----------------------------------------------------------------------------
# Forward
# ----------------------------------------------------------------------------

def discriminator_forward(params, x):
    N = x.shape[0]
    x_nhwc = jnp.transpose(x, (0, 2, 3, 1))                 # NCHW -> NHWC once

    # conv1 (output channels zero-padded to 128) + fused LeakyReLU(0.2)
    col1, H1, W1 = im2col_nhwc(x_nhwc, 4, 4, 2, 1)
    y1 = matmul_bias_act(col1, params["conv1_w_mat"], params["conv1_b_pad"], act="leaky")
    x1_nhwc = y1.reshape(N, H1, W1, 128)                    # stays channel-last

    # conv2 -> BatchNorm2d(128) (training-mode batch stats) -> LeakyReLU(0.2)
    col2, H2, W2 = im2col_nhwc(x1_nhwc, 4, 4, 2, 1)
    y2 = matmul_bias_act(col2, params["conv2_w_mat"], params["conv2_b"], act="none")
    y2 = batchnorm2d_lrelu(y2)

    # flatten exactly like PyTorch .view(-1, 128*s4*s4): single permute to NCHW order
    x2 = y2.reshape(N, H2, W2, 128).transpose(0, 3, 1, 2).reshape(N, 128 * H2 * W2)

    # fused tail: Linear -> BatchNorm1d -> LeakyReLU -> Linear(1024,500) -> ln -> Sigmoid
    feats, out = tail_fused(x2, params["fc1_w"], params["fc1_b"],
                            params["fc2_w"], params["fc2_b"],
                            params["ln_w"], params["ln_b"])
    return out, feats


# ----------------------------------------------------------------------------
# Main
# ----------------------------------------------------------------------------

if __name__ == "__main__":
    input_dim, output_dim, input_size = 4, 1, 16   # small shapes; input_size % 4 == 0
    batch = 2

    key = jax.random.PRNGKey(0)
    k_params, k_x = jax.random.split(key)
    params = convert_params(init_params(k_params, input_dim, output_dim, input_size))
    x = jax.random.normal(k_x, (batch, input_dim, input_size, input_size), jnp.float32)

    fwd = jax.jit(discriminator_forward)
    out, feats = fwd(params, x)
    jax.block_until_ready(out)
    jax.block_until_ready(feats)

    assert out.shape == (batch, output_dim)
    assert feats.shape == (batch, 500)
    assert bool(jnp.all(jnp.isfinite(out)))
    assert bool(jnp.all((out >= 0.0) & (out <= 1.0)))
    print("KERNEL_OK")
</pallas_src>

<mosaic_0001>
module attributes {stable_mosaic.version = 11 : i64} {
  func.func @_matmul_kernel(%arg0: i32, %arg1: i32, %arg2: i32, %arg3: memref<128x128xbf16, #tpu.memory_space<vmem>>, %arg4: memref<128x128xbf16, #tpu.memory_space<vmem>>, %arg5: memref<1x128xf32, #tpu.memory_space<vmem>>, %arg6: memref<128x128xf32, #tpu.memory_space<vmem>>, %arg7: memref<128x128xf32, #tpu.memory_space<vmem>>) attributes {dimension_semantics = [#tpu.dimension_semantics<parallel>, #tpu.dimension_semantics<parallel>, #tpu.dimension_semantics<arbitrary>], iteration_bounds = array<i64: 1, 1, 1>, scalar_prefetch = 0 : i64, scratch_operands = 1 : i64, tpu.core_type = #tpu.core_type<tc>, window_params = [{transform_indices = @transform_0, window_bounds = array<i64: 128, 128>}, {transform_indices = @transform_1, window_bounds = array<i64: 128, 128>}, {transform_indices = @transform_2, window_bounds = array<i64: 1, 128>}, {transform_indices = @transform_3, window_bounds = array<i64: 128, 128>}]} {
    %c0_i32 = arith.constant 0 : i32
    %0 = arith.cmpi eq, %arg2, %c0_i32 : i32
    %1 = arith.extui %0 : i1 to i32
    %c0_i32_0 = arith.constant 0 : i32
    %2 = arith.cmpi ne, %1, %c0_i32_0 : i32
    scf.if %2 {
      %cst_10 = arith.constant 0.000000e+00 : f32
      %12 = vector.broadcast %cst_10 : f32 to vector<128x128xf32>
      %c0_11 = arith.constant 0 : index
      %c0_12 = arith.constant 0 : index
      %13 = vector.load %arg7[%c0_11, %c0_12] : memref<128x128xf32, #tpu.memory_space<vmem>>, vector<128x128xf32>
      tpu.vector_store %arg7[%c0_11, %c0_12], %12 {strides = array<i32>} : memref<128x128xf32, #tpu.memory_space<vmem>>, vector<128x128xf32>,
    } else {
    }
    %c0 = arith.constant 0 : index
    %c0_1 = arith.constant 0 : index
    %3 = vector.load %arg7[%c0, %c0_1] : memref<128x128xf32, #tpu.memory_space<vmem>>, vector<128x128xf32>
    %c0_2 = arith.constant 0 : index
    %c0_3 = arith.constant 0 : index
    %4 = vector.load %arg3[%c0_2, %c0_3] : memref<128x128xbf16, #tpu.memory_space<vmem>>, vector<128x128xbf16>
    %c0_4 = arith.constant 0 : index
    %c0_5 = arith.constant 0 : index
    %5 = vector.load %arg4[%c0_4, %c0_5] : memref<128x128xbf16, #tpu.memory_space<vmem>>, vector<128x128xbf16>
    %cst = arith.constant dense<0.000000e+00> : vector<128x128xf32>
    %6 = tpu.matmul %4, %5, %cst {dimension_numbers = #tpu.dot_dimension_numbers<[1], [0], [0], [1], [0, 0, 1, 1], [], []>} : vector<128x128xbf16>, vector<128x128xbf16>, vector<128x128xf32> -> vector<128x128xf32>
    %7 = arith.addf %3, %6 : vector<128x128xf32>
    %c0_6 = arith.constant 0 : index
    %c0_7 = arith.constant 0 : index
    %8 = vector.load %arg7[%c0_6, %c0_7] : memref<128x128xf32, #tpu.memory_space<vmem>>, vector<128x128xf32>
    tpu.vector_store %arg7[%c0_6, %c0_7], %7 {strides = array<i32>} : memref<128x128xf32, #tpu.memory_space<vmem>>, vector<128x128xf32>,
    %c0_i32_8 = arith.constant 0 : i32
    %9 = arith.cmpi eq, %arg2, %c0_i32_8 : i32
    %10 = arith.extui %9 : i1 to i32
    %c0_i32_9 = arith.constant 0 : i32
    %11 = arith.cmpi ne, %10, %c0_i32_9 : i32
    scf.if %11 {
      %c0_10 = arith.constant 0 : index
      %c0_11 = arith.constant 0 : index
      %12 = vector.load %arg7[%c0_10, %c0_11] : memref<128x128xf32, #tpu.memory_space<vmem>>, vector<128x128xf32>
      %c0_12 = arith.constant 0 : index
      %c0_13 = arith.constant 0 : index
      %13 = vector.load %arg5[%c0_12, %c0_13] : memref<1x128xf32, #tpu.memory_space<vmem>>, vector<1x128xf32>
      %14 = vector.broadcast %13 : vector<1x128xf32> to vector<128x128xf32>
      %15 = arith.addf %12, %14 : vector<128x128xf32>
      %cst_14 = arith.constant 0.000000e+00 : f32
      %16 = vector.broadcast %cst_14 : f32 to vector<128x128xf32>
      %17 = arith.cmpf ogt, %15, %16 : vector<128x128xf32>
      %cst_15 = arith.constant 2.000000e-01 : f32
      %18 = vector.broadcast %cst_15 : f32 to vector<128x128xf32>
      %19 = arith.mulf %18, %15 : vector<128x128xf32>
      %20 = arith.select %17, %15, %19 : vector<128x128xi1>, vector<128x128xf32>
      %c0_16 = arith.constant 0 : index
      %c0_17 = arith.constant 0 : index
      %21 = vector.load %arg6[%c0_16, %c0_17] : memref<128x128xf32, #tpu.memory_space<vmem>>, vector<128x128xf32>
      tpu.vector_store %arg6[%c0_16, %c0_17], %20 {strides = array<i32>} : memref<128x128xf32, #tpu.memory_space<vmem>>, vector<128x128xf32>,
    } else {
    }
    return
  }
  func.func @transform_0(%arg0: i32, %arg1: i32, %arg2: i32) -> (i32, i32) {
    %c0_i32 = arith.constant 0 : i32
    return %arg0, %arg2 : i32, i32
  }
  func.func @transform_1(%arg0: i32, %arg1: i32, %arg2: i32) -> (i32, i32) {
    %c0_i32 = arith.constant 0 : i32
    return %arg2, %arg1 : i32, i32
  }
  func.func @transform_2(%arg0: i32, %arg1: i32, %arg2: i32) -> (i32, i32) {
    %c0_i32 = arith.constant 0 : i32
    %c0_i32_0 = arith.constant 0 : i32
    return %c0_i32, %arg1 : i32, i32
  }
  func.func @transform_3(%arg0: i32, %arg1: i32, %arg2: i32) -> (i32, i32) {
    %c0_i32 = arith.constant 0 : i32
    return %arg0, %arg1 : i32, i32
  }
}

module attributes {stable_mosaic.version = 11 : i64} {
  func.func @_matmul_kernel(%arg0: i32, %arg1: i32, %arg2: i32, %arg3: memref<32x512xbf16, #tpu.memory_space<vmem>>, %arg4: memref<512x128xbf16, #tpu.memory_space<vmem>>, %arg5: memref<1x128xf32, #tpu.memory_space<vmem>>, %arg6: memref<32x128xf32, #tpu.memory_space<vmem>>, %arg7: memref<32x128xf32, #tpu.memory_space<vmem>>) attributes {dimension_semantics = [#tpu.dimension_semantics<parallel>, #tpu.dimension_semantics<parallel>, #tpu.dimension_semantics<arbitrary>], iteration_bounds = array<i64: 1, 1, 4>, scalar_prefetch = 0 : i64, scratch_operands = 1 : i64, tpu.core_type = #tpu.core_type<tc>, window_params = [{transform_indices = @transform_0, window_bounds = array<i64: 32, 512>}, {transform_indices = @transform_1, window_bounds = array<i64: 512, 128>}, {transform_indices = @transform_2, window_bounds = array<i64: 1, 128>}, {transform_indices = @transform_3, window_bounds = array<i64: 32, 128>}]} {
    %c0_i32 = arith.constant 0 : i32
    %0 = arith.cmpi eq, %arg2, %c0_i32 : i32
    %1 = arith.extui %0 : i1 to i32
    %c0_i32_0 = arith.constant 0 : i32
    %2 = arith.cmpi ne, %1, %c0_i32_0 : i32
    scf.if %2 {
      %cst_9 = arith.constant 0.000000e+00 : f32
      %12 = vector.broadcast %cst_9 : f32 to vector<32x128xf32>
      %c0_10 = arith.constant 0 : index
      %c0_11 = arith.constant 0 : index
      %13 = vector.load %arg7[%c0_10, %c0_11] : memref<32x128xf32, #tpu.memory_space<vmem>>, vector<32x128xf32>
      tpu.vector_store %arg7[%c0_10, %c0_11], %12 {strides = array<i32>} : memref<32x128xf32, #tpu.memory_space<vmem>>, vector<32x128xf32>,
    } else {
    }
    %c0 = arith.constant 0 : index
    %c0_1 = arith.constant 0 : index
    %3 = vector.load %arg7[%c0, %c0_1] : memref<32x128xf32, #tpu.memory_space<vmem>>, vector<32x128xf32>
    %c0_2 = arith.constant 0 : index
    %c0_3 = arith.constant 0 : index
    %4 = vector.load %arg3[%c0_2, %c0_3] : memref<32x512xbf16, #tpu.memory_space<vmem>>, vector<32x512xbf16>
    %c0_4 = arith.constant 0 : index
    %c0_5 = arith.constant 0 : index
    %5 = vector.load %arg4[%c0_4, %c0_5] : memref<512x128xbf16, #tpu.memory_space<vmem>>, vector<512x128xbf16>
    %cst = arith.constant dense<0.000000e+00> : vector<32x128xf32>
    %6 = tpu.matmul %4, %5, %cst {dimension_numbers = #tpu.dot_dimension_numbers<[1], [0], [0], [1], [0, 0, 1, 1], [], []>} : vector<32x512xbf16>, vector<512x128xbf16>, vector<32x128xf32> -> vector<32x128xf32>
    %7 = arith.addf %3, %6 : vector<32x128xf32>
    %c0_6 = arith.constant 0 : index
    %c0_7 = arith.constant 0 : index
    %8 = vector.load %arg7[%c0_6, %c0_7] : memref<32x128xf32, #tpu.memory_space<vmem>>, vector<32x128xf32>
    tpu.vector_store %arg7[%c0_6, %c0_7], %7 {strides = array<i32>} : memref<32x128xf32, #tpu.memory_space<vmem>>, vector<32x128xf32>,
    %c3_i32 = arith.constant 3 : i32
    %9 = arith.cmpi eq, %arg2, %c3_i32 : i32
    %10 = arith.extui %9 : i1 to i32
    %c0_i32_8 = arith.constant 0 : i32
    %11 = arith.cmpi ne, %10, %c0_i32_8 : i32
    scf.if %11 {
      %c0_9 = arith.constant 0 : index
      %c0_10 = arith.constant 0 : index
      %12 = vector.load %arg7[%c0_9, %c0_10] : memref<32x128xf32, #tpu.memory_space<vmem>>, vector<32x128xf32>
      %c0_11 = arith.constant 0 : index
      %c0_12 = arith.constant 0 : index
      %13 = vector.load %arg5[%c0_11, %c0_12] : memref<1x128xf32, #tpu.memory_space<vmem>>, vector<1x128xf32>
      %14 = vector.broadcast %13 : vector<1x128xf32> to vector<32x128xf32>
      %15 = arith.addf %12, %14 : vector<32x128xf32>
      %c0_13 = arith.constant 0 : index
      %c0_14 = arith.constant 0 : index
      %16 = vector.load %arg6[%c0_13, %c0_14] : memref<32x128xf32, #tpu.memory_space<vmem>>, vector<32x128xf32>
      tpu.vector_store %arg6[%c0_13, %c0_14], %15 {strides = array<i32>} : memref<32x128xf32, #tpu.memory_space<vmem>>, vector<32x128xf32>,
    } else {
    }
    return
  }
  func.func @transform_0(%arg0: i32, %arg1: i32, %arg2: i32) -> (i32, i32) {
    %c0_i32 = arith.constant 0 : i32
    return %arg0, %arg2 : i32, i32
  }
  func.func @transform_1(%arg0: i32, %arg1: i32, %arg2: i32) -> (i32, i32) {
    %c0_i32 = arith.constant 0 : i32
    return %arg2, %arg1 : i32, i32
  }
  func.func @transform_2(%arg0: i32, %arg1: i32, %arg2: i32) -> (i32, i32) {
    %c0_i32 = arith.constant 0 : i32
    %c0_i32_0 = arith.constant 0 : i32
    return %c0_i32, %arg1 : i32, i32
  }
  func.func @transform_3(%arg0: i32, %arg1: i32, %arg2: i32) -> (i32, i32) {
    %c0_i32 = arith.constant 0 : i32
    return %arg0, %arg1 : i32, i32
  }
}

module attributes {stable_mosaic.version = 11 : i64} {
  func.func @_bn_lrelu_kernel(%arg0: i32, %arg1: memref<32x128xf32, #tpu.memory_space<vmem>>, %arg2: memref<32x128xf32, #tpu.memory_space<vmem>>) attributes {dimension_semantics = [#tpu.dimension_semantics<parallel>], iteration_bounds = array<i64: 1>, scalar_prefetch = 0 : i64, scratch_operands = 0 : i64, tpu.core_type = #tpu.core_type<tc>, window_params = [{transform_indices = @transform_0, window_bounds = array<i64: 32, 128>}, {transform_indices = @transform_1, window_bounds = array<i64: 32, 128>}]} {
    %c0 = arith.constant 0 : index
    %c0_0 = arith.constant 0 : index
    %0 = vector.load %arg1[%c0, %c0_0] : memref<32x128xf32, #tpu.memory_space<vmem>>, vector<32x128xf32>
    %cst = arith.constant dense<0.000000e+00> : vector<128xf32>
    %1 = vector.multi_reduction <add>, %0, %cst [0] : vector<32x128xf32> to vector<128xf32>
    %2 = vector.shape_cast %1 : vector<128xf32> to vector<1x128xf32>
    %cst_1 = arith.constant 3.200000e+01 : f32
    %3 = vector.broadcast %cst_1 : f32 to vector<1x128xf32>
    %4 = arith.divf %2, %3 : vector<1x128xf32>
    %5 = arith.mulf %0, %0 : vector<32x128xf32>
    %cst_2 = arith.constant dense<0.000000e+00> : vector<128xf32>
    %6 = vector.multi_reduction <add>, %5, %cst_2 [0] : vector<32x128xf32> to vector<128xf32>
    %7 = vector.shape_cast %6 : vector<128xf32> to vector<1x128xf32>
    %cst_3 = arith.constant 3.200000e+01 : f32
    %8 = vector.broadcast %cst_3 : f32 to vector<1x128xf32>
    %9 = arith.divf %7, %8 : vector<1x128xf32>
    %10 = arith.mulf %4, %4 : vector<1x128xf32>
    %11 = arith.subf %9, %10 : vector<1x128xf32>
    %cst_4 = arith.constant 0.000000e+00 : f32
    %12 = vector.broadcast %cst_4 : f32 to vector<1x128xf32>
    %13 = arith.maximumf %11, %12 : vector<1x128xf32>
    %14 = vector.broadcast %4 : vector<1x128xf32> to vector<32x128xf32>
    %15 = arith.subf %0, %14 : vector<32x128xf32>
    %cst_5 = arith.constant 9.99999974E-6 : f32
    %16 = vector.broadcast %cst_5 : f32 to vector<1x128xf32>
    %17 = arith.addf %13, %16 : vector<1x128xf32>
    %18 = math.rsqrt %17 : vector<1x128xf32>
    %19 = vector.broadcast %18 : vector<1x128xf32> to vector<32x128xf32>
    %20 = arith.mulf %15, %19 : vector<32x128xf32>
    %cst_6 = arith.constant 0.000000e+00 : f32
    %21 = vector.broadcast %cst_6 : f32 to vector<32x128xf32>
    %22 = arith.cmpf ogt, %20, %21 : vector<32x128xf32>
    %cst_7 = arith.constant 2.000000e-01 : f32
    %23 = vector.broadcast %cst_7 : f32 to vector<32x128xf32>
    %24 = arith.mulf %23, %20 : vector<32x128xf32>
    %25 = arith.select %22, %20, %24 : vector<32x128xi1>, vector<32x128xf32>
    %c0_8 = arith.constant 0 : index
    %c0_9 = arith.constant 0 : index
    %26 = vector.load %arg2[%c0_8, %c0_9] : memref<32x128xf32, #tpu.memory_space<vmem>>, vector<32x128xf32>
    tpu.vector_store %arg2[%c0_8, %c0_9], %25 {strides = array<i32>} : memref<32x128xf32, #tpu.memory_space<vmem>>, vector<32x128xf32>,
    return
  }
  func.func @transform_0(%arg0: i32) -> (i32, i32) {
    %c0_i32 = arith.constant 0 : i32
    %c0_i32_0 = arith.constant 0 : i32
    return %c0_i32, %arg0 : i32, i32
  }
  func.func @transform_1(%arg0: i32) -> (i32, i32) {
    %c0_i32 = arith.constant 0 : i32
    %c0_i32_0 = arith.constant 0 : i32
    return %c0_i32, %arg0 : i32, i32
  }
}

module attributes {stable_mosaic.version = 11 : i64} {
  func.func @_tail_kernel(%arg0: i32, %arg1: memref<2x512xbf16, #tpu.memory_space<vmem>>, %arg2: memref<512x1024xbf16, #tpu.memory_space<vmem>>, %arg3: memref<1x1024xf32, #tpu.memory_space<vmem>>, %arg4: memref<1024x512xbf16, #tpu.memory_space<vmem>>, %arg5: memref<1x512xf32, #tpu.memory_space<vmem>>, %arg6: memref<512x128xbf16, #tpu.memory_space<vmem>>, %arg7: memref<1x128xf32, #tpu.memory_space<vmem>>, %arg8: memref<2x512xf32, #tpu.memory_space<vmem>>, %arg9: memref<2x128xf32, #tpu.memory_space<vmem>>, %arg10: memref<2x1024xf32, #tpu.memory_space<vmem>>) attributes {dimension_semantics = [#tpu.dimension_semantics<arbitrary>], iteration_bounds = array<i64: 4>, scalar_prefetch = 0 : i64, scratch_operands = 1 : i64, tpu.core_type = #tpu.core_type<tc>, window_params = [{transform_indices = @transform_0, window_bounds = array<i64: 2, 512>}, {transform_indices = @transform_1, window_bounds = array<i64: 512, 1024>}, {pipeline_mode = #tpu.pipeline_mode<synchronous>, transform_indices = @transform_2, window_bounds = array<i64: 1, 1024>}, {pipeline_mode = #tpu.pipeline_mode<synchronous>, transform_indices = @transform_3, window_bounds = array<i64: 1024, 512>}, {pipeline_mode = #tpu.pipeline_mode<synchronous>, transform_indices = @transform_4, window_bounds = array<i64: 1, 512>}, {pipeline_mode = #tpu.pipeline_mode<synchronous>, transform_indices = @transform_5, window_bounds = array<i64: 512, 128>}, {pipeline_mode = #tpu.pipeline_mode<synchronous>, transform_indices = @transform_6, window_bounds = array<i64: 1, 128>}, {pipeline_mode = #tpu.pipeline_mode<synchronous>, transform_indices = @transform_7, window_bounds = array<i64: 2, 512>}, {pipeline_mode = #tpu.pipeline_mode<synchronous>, transform_indices = @transform_8, window_bounds = array<i64: 2, 128>}]} {
    %c0_i32 = arith.constant 0 : i32
    %0 = arith.cmpi eq, %arg0, %c0_i32 : i32
    %1 = arith.extui %0 : i1 to i32
    %c0_i32_0 = arith.constant 0 : i32
    %2 = arith.cmpi ne, %1, %c0_i32_0 : i32
    scf.if %2 {
      %cst_9 = arith.constant 0.000000e+00 : f32
      %12 = vector.broadcast %cst_9 : f32 to vector<2x1024xf32>
      %c0_10 = arith.constant 0 : index
      %c0_11 = arith.constant 0 : index
      %13 = vector.load %arg10[%c0_10, %c0_11] : memref<2x1024xf32, #tpu.memory_space<vmem>>, vector<2x1024xf32>
      tpu.vector_store %arg10[%c0_10, %c0_11], %12 {strides = array<i32>} : memref<2x1024xf32, #tpu.memory_space<vmem>>, vector<2x1024xf32>,
    } else {
    }
    %c0 = arith.constant 0 : index
    %c0_1 = arith.constant 0 : index
    %3 = vector.load %arg10[%c0, %c0_1] : memref<2x1024xf32, #tpu.memory_space<vmem>>, vector<2x1024xf32>
    %c0_2 = arith.constant 0 : index
    %c0_3 = arith.constant 0 : index
    %4 = vector.load %arg1[%c0_2, %c0_3] : memref<2x512xbf16, #tpu.memory_space<vmem>>, vector<2x512xbf16>
    %c0_4 = arith.constant 0 : index
    %c0_5 = arith.constant 0 : index
    %5 = vector.load %arg2[%c0_4, %c0_5] : memref<512x1024xbf16, #tpu.memory_space<vmem>>, vector<512x1024xbf16>
    %cst = arith.constant dense<0.000000e+00> : vector<2x1024xf32>
    %6 = tpu.matmul %4, %5, %cst {dimension_numbers = #tpu.dot_dimension_numbers<[1], [0], [0], [1], [0, 0, 1, 1], [], []>} : vector<2x512xbf16>, vector<512x1024xbf16>, vector<2x1024xf32> -> vector<2x1024xf32>
    %7 = arith.addf %3, %6 : vector<2x1024xf32>
    %c0_6 = arith.constant 0 : index
    %c0_7 = arith.constant 0 : index
    %8 = vector.load %arg10[%c0_6, %c0_7] : memref<2x1024xf32, #tpu.memory_space<vmem>>, vector<2x1024xf32>
    tpu.vector_store %arg10[%c0_6, %c0_7], %7 {strides = array<i32>} : memref<2x1024xf32, #tpu.memory_space<vmem>>, vector<2x1024xf32>,
    %c3_i32 = arith.constant 3 : i32
    %9 = arith.cmpi eq, %arg0, %c3_i32 : i32
    %10 = arith.extui %9 : i1 to i32
    %c0_i32_8 = arith.constant 0 : i32
    %11 = arith.cmpi ne, %10, %c0_i32_8 : i32
    scf.if %11 {
      %c0_9 = arith.constant 0 : index
      %c0_10 = arith.constant 0 : index
      %12 = vector.load %arg10[%c0_9, %c0_10] : memref<2x1024xf32, #tpu.memory_space<vmem>>, vector<2x1024xf32>
      %c0_11 = arith.constant 0 : index
      %c0_12 = arith.constant 0 : index
      %13 = vector.load %arg3[%c0_11, %c0_12] : memref<1x1024xf32, #tpu.memory_space<vmem>>, vector<1x1024xf32>
      %14 = vector.broadcast %13 : vector<1x1024xf32> to vector<2x1024xf32>
      %15 = arith.addf %12, %14 : vector<2x1024xf32>
      %cst_13 = arith.constant dense<0.000000e+00> : vector<1024xf32>
      %16 = vector.multi_reduction <add>, %15, %cst_13 [0] : vector<2x1024xf32> to vector<1024xf32>
      %17 = vector.shape_cast %16 : vector<1024xf32> to vector<1x1024xf32>
      %cst_14 = arith.constant 2.000000e+00 : f32
      %18 = vector.broadcast %cst_14 : f32 to vector<1x1024xf32>
      %19 = arith.divf %17, %18 : vector<1x1024xf32>
      %20 = arith.mulf %15, %15 : vector<2x1024xf32>
      %cst_15 = arith.constant dense<0.000000e+00> : vector<1024xf32>
      %21 = vector.multi_reduction <add>, %20, %cst_15 [0] : vector<2x1024xf32> to vector<1024xf32>
      %22 = vector.shape_cast %21 : vector<1024xf32> to vector<1x1024xf32>
      %cst_16 = arith.constant 2.000000e+00 : f32
      %23 = vector.broadcast %cst_16 : f32 to vector<1x1024xf32>
      %24 = arith.divf %22, %23 : vector<1x1024xf32>
      %25 = arith.mulf %19, %19 : vector<1x1024xf32>
      %26 = arith.subf %24, %25 : vector<1x1024xf32>
      %cst_17 = arith.constant 0.000000e+00 : f32
      %27 = vector.broadcast %cst_17 : f32 to vector<1x1024xf32>
      %28 = arith.maximumf %26, %27 : vector<1x1024xf32>
      %29 = vector.broadcast %19 : vector<1x1024xf32> to vector<2x1024xf32>
      %30 = arith.subf %15, %29 : vector<2x1024xf32>
      %cst_18 = arith.constant 9.99999974E-6 : f32
      %31 = vector.broadcast %cst_18 : f32 to vector<1x1024xf32>
      %32 = arith.addf %28, %31 : vector<1x1024xf32>
      %33 = math.rsqrt %32 : vector<1x1024xf32>
      %34 = vector.broadcast %33 : vector<1x1024xf32> to vector<2x1024xf32>
      %35 = arith.mulf %30, %34 : vector<2x1024xf32>
      %cst_19 = arith.constant 0.000000e+00 : f32
      %36 = vector.broadcast %cst_19 : f32 to vector<2x1024xf32>
      %37 = arith.cmpf ogt, %35, %36 : vector<2x1024xf32>
      %cst_20 = arith.constant 2.000000e-01 : f32
      %38 = vector.broadcast %cst_20 : f32 to vector<2x1024xf32>
      %39 = arith.mulf %38, %35 : vector<2x1024xf32>
      %40 = arith.select %37, %35, %39 : vector<2x1024xi1>, vector<2x1024xf32>
      %41 = arith.truncf %40 : vector<2x1024xf32> to vector<2x1024xbf16>
      %c0_21 = arith.constant 0 : index
      %c0_22 = arith.constant 0 : index
      %42 = vector.load %arg4[%c0_21, %c0_22] : memref<1024x512xbf16, #tpu.memory_space<vmem>>, vector<1024x512xbf16>
      %cst_23 = arith.constant dense<0.000000e+00> : vector<2x512xf32>
      %43 = tpu.matmul %41, %42, %cst_23 {dimension_numbers = #tpu.dot_dimension_numbers<[1], [0], [0], [1], [0, 0, 1, 1], [], []>} : vector<2x1024xbf16>, vector<1024x512xbf16>, vector<2x512xf32> -> vector<2x512xf32>
      %c0_24 = arith.constant 0 : index
      %c0_25 = arith.constant 0 : index
      %44 = vector.load %arg5[%c0_24, %c0_25] : memref<1x512xf32, #tpu.memory_space<vmem>>, vector<1x512xf32>
      %45 = vector.broadcast %44 : vector<1x512xf32> to vector<2x512xf32>
      %46 = arith.addf %43, %45 : vector<2x512xf32>
      %c0_26 = arith.constant 0 : index
      %c0_27 = arith.constant 0 : index
      %47 = vector.load %arg8[%c0_26, %c0_27] : memref<2x512xf32, #tpu.memory_space<vmem>>, vector<2x512xf32>
      tpu.vector_store %arg8[%c0_26, %c0_27], %46 {strides = array<i32>} : memref<2x512xf32, #tpu.memory_space<vmem>>, vector<2x512xf32>,
      %48 = arith.truncf %46 : vector<2x512xf32> to vector<2x512xbf16>
      %c0_28 = arith.constant 0 : index
      %c0_29 = arith.constant 0 : index
      %49 = vector.load %arg6[%c0_28, %c0_29] : memref<512x128xbf16, #tpu.memory_space<vmem>>, vector<512x128xbf16>
      %cst_30 = arith.constant dense<0.000000e+00> : vector<2x128xf32>
      %50 = tpu.matmul %48, %49, %cst_30 {dimension_numbers = #tpu.dot_dimension_numbers<[1], [0], [0], [1], [0, 0, 1, 1], [], []>} : vector<2x512xbf16>, vector<512x128xbf16>, vector<2x128xf32> -> vector<2x128xf32>
      %c0_31 = arith.constant 0 : index
      %c0_32 = arith.constant 0 : index
      %51 = vector.load %arg7[%c0_31, %c0_32] : memref<1x128xf32, #tpu.memory_space<vmem>>, vector<1x128xf32>
      %52 = vector.broadcast %51 : vector<1x128xf32> to vector<2x128xf32>
      %53 = arith.addf %50, %52 : vector<2x128xf32>
      %cst_33 = arith.constant 5.000000e-01 : f32
      %54 = vector.broadcast %cst_33 : f32 to vector<2x128xf32>
      %55 = arith.mulf %54, %53 : vector<2x128xf32>
      %56 = math.tanh %55 : vector<2x128xf32>
      %cst_34 = arith.constant 1.000000e+00 : f32
      %57 = vector.broadcast %cst_34 : f32 to vector<2x128xf32>
      %58 = arith.addf %56, %57 : vector<2x128xf32>
      %cst_35 = arith.constant 5.000000e-01 : f32
      %59 = vector.broadcast %cst_35 : f32 to vector<2x128xf32>
      %60 = arith.mulf %59, %58 : vector<2x128xf32>
      %c0_36 = arith.constant 0 : index
      %c0_37 = arith.constant 0 : index
      %61 = vector.load %arg9[%c0_36, %c0_37] : memref<2x128xf32, #tpu.memory_space<vmem>>, vector<2x128xf32>
      tpu.vector_store %arg9[%c0_36, %c0_37], %60 {strides = array<i32>} : memref<2x128xf32, #tpu.memory_space<vmem>>, vector<2x128xf32>,
    } else {
    }
    return
  }
  func.func @transform_0(%arg0: i32) -> (i32, i32) {
    %c0_i32 = arith.constant 0 : i32
    %c0_i32_0 = arith.constant 0 : i32
    return %c0_i32, %arg0 : i32, i32
  }
  func.func @transform_1(%arg0: i32) -> (i32, i32) {
    %c0_i32 = arith.constant 0 : i32
    %c0_i32_0 = arith.constant 0 : i32
    return %arg0, %c0_i32 : i32, i32
  }
  func.func @transform_2(%arg0: i32) -> (i32, i32) {
    %c0_i32 = arith.constant 0 : i32
    %c0_i32_0 = arith.constant 0 : i32
    %c0_i32_1 = arith.constant 0 : i32
    return %c0_i32, %c0_i32_0 : i32, i32
  }
  func.func @transform_3(%arg0: i32) -> (i32, i32) {
    %c0_i32 = arith.constant 0 : i32
    %c0_i32_0 = arith.constant 0 : i32
    %c0_i32_1 = arith.constant 0 : i32
    return %c0_i32, %c0_i32_0 : i32, i32
  }
  func.func @transform_4(%arg0: i32) -> (i32, i32) {
    %c0_i32 = arith.constant 0 : i32
    %c0_i32_0 = arith.constant 0 : i32
    %c0_i32_1 = arith.constant 0 : i32
    return %c0_i32, %c0_i32_0 : i32, i32
  }
  func.func @transform_5(%arg0: i32) -> (i32, i32) {
    %c0_i32 = arith.constant 0 : i32
    %c0_i32_0 = arith.constant 0 : i32
    %c0_i32_1 = arith.constant 0 : i32
    return %c0_i32, %c0_i32_0 : i32, i32
  }
  func.func @transform_6(%arg0: i32) -> (i32, i32) {
    %c0_i32 = arith.constant 0 : i32
    %c0_i32_0 = arith.constant 0 : i32
    %c0_i32_1 = arith.constant 0 : i32
    return %c0_i32, %c0_i32_0 : i32, i32
  }
  func.func @transform_7(%arg0: i32) -> (i32, i32) {
    %c0_i32 = arith.constant 0 : i32
    %c0_i32_0 = arith.constant 0 : i32
    %c0_i32_1 = arith.constant 0 : i32
    return %c0_i32, %c0_i32_0 : i32, i32
  }
  func.func @transform_8(%arg0: i32) -> (i32, i32) {
    %c0_i32 = arith.constant 0 : i32
    %c0_i32_0 = arith.constant 0 : i32
    %c0_i32_1 = arith.constant 0 : i32
    return %c0_i32, %c0_i32_0 : i32, i32
  }
}

</mosaic_0001>

<llo_original>
// kernel: discriminator_forward.4
$region0: #{discriminator_forward.4}
  #allocation0 [shape = 'u32[]', space=smem, size = 0x4, offset = 0x4, fixed_abs, tag = 'smem constant byte address 0x4 - core index']
  #allocation1 [shape = 'u32[144,128]{1,0:T(1,128)}', space=vmem, size = 0x12000, scoped, tag = 'internal scratch']
  #allocation2 [shape = 'f32[128,128]{1,0:T(8,128)}', space=vmem, size = 0x10000, scoped, tag = 'scratch operand']
  %s0 = inlined_call_operand.vmem [shape: bf16[128,128], index: 0, kind: input, shape index: {}]
  %s1 = inlined_call_operand.vmem [shape: bf16[128,128], index: 1, kind: input, shape index: {}]
  %s2 = inlined_call_operand.hbm [shape: f32[1,128], index: 2, kind: input, shape index: {}]
  %s3 = inlined_call_operand.vmem [shape: f32[128,128], index: 3, kind: output, shape index: {}]
  %s4 = sld [smem:[#allocation0]]
  $region34: #{discriminator_forward.4} parent=0
    _
  %s6 = ssub.s32 1, %s4
  %s7 = scalar_select 0, %s6, %s4
  $region1: #{discriminator_forward.4} parent=0
    #allocation3 [shape = 'u8[512]{0}', space=vmem, size = 0x400, scoped, tag = 'input window, operand 2, single buffered']
    #allocation4 [shape = 's32[1]{0}', space=sflag, size = 0x4, scoped, tag = 'scoped memory for discriminator_forward.4']
    %8 = vsyncpa [#allocation4], 0
    // Predicated region
    $region2: #{discriminator_forward.4} parent=1 // pred_check
      _
    $region3: #{discriminator_forward.4} parent=1 // pred_check_branch
      %10 = sbr.rel (0) target = $region5
    $region4: #{discriminator_forward.4} parent=1 // pred_region
      _
    $region5: #{discriminator_forward.4} parent=1 // pred_fallthru
      _
    // Predicated region
    $region6: #{discriminator_forward.4} parent=1 // pred_check
      _
    $region7: #{discriminator_forward.4} parent=1 // pred_check_branch
      %12 = sbr.rel (0) target = $region9
    $region8: #{discriminator_forward.4} parent=1 // pred_region
      _
    $region9: #{discriminator_forward.4} parent=1 // pred_fallthru
      _
    // Predicated region
    $region10: #{discriminator_forward.4} parent=1 // pred_check
      _
    $region11: #{discriminator_forward.4} parent=1 // pred_check_branch
      %14 = sbr.rel (0) target = $region13
    $region12: #{discriminator_forward.4} parent=1 // pred_region
      %s16 = ssub.s32 16, 16
      %17 = vsyncadd [#allocation4], %s16
      %s19 = sshll.u32 [#allocation3], 4
      %s20 = int_to_ptr.vmem [resolvable:$true] %s19
      %22 = dma.hbm_to_vmem [thread:$0]  %s2, 16, %s20, [#allocation4]
    $region13: #{discriminator_forward.4} parent=1 // pred_fallthru
      _
    // Predicated region
    $region14: #{discriminator_forward.4} parent=1 // pred_check
      _
    $region15: #{discriminator_forward.4} parent=1 // pred_check_branch
      %24 = sbr.rel (0) target = $region17
    $region16: #{discriminator_forward.4} parent=1 // pred_region
      %25 = dma.done [#allocation4], 16
    $region17: #{discriminator_forward.4} parent=1 // pred_fallthru
      _
    %p27 = scmp.eq.s32.totalorder 0, 0
    // Predicated region
    $region18: #{discriminator_forward.4} parent=1 // pred_check
      %p28 = pneg %p27
    $region19: #{discriminator_forward.4} parent=1 // pred_check_branch
      %30 = sbr.rel (%p28) target = $region21
    $region20: #{discriminator_forward.4} parent=1 // pred_region
      %31 = vst [vmem:[#allocation2] sm:$0xff] 0.0
      %32 = vst [vmem:[#allocation2 + $0x8] sm:$0xff] 0.0
      %33 = vst [vmem:[#allocation2 + $0x10] sm:$0xff] 0.0
      %34 = vst [vmem:[#allocation2 + $0x18] sm:$0xff] 0.0
      %35 = vst [vmem:[#allocation2 + $0x20] sm:$0xff] 0.0
      %36 = vst [vmem:[#allocation2 + $0x28] sm:$0xff] 0.0
      %37 = vst [vmem:[#allocation2 + $0x30] sm:$0xff] 0.0
      %38 = vst [vmem:[#allocation2 + $0x38] sm:$0xff] 0.0
      %39 = vst [vmem:[#allocation2 + $0x40] sm:$0xff] 0.0
      %40 = vst [vmem:[#allocation2 + $0x48] sm:$0xff] 0.0
      %41 = vst [vmem:[#allocation2 + $0x50] sm:$0xff] 0.0
      %42 = vst [vmem:[#allocation2 + $0x58] sm:$0xff] 0.0
      %43 = vst [vmem:[#allocation2 + $0x60] sm:$0xff] 0.0
      %44 = vst [vmem:[#allocation2 + $0x68] sm:$0xff] 0.0
      %45 = vst [vmem:[#allocation2 + $0x70] sm:$0xff] 0.0
      %46 = vst [vmem:[#allocation2 + $0x78] sm:$0xff] 0.0
    $region21: #{discriminator_forward.4} parent=1 // pred_fallthru
      _
    %v47 = vld [vmem:[#allocation2] sm:$0xff]
    %v48 = vld [vmem:[#allocation2 + $0x8] sm:$0xff]
    %v49 = vld [vmem:[#allocation2 + $0x10] sm:$0xff]
    %v50 = vld [vmem:[#allocation2 + $0x18] sm:$0xff]
    %v51 = vld [vmem:[#allocation2 + $0x20] sm:$0xff]
    %v52 = vld [vmem:[#allocation2 + $0x28] sm:$0xff]
    %v53 = vld [vmem:[#allocation2 + $0x30] sm:$0xff]
    %v54 = vld [vmem:[#allocation2 + $0x38] sm:$0xff]
    %v55 = vld [vmem:[#allocation2 + $0x40] sm:$0xff]
    %v56 = vld [vmem:[#allocation2 + $0x48] sm:$0xff]
    %v57 = vld [vmem:[#allocation2 + $0x50] sm:$0xff]
    %v58 = vld [vmem:[#allocation2 + $0x58] sm:$0xff]
    %v59 = vld [vmem:[#allocation2 + $0x60] sm:$0xff]
    %v60 = vld [vmem:[#allocation2 + $0x68] sm:$0xff]
    %v61 = vld [vmem:[#allocation2 + $0x70] sm:$0xff]
    %v62 = vld [vmem:[#allocation2 + $0x78] sm:$0xff]
    %v63 = vld [vmem:[%s0] sm:$0xf]
    %v64 = vld [vmem:[%s0 + $0x4] sm:$0xf]
    %v65 = vld [vmem:[%s0 + $0x8] sm:$0xf]
    %v66 = vld [vmem:[%s0 + $0xc] sm:$0xf]
    %v67 = vld [vmem:[%s0 + $0x10] sm:$0xf]
    %v68 = vld [vmem:[%s0 + $0x14] sm:$0xf]
    %v69 = vld [vmem:[%s0 + $0x18] sm:$0xf]
    %v70 = vld [vmem:[%s0 + $0x1c] sm:$0xf]
    %v71 = vld [vmem:[%s0 + $0x20] sm:$0xf]
    %v72 = vld [vmem:[%s0 + $0x24] sm:$0xf]
    %v73 = vld [vmem:[%s0 + $0x28] sm:$0xf]
    %v74 = vld [vmem:[%s0 + $0x2c] sm:$0xf]
    %v75 = vld [vmem:[%s0 + $0x30] sm:$0xf]
    %v76 = vld [vmem:[%s0 + $0x34] sm:$0xf]
    %v77 = vld [vmem:[%s0 + $0x38] sm:$0xf]
    %v78 = vld [vmem:[%s0 + $0x3c] sm:$0xf]
    %v79 = vld [vmem:[%s1] sm:$0xf]
    %v80 = vld [vmem:[%s1 + $0x4] sm:$0xf]
    %v81 = vld [vmem:[%s1 + $0x8] sm:$0xf]
    %v82 = vld [vmem:[%s1 + $0xc] sm:$0xf]
    %v83 = vld [vmem:[%s1 + $0x10] sm:$0xf]
    %v84 = vld [vmem:[%s1 + $0x14] sm:$0xf]
    %v85 = vld [vmem:[%s1 + $0x18] sm:$0xf]
    %v86 = vld [vmem:[%s1 + $0x1c] sm:$0xf]
    %v87 = vld [vmem:[%s1 + $0x20] sm:$0xf]
    %v88 = vld [vmem:[%s1 + $0x24] sm:$0xf]
    %v89 = vld [vmem:[%s1 + $0x28] sm:$0xf]
    %v90 = vld [vmem:[%s1 + $0x2c] sm:$0xf]
    %v91 = vld [vmem:[%s1 + $0x30] sm:$0xf]
    %v92 = vld [vmem:[%s1 + $0x34] sm:$0xf]
    %v93 = vld [vmem:[%s1 + $0x38] sm:$0xf]
    %v94 = vld [vmem:[%s1 + $0x3c] sm:$0xf]
    %v111 = vunpack.c.l.b16 %v63
    %v112 = vunpack.c.l.b16 %v64
    %v113 = vunpack.c.l.b16 %v65
    %v114 = vunpack.c.l.b16 %v66
    %v115 = vunpack.c.l.b16 %v67
    %v116 = vunpack.c.l.b16 %v68
    %v117 = vunpack.c.l.b16 %v69
    %v118 = vunpack.c.l.b16 %v70
    %v119 = vunpack.c.l.b16 %v71
    %v120 = vunpack.c.l.b16 %v72
    %v121 = vunpack.c.l.b16 %v73
    %v122 = vunpack.c.l.b16 %v74
    %v123 = vunpack.c.l.b16 %v75
    %v124 = vunpack.c.l.b16 %v76
    %v125 = vunpack.c.l.b16 %v77
    %v126 = vunpack.c.l.b16 %v78
    %v127 = vpack.c.b16 %v112, %v111
    %v128 = vpack.c.b16 %v114, %v113
    %v129 = vpack.c.b16 %v116, %v115
    %v130 = vpack.c.b16 %v118, %v117
    %v131 = vpack.c.b16 %v120, %v119
    %v132 = vpack.c.b16 %v122, %v121
    %v133 = vpack.c.b16 %v124, %v123
    %v134 = vpack.c.b16 %v126, %v125
    %v159 = vunpack.c.l.b16 %v79
    %v160 = vunpack.c.l.b16 %v80
    %v161 = vunpack.c.l.b16 %v81
    %v162 = vunpack.c.l.b16 %v82
    %v163 = vunpack.c.l.b16 %v83
    %v164 = vunpack.c.l.b16 %v84
    %v165 = vunpack.c.l.b16 %v85
    %v166 = vunpack.c.l.b16 %v86
    %v167 = vunpack.c.l.b16 %v87
    %v168 = vunpack.c.l.b16 %v88
    %v169 = vunpack.c.l.b16 %v89
    %v170 = vunpack.c.l.b16 %v90
    %v171 = vunpack.c.l.b16 %v91
    %v172 = vunpack.c.l.b16 %v92
    %v173 = vunpack.c.l.b16 %v93
    %v174 = vunpack.c.l.b16 %v94
    %v175 = vpack.c.b16 %v160, %v159
    %v176 = vpack.c.b16 %v162, %v161
    %v177 = vpack.c.b16 %v164, %v163
    %v178 = vpack.c.b16 %v166, %v165
    %v179 = vpack.c.b16 %v168, %v167
    %v180 = vpack.c.b16 %v170, %v169
    %v181 = vpack.c.b16 %v172, %v171
    %v182 = vpack.c.b16 %v174, %v173
    %191 = vmatprep.subr.bf16.mxu0 0
    %192 = vmatpush1.bf16.msra.mxu0 %v175
    %193 = vmatprep.subr.bf16.mxu0 0
    %194 = vmatpush1.bf16.msra.mxu0 %v176
    %195 = vmatprep.subr.bf16.mxu0 0
    %196 = vmatpush1.bf16.msra.mxu0 %v177
    %197 = vmatprep.subr.bf16.mxu0 0
    %198 = vmatpush1.bf16.msra.mxu0 %v178
    %199 = vmatprep.subr.bf16.mxu0 0
    %200 = vmatpush1.bf16.msra.mxu0 %v179
    %201 = vmatprep.subr.bf16.mxu0 0
    %202 = vmatpush1.bf16.msra.mxu0 %v180
    %203 = vmatprep.subr.bf16.mxu0 0
    %204 = vmatpush1.bf16.msra.mxu0 %v181
    %205 = vmatprep.subr.bf16.mxu0 0
    %206 = vmatpush1.bf16.msra.mxu0 %v182
    %207 = vmatprep.subr.bf16.mxu0 0
    %208 = vmatpush1.bf16.msra.mxu0 0
    %209 = vmatprep.subr.bf16.mxu0 0
    %210 = vmatpush1.bf16.msra.mxu0 0
    %211 = vmatprep.subr.bf16.mxu0 0
    %212 = vmatpush1.bf16.msra.mxu0 0
    %213 = vmatprep.subr.bf16.mxu0 0
    %214 = vmatpush1.bf16.msra.mxu0 0
    %215 = vmatprep.subr.bf16.mxu0 0
    %216 = vmatpush1.bf16.msra.mxu0 0
    %217 = vmatprep.subr.bf16.mxu0 0
    %218 = vmatpush1.bf16.msra.mxu0 0
    %219 = vmatprep.subr.bf16.mxu0 0
    %220 = vmatpush1.bf16.msra.mxu0 0
    %221 = vmatprep.subr.bf16.mxu0 0
    %222 = vmatpush1.bf16.msra.mxu0 0
    %223 = vmatprep.mubr.bf16.mxu0 0
    %224 = vmatmul.mubr.bf16.gmra.mrb[0].mxu0 %v127
    %v225 = vpop.f32.mrb[0].mxu0
    %v226 = vadd.f32 0.0, %v225
    %v227 = vpop.f32.mrb[0].mxu0
    %v228 = vpop.f32.mrb[0].mxu0
    %v229 = vadd.f32 0.0, %v228
    %v230 = vpop.f32.mrb[0].mxu0
    %231 = vmatprep.mubr.bf16.mxu0 0
    %232 = vmatmul.mubr.bf16.gmra.mrb[0].mxu0 %v128
    %v233 = vpop.f32.mrb[0].mxu0
    %v234 = vadd.f32 0.0, %v233
    %v235 = vpop.f32.mrb[0].mxu0
    %v236 = vpop.f32.mrb[0].mxu0
    %v237 = vadd.f32 0.0, %v236
    %v238 = vpop.f32.mrb[0].mxu0
    %239 = vmatprep.mubr.bf16.mxu0 0
    %240 = vmatmul.mubr.bf16.gmra.mrb[0].mxu0 %v129
    %v241 = vpop.f32.mrb[0].mxu0
    %v242 = vadd.f32 0.0, %v241
    %v243 = vpop.f32.mrb[0].mxu0
    %v244 = vpop.f32.mrb[0].mxu0
    %v245 = vadd.f32 0.0, %v244
    %v246 = vpop.f32.mrb[0].mxu0
    %247 = vmatprep.mubr.bf16.mxu0 0
    %248 = vmatmul.mubr.bf16.gmra.mrb[0].mxu0 %v130
    %v249 = vpop.f32.mrb[0].mxu0
    %v250 = vadd.f32 0.0, %v249
    %v251 = vpop.f32.mrb[0].mxu0
    %v252 = vpop.f32.mrb[0].mxu0
    %v253 = vadd.f32 0.0, %v252
    %v254 = vpop.f32.mrb[0].mxu0
    %255 = vmatprep.mubr.bf16.mxu0 0
    %256 = vmatmul.mubr.bf16.gmra.mrb[0].mxu0 %v131
    %v257 = vpop.f32.mrb[0].mxu0
    %v258 = vadd.f32 0.0, %v257
    %v259 = vpop.f32.mrb[0].mxu0
    %v260 = vpop.f32.mrb[0].mxu0
    %v261 = vadd.f32 0.0, %v260
    %v262 = vpop.f32.mrb[0].mxu0
    %263 = vmatprep.mubr.bf16.mxu0 0
    %264 = vmatmul.mubr.bf16.gmra.mrb[0].mxu0 %v132
    %v265 = vpop.f32.mrb[0].mxu0
    %v266 = vadd.f32 0.0, %v265
    %v267 = vpop.f32.mrb[0].mxu0
    %v268 = vpop.f32.mrb[0].mxu0
    %v269 = vadd.f32 0.0, %v268
    %v270 = vpop.f32.mrb[0].mxu0
    %271 = vmatprep.mubr.bf16.mxu0 0
    %272 = vmatmul.mubr.bf16.gmra.mrb[0].mxu0 %v133
    %v273 = vpop.f32.mrb[0].mxu0
    %v274 = vadd.f32 0.0, %v273
    %v275 = vpop.f32.mrb[0].mxu0
    %v276 = vpop.f32.mrb[0].mxu0
    %v277 = vadd.f32 0.0, %v276
    %v278 = vpop.f32.mrb[0].mxu0
    %279 = vmatprep.mubr.bf16.mxu0 0
    %280 = vmatmul.mubr.bf16.gmra.mrb[0].mxu0 %v134
    %v281 = vpop.f32.mrb[0].mxu0
    %v282 = vadd.f32 0.0, %v281
    %v283 = vpop.f32.mrb[0].mxu0
    %v284 = vpop.f32.mrb[0].mxu0
    %v285 = vadd.f32 0.0, %v284
    %v286 = vpop.f32.mrb[0].mxu0
    %287 = vdwg.mxu0
    %v288 = vadd.f32 %v47, %v226
    %v289 = vadd.f32 %v48, %v229
    %v290 = vadd.f32 %v49, %v234
    %v291 = vadd.f32 %v50, %v237
    %v292 = vadd.f32 %v51, %v242
    %v293 = vadd.f32 %v52, %v245
    %v294 = vadd.f32 %v53, %v250
    %v295 = vadd.f32 %v54, %v253
    %v296 = vadd.f32 %v55, %v258
    %v297 = vadd.f32 %v56, %v261
    %v298 = vadd.f32 %v57, %v266
    %v299 = vadd.f32 %v58, %v269
    %v300 = vadd.f32 %v59, %v274
    %v301 = vadd.f32 %v60, %v277
    %v302 = vadd.f32 %v61, %v282
    %v303 = vadd.f32 %v62, %v285
    %304 = vst [vmem:[#allocation2] sm:$0xff] %v288
    %305 = vst [vmem:[#allocation2 + $0x8] sm:$0xff] %v289
    %306 = vst [vmem:[#allocation2 + $0x10] sm:$0xff] %v290
    %307 = vst [vmem:[#allocation2 + $0x18] sm:$0xff] %v291
    %308 = vst [vmem:[#allocation2 + $0x20] sm:$0xff] %v292
    %309 = vst [vmem:[#allocation2 + $0x28] sm:$0xff] %v293
    %310 = vst [vmem:[#allocation2 + $0x30] sm:$0xff] %v294
    %311 = vst [vmem:[#allocation2 + $0x38] sm:$0xff] %v295
    %312 = vst [vmem:[#allocation2 + $0x40] sm:$0xff] %v296
    %313 = vst [vmem:[#allocation2 + $0x48] sm:$0xff] %v297
    %314 = vst [vmem:[#allocation2 + $0x50] sm:$0xff] %v298
    %315 = vst [vmem:[#allocation2 + $0x58] sm:$0xff] %v299
    %316 = vst [vmem:[#allocation2 + $0x60] sm:$0xff] %v300
    %317 = vst [vmem:[#allocation2 + $0x68] sm:$0xff] %v301
    %318 = vst [vmem:[#allocation2 + $0x70] sm:$0xff] %v302
    %319 = vst [vmem:[#allocation2 + $0x78] sm:$0xff] %v303
    // Predicated region
    $region22: #{discriminator_forward.4} parent=1 // pred_check
      %p320 = pneg %p27
    $region23: #{discriminator_forward.4} parent=1 // pred_check_branch
      %322 = sbr.rel (%p320) target = $region25
    $region24: #{discriminator_forward.4} parent=1 // pred_region
      %v323 = vld [vmem:[#allocation2] sm:$0xff]
      %v324 = vld [vmem:[#allocation2 + $0x8] sm:$0xff]
      %v325 = vld [vmem:[#allocation2 + $0x10] sm:$0xff]
      %v326 = vld [vmem:[#allocation2 + $0x18] sm:$0xff]
      %v327 = vld [vmem:[#allocation2 + $0x20] sm:$0xff]
      %v328 = vld [vmem:[#allocation2 + $0x28] sm:$0xff]
      %v329 = vld [vmem:[#allocation2 + $0x30] sm:$0xff]
      %v330 = vld [vmem:[#allocation2 + $0x38] sm:$0xff]
      %v331 = vld [vmem:[#allocation2 + $0x40] sm:$0xff]
      %v332 = vld [vmem:[#allocation2 + $0x48] sm:$0xff]
      %v333 = vld [vmem:[#allocation2 + $0x50] sm:$0xff]
      %v334 = vld [vmem:[#allocation2 + $0x58] sm:$0xff]
      %v335 = vld [vmem:[#allocation2 + $0x60] sm:$0xff]
      %v336 = vld [vmem:[#allocation2 + $0x68] sm:$0xff]
      %v337 = vld [vmem:[#allocation2 + $0x70] sm:$0xff]
      %v338 = vld [vmem:[#allocation2 + $0x78] sm:$0xff]
      %v339 = vld [vmem:[#allocation3] sm:$0x1]
      %v341 = vlaneseq
      %v342 = vshrl.u32 %v341, 7
      %v343 = vsub.s32 0, %v342
      %v344 = vrot.slane %v339, %v343
      %v346 = vadd.f32 %v323, %v344
      %v347 = vadd.f32 %v324, %v344
      %v348 = vadd.f32 %v325, %v344
      %v349 = vadd.f32 %v326, %v344
      %v350 = vadd.f32 %v327, %v344
      %v351 = vadd.f32 %v328, %v344
      %v352 = vadd.f32 %v329, %v344
      %v353 = vadd.f32 %v330, %v344
      %v354 = vadd.f32 %v331, %v344
      %v355 = vadd.f32 %v332, %v344
      %v356 = vadd.f32 %v333, %v344
      %v357 = vadd.f32 %v334, %v344
      %v358 = vadd.f32 %v335, %v344
      %v359 = vadd.f32 %v336, %v344
      %v360 = vadd.f32 %v337, %v344
      %v361 = vadd.f32 %v338, %v344
      %vm362 = vcmp.gt.f32.partialorder %v346, 0.0
      %vm363 = vcmp.gt.f32.partialorder %v347, 0.0
      %vm364 = vcmp.gt.f32.partialorder %v348, 0.0
      %vm365 = vcmp.gt.f32.partialorder %v349, 0.0
      %vm366 = vcmp.gt.f32.partialorder %v350, 0.0
      %vm367 = vcmp.gt.f32.partialorder %v351, 0.0
      %vm368 = vcmp.gt.f32.partialorder %v352, 0.0
      %vm369 = vcmp.gt.f32.partialorder %v353, 0.0
      %vm370 = vcmp.gt.f32.partialorder %v354, 0.0
      %vm371 = vcmp.gt.f32.partialorder %v355, 0.0
      %vm372 = vcmp.gt.f32.partialorder %v356, 0.0
      %vm373 = vcmp.gt.f32.partialorder %v357, 0.0
      %vm374 = vcmp.gt.f32.partialorder %v358, 0.0
      %vm375 = vcmp.gt.f32.partialorder %v359, 0.0
      %vm376 = vcmp.gt.f32.partialorder %v360, 0.0
      %vm377 = vcmp.gt.f32.partialorder %v361, 0.0
      %v378 = vmul.f32 %v346, 0.2
      %v379 = vmul.f32 %v347, 0.2
      %v380 = vmul.f32 %v348, 0.2
      %v381 = vmul.f32 %v349, 0.2
      %v382 = vmul.f32 %v350, 0.2
      %v383 = vmul.f32 %v351, 0.2
      %v384 = vmul.f32 %v352, 0.2
      %v385 = vmul.f32 %v353, 0.2
      %v386 = vmul.f32 %v354, 0.2
      %v387 = vmul.f32 %v355, 0.2
      %v388 = vmul.f32 %v356, 0.2
      %v389 = vmul.f32 %v357, 0.2
      %v390 = vmul.f32 %v358, 0.2
      %v391 = vmul.f32 %v359, 0.2
      %v392 = vmul.f32 %v360, 0.2
      %v393 = vmul.f32 %v361, 0.2
      %v394 = vsel %vm362, %v346, %v378
      %v395 = vsel %vm363, %v347, %v379
      %v396 = vsel %vm364, %v348, %v380
      %v397 = vsel %vm365, %v349, %v381
      %v398 = vsel %vm366, %v350, %v382
      %v399 = vsel %vm367, %v351, %v383
      %v400 = vsel %vm368, %v352, %v384
      %v401 = vsel %vm369, %v353, %v385
      %v402 = vsel %vm370, %v354, %v386
      %v403 = vsel %vm371, %v355, %v387
      %v404 = vsel %vm372, %v356, %v388
      %v405 = vsel %vm373, %v357, %v389
      %v406 = vsel %vm374, %v358, %v390
      %v407 = vsel %vm375, %v359, %v391
      %v408 = vsel %vm376, %v360, %v392
      %v409 = vsel %vm377, %v361, %v393
      %410 = vst [vmem:[%s3] sm:$0xff] %v394
      %411 = vst [vmem:[%s3 + $0x8] sm:$0xff] %v395
      %412 = vst [vmem:[%s3 + $0x10] sm:$0xff] %v396
      %413 = vst [vmem:[%s3 + $0x18] sm:$0xff] %v397
      %414 = vst [vmem:[%s3 + $0x20] sm:$0xff] %v398
      %415 = vst [vmem:[%s3 + $0x28] sm:$0xff] %v399
      %416 = vst [vmem:[%s3 + $0x30] sm:$0xff] %v400
      %417 = vst [vmem:[%s3 + $0x38] sm:$0xff] %v401
      %418 = vst [vmem:[%s3 + $0x40] sm:$0xff] %v402
      %419 = vst [vmem:[%s3 + $0x48] sm:$0xff] %v403
      %420 = vst [vmem:[%s3 + $0x50] sm:$0xff] %v404
      %421 = vst [vmem:[%s3 + $0x58] sm:$0xff] %v405
      %422 = vst [vmem:[%s3 + $0x60] sm:$0xff] %v406
      %423 = vst [vmem:[%s3 + $0x68] sm:$0xff] %v407
      %424 = vst [vmem:[%s3 + $0x70] sm:$0xff] %v408
      %425 = vst [vmem:[%s3 + $0x78] sm:$0xff] %v409
    $region25: #{discriminator_forward.4} parent=1 // pred_fallthru
      _
    // Predicated region
    $region26: #{discriminator_forward.4} parent=1 // pred_check
      _
    $region27: #{discriminator_forward.4} parent=1 // pred_check_branch
      %427 = sbr.rel (0) target = $region29
    $region28: #{discriminator_forward.4} parent=1 // pred_region
      _
    $region29: #{discriminator_forward.4} parent=1 // pred_fallthru
      _
    // Predicated region
    $region30: #{discriminator_forward.4} parent=1 // pred_check
      _
    $region31: #{discriminator_forward.4} parent=1 // pred_check_branch
      %429 = sbr.rel (0) target = $region33
    $region32: #{discriminator_forward.4} parent=1 // pred_region
      _
    $region33: #{discriminator_forward.4} parent=1 // pred_fallthru
      _
    %430 = vsyncpa [#allocation4], 1

// kernel: discriminator_forward.6
$region0: #{discriminator_forward.6}
  #allocation0 [shape = 'u32[]', space=smem, size = 0x4, offset = 0x4, fixed_abs, tag = 'smem constant byte address 0x4 - core index']
  #allocation1 [shape = 'u32[144,128]{1,0:T(1,128)}', space=vmem, size = 0x12000, scoped, tag = 'internal scratch']
  %s0 = inlined_call_operand.vmem [shape: f32[32,128], index: 0, kind: input, shape index: {}]
  %s1 = inlined_call_operand.vmem [shape: f32[32,128], index: 1, kind: output, shape index: {}]
  %s2 = sld [smem:[#allocation0]]
  $region14: #{discriminator_forward.6} parent=0
    _
  %s4 = ssub.s32 1, %s2
  %s5 = scalar_select 0, %s4, %s2
  // Predicated region
  $region2: #{discriminator_forward.6} parent=0 // pred_check
    _
  $region3: #{discriminator_forward.6} parent=0 // pred_check_branch
    %7 = sbr.rel (0) target = $region5
  $region4: #{discriminator_forward.6} parent=0 // pred_region
    _
  $region5: #{discriminator_forward.6} parent=0 // pred_fallthru
    _
  %v8 = vld [vmem:[%s0] sm:$0xff]
  %v9 = vld [vmem:[%s0 + $0x8] sm:$0xff]
  %v10 = vld [vmem:[%s0 + $0x10] sm:$0xff]
  %v11 = vld [vmem:[%s0 + $0x18] sm:$0xff]
  %v12 = vadd.f32 %v8, %v9
  %v13 = vadd.f32 %v12, %v10
  %v14 = vadd.f32 %v13, %v11
  %v15 = vrot.slane %v14, 4
  %v16 = vadd.f32 %v14, %v15
  %v17 = vrot.slane %v16, 2
  %v18 = vadd.f32 %v16, %v17
  %v19 = vrot.slane %v18, 1
  %v20 = vadd.f32 %v18, %v19
  %v21 = vrcp.pop 32.0
  %v22 = vmul.f32 %v20, %v21
  %v23 = vmul.f32 %v8, %v8
  %v24 = vmul.f32 %v9, %v9
  %v25 = vmul.f32 %v10, %v10
  %v26 = vmul.f32 %v11, %v11
  %v27 = vadd.f32 %v23, %v24
  %v28 = vadd.f32 %v27, %v25
  %v29 = vadd.f32 %v28, %v26
  %v30 = vrot.slane %v29, 4
  %v31 = vadd.f32 %v29, %v30
  %v32 = vrot.slane %v31, 2
  %v33 = vadd.f32 %v31, %v32
  %v34 = vrot.slane %v33, 1
  %v35 = vadd.f32 %v33, %v34
  %v36 = vmul.f32 %v35, %v21
  %v37 = vmul.f32 %v22, %v22
  %v38 = vsub.f32 %v36, %v37
  %v39 = vmax.f32 %v38, 0.0
  %v40 = vsub.f32 %v8, %v22
  %v41 = vsub.f32 %v9, %v22
  %v42 = vsub.f32 %v10, %v22
  %v43 = vsub.f32 %v11, %v22
  %v44 = vadd.f32 %v39, 1e-05
  %v45 = vrsqrt.pop %v44
  %v46 = vmul.f32 %v40, %v45
  %v47 = vmul.f32 %v41, %v45
  %v48 = vmul.f32 %v42, %v45
  %v49 = vmul.f32 %v43, %v45
  %vm50 = vcmp.gt.f32.partialorder %v46, 0.0
  %vm51 = vcmp.gt.f32.partialorder %v47, 0.0
  %vm52 = vcmp.gt.f32.partialorder %v48, 0.0
  %vm53 = vcmp.gt.f32.partialorder %v49, 0.0
  %v54 = vmul.f32 %v46, 0.2
  %v55 = vmul.f32 %v47, 0.2
  %v56 = vmul.f32 %v48, 0.2
  %v57 = vmul.f32 %v49, 0.2
  %v58 = vsel %vm50, %v46, %v54
  %v59 = vsel %vm51, %v47, %v55
  %v60 = vsel %vm52, %v48, %v56
  %v61 = vsel %vm53, %v49, %v57
  %62 = vst [vmem:[%s1] sm:$0xff] %v58
  %63 = vst [vmem:[%s1 + $0x8] sm:$0xff] %v59
  %64 = vst [vmem:[%s1 + $0x10] sm:$0xff] %v60
  %65 = vst [vmem:[%s1 + $0x18] sm:$0xff] %v61
  // Predicated region
  $region6: #{discriminator_forward.6} parent=0 // pred_check
    _
  $region7: #{discriminator_forward.6} parent=0 // pred_check_branch
    %67 = sbr.rel (0) target = $region9
  $region8: #{discriminator_forward.6} parent=0 // pred_region
    _
  $region9: #{discriminator_forward.6} parent=0 // pred_fallthru
    _
  // Predicated region
  $region10: #{discriminator_forward.6} parent=0 // pred_check
    _
  $region11: #{discriminator_forward.6} parent=0 // pred_check_branch
    %69 = sbr.rel (0) target = $region13
  $region12: #{discriminator_forward.6} parent=0 // pred_region
    _
  $region13: #{discriminator_forward.6} parent=0 // pred_fallthru
    _

// kernel: discriminator_forward.5
$region0: #{discriminator_forward.5}
  #allocation0 [shape = 'u32[]', space=smem, size = 0x4, offset = 0x4, fixed_abs, tag = 'smem constant byte address 0x4 - core index']
  #allocation1 [shape = 'u32[144,128]{1,0:T(1,128)}', space=vmem, size = 0x12000, scoped, tag = 'internal scratch']
  #allocation2 [shape = 'f32[32,128]{1,0:T(8,128)}', space=vmem, size = 0x4000, scoped, tag = 'scratch operand']
  %s0 = inlined_call_operand.vmem [shape: bf16[32,2048], index: 0, kind: input, shape index: {}]
  %s1 = inlined_call_operand.vmem [shape: bf16[2048,128], index: 1, kind: input, shape index: {}]
  %s2 = inlined_call_operand.vmem [shape: f32[1,128], index: 2, kind: input, shape index: {}]
  %s3 = inlined_call_operand.vmem [shape: f32[32,128], index: 3, kind: output, shape index: {}]
  %s4 = sld [smem:[#allocation0]]
  $region76: #{discriminator_forward.5} parent=0
    _
  %s6 = ssub.s32 1, %s4
  %s7 = scalar_select 0, %s6, %s4
  $region1: #{discriminator_forward.5} parent=0
    #allocation3 [shape = 'u8[65536]{0}', space=vmem, size = 0x10000, scoped, tag = 'input window, operand 0']
    loop: start=0, step=1, limit=6
    $region2: #{discriminator_forward.5} parent=1 // loop_pre_header
      _
    $region3: #{discriminator_forward.5} parent=1 // loop_header
      %s9 = sphi 0, %s13
      %p10 = scmp.ge.s32.totalorder %s9, 6
      %s16 = sphi 0, %s35
      %s17 = sphi 0, %s31
      %s18 = sphi 0, %s27
      %s19 = sphi 0, %s16
      %s20 = sphi 0, %s17
      %s21 = sphi 0, %s18
      %s22 = sphi 0, %s19
      %s23 = sphi 0, %s20
      %s24 = sphi 0, %s21
      %s40 = sphi 0, %s42
      %s43 = sphi 0, %s40
      %s44 = sphi 0, %s43
      %s60 = sphi 0, %s44
      %s68 = sphi 0, %s70
      %s71 = sphi 0, %s68
      %s72 = sphi 0, %s71
      %s88 = sphi 0, %s72
      %s94 = sphi 0, %s96
      %s97 = sphi 0, %s94
      %s98 = sphi 0, %s97
      %s114 = sphi 0, %s98
      %s122 = sphi 0, %s124
      %s125 = sphi 0, %s122
      %s126 = sphi 0, %s125
      %s142 = sphi 0, %s126
    $region4: #{discriminator_forward.5} parent=1 // loop_header_branch
      %12 = sbr.rel (%p10) target = $region8
    $region5: #{discriminator_forward.5} parent=1 // loop_body
      %s14 = ssub.s32 %s9, 1
      %s15 = ssub.s32 %s9, 2
      %s25 = sadd.s32 1, %s18
      %p26 = scmp.ge.s32.totalorder %s25, 4
      %s27 = scalar_select %p26, 0, %s25
      %s28 = sadd.s32 1, %s17
      %s29 = scalar_select %p26, %s28, %s17
      %p30 = scmp.ge.s32.totalorder %s29, 1
      %s31 = scalar_select %p30, 0, %s29
      %s32 = sadd.s32 1, %s16
      %s33 = scalar_select %p30, %s32, %s16
      %p34 = scmp.ge.s32.totalorder %s33, 1
      %s35 = scalar_select %p34, 0, %s33
      %s36 = ssub.s32 %s16, %s35
      %s37 = ssub.s32 %s18, %s27
      %s38 = sor.u32 %s36, %s37
      %p39 = scmp.eq.s32.totalorder %s38, 0
      %s41 = sadd.s32 %s40, 1
      %s42 = scalar_select %p39, %s40, %s41
      %p45 = pneg %p39
      %p46 = scmp.eq.s32.totalorder %s9, 3
      %p47 = por %p45, %p46
      %p48 = scmp.ne.s32.totalorder %s40, %s43
      %p49 = scmp.eq.s32.totalorder %s9, 0
      %p50 = por %p48, %p49
      %p51 = scmp.ne.s32.totalorder %s40, %s43
      %p52 = scmp.eq.s32.totalorder %s14, 3
      %p53 = por %p51, %p52
      %p54 = scmp.ne.s32.totalorder %s43, %s44
      %p55 = scmp.eq.s32.totalorder %s14, 0
      %p56 = por %p54, %p55
      %p57 = scmp.ne.s32.totalorder %s43, %s44
      %p58 = scmp.eq.s32.totalorder %s15, 3
      %p59 = por %p57, %p58
      %p61 = scmp.ne.s32.totalorder %s44, %s60
      %p62 = scmp.eq.s32.totalorder %s15, 0
      %p63 = por %p61, %p62
      %s64 = ssub.s32 %s18, %s27
      %s65 = ssub.s32 %s17, %s31
      %s66 = sor.u32 %s64, %s65
      %p67 = scmp.eq.s32.totalorder %s66, 0
      %s69 = sadd.s32 %s68, 1
      %s70 = scalar_select %p67, %s68, %s69
      %p73 = pneg %p67
      %p74 = scmp.eq.s32.totalorder %s9, 3
      %p75 = por %p73, %p74
      %p76 = scmp.ne.s32.totalorder %s68, %s71
      %p77 = scmp.eq.s32.totalorder %s9, 0
      %p78 = por %p76, %p77
      %p79 = scmp.ne.s32.totalorder %s68, %s71
      %p80 = scmp.eq.s32.totalorder %s14, 3
      %p81 = por %p79, %p80
      %p82 = scmp.ne.s32.totalorder %s71, %s72
      %p83 = scmp.eq.s32.totalorder %s14, 0
      %p84 = por %p82, %p83
      %p85 = scmp.ne.s32.totalorder %s71, %s72
      %p86 = scmp.eq.s32.totalorder %s15, 3
      %p87 = por %p85, %p86
      %p89 = scmp.ne.s32.totalorder %s72, %s88
      %p90 = scmp.eq.s32.totalorder %s15, 0
      %p91 = por %p89, %p90
      %s92 = ssub.s32 %s17, %s31
      %p93 = scmp.eq.s32.totalorder %s92, 0
      %s95 = sadd.s32 %s94, 1
      %s96 = scalar_select %p93, %s94, %s95
      %p99 = pneg %p93
      %p100 = scmp.eq.s32.totalorder %s9, 3
      %p101 = por %p99, %p100
      %p102 = scmp.ne.s32.totalorder %s94, %s97
      %p103 = scmp.eq.s32.totalorder %s9, 0
      %p104 = por %p102, %p103
      %p105 = scmp.ne.s32.totalorder %s94, %s97
      %p106 = scmp.eq.s32.totalorder %s14, 3
      %p107 = por %p105, %p106
      %p108 = scmp.ne.s32.totalorder %s97, %s98
      %p109 = scmp.eq.s32.totalorder %s14, 0
      %p110 = por %p108, %p109
      %p111 = scmp.ne.s32.totalorder %s97, %s98
      %p112 = scmp.eq.s32.totalorder %s15, 3
      %p113 = por %p111, %p112
      %p115 = scmp.ne.s32.totalorder %s98, %s114
      %p116 = scmp.eq.s32.totalorder %s15, 0
      %p117 = por %p115, %p116
      %s118 = ssub.s32 %s16, %s35
      %s119 = ssub.s32 %s17, %s31
      %s120 = sor.u32 %s118, %s119
      %p121 = scmp.eq.s32.totalorder %s120, 0
      %s123 = sadd.s32 %s122, 1
      %s124 = scalar_select %p121, %s122, %s123
      %p127 = pneg %p121
      %p128 = scmp.eq.s32.totalorder %s9, 3
      %p129 = por %p127, %p128
      %p130 = scmp.ne.s32.totalorder %s122, %s125
      %p131 = scmp.eq.s32.totalorder %s9, 0
      %p132 = por %p130, %p131
      %p133 = scmp.ne.s32.totalorder %s122, %s125
      %p134 = scmp.eq.s32.totalorder %s14, 3
      %p135 = por %p133, %p134
      %p136 = scmp.ne.s32.totalorder %s125, %s126
      %p137 = scmp.eq.s32.totalorder %s14, 0
      %p138 = por %p136, %p137
      %p139 = scmp.ne.s32.totalorder %s125, %s126
      %p140 = scmp.eq.s32.totalorder %s15, 3
      %p141 = por %p139, %p140
      %p143 = scmp.ne.s32.totalorder %s126, %s142
      %p144 = scmp.eq.s32.totalorder %s15, 0
      %p145 = por %p143, %p144
      %p146 = scmp.le.s32.totalorder 1, %s9
      %p147 = scmp.lt.s32.totalorder %s9, 5
      %p148 = pnand %p146, %p147
      %p149 = pneg %p148
      // Predicated region
      $region9: #{discriminator_forward.5} parent=5 // pred_check
        _
      $region10: #{discriminator_forward.5} parent=5 // pred_check_branch
        %151 = sbr.rel (%p148) target = $region12
      $region11: #{discriminator_forward.5} parent=5 // pred_region
        %s152 = ssub.s32 %s9, 1
        // Predicated region
        $region13: #{discriminator_forward.5} parent=11 // pred_check
          %p153 = pneg %p110
        $region14: #{discriminator_forward.5} parent=11 // pred_check_branch
          %155 = sbr.rel (%p153) target = $region16
        $region15: #{discriminator_forward.5} parent=11 // pred_region
          %p156 = scmp.lt.s32.totalorder %s20, 0
          %s157 = scalar_select %p156, %s20, 0
          %s158 = scalar_lea.vmem %s2, %s157
        $region16: #{discriminator_forward.5} parent=11 // pred_fallthru
          _
      $region12: #{discriminator_forward.5} parent=5 // pred_fallthru
        _
      %p159 = scmp.lt.s32.totalorder %s9, 4
      // Predicated region
      $region17: #{discriminator_forward.5} parent=5 // pred_check
        %p160 = pneg %p159
      $region18: #{discriminator_forward.5} parent=5 // pred_check_branch
        %162 = sbr.rel (%p160) target = $region20
      $region19: #{discriminator_forward.5} parent=5 // pred_region
        // Predicated region
        $region21: #{discriminator_forward.5} parent=19 // pred_check
          %p163 = pneg %p50
        $region22: #{discriminator_forward.5} parent=19 // pred_check_branch
          %165 = sbr.rel (%p163) target = $region24
        $region23: #{discriminator_forward.5} parent=19 // pred_region
          %s166 = sand.u32 %s40, 1
          %s167 = sand.u32 %s40, 1
          %s168 = smul.addr %s167, 64
          %s169 = scalar_lea.vmem [#allocation3], %s168
          %s170 = smul.u32 4, %s16
          %s171 = smul.u32 4, %s18
          %s172 = smul.addr %s170, 16
          %s173 = sadd.s32 %s171, %s172
          %s174 = smul.addr %s173, 4
          %s175 = scalar_lea.vmem %s0, %s174
          // Predicated region
          $region25: #{discriminator_forward.5} parent=23 // pred_check
            _
          $region26: #{discriminator_forward.5} parent=23 // pred_check_branch
            %177 = sbr.rel (0) target = $region28
          $region27: #{discriminator_forward.5} parent=23 // pred_region
            // Predicated region
            $region29: #{discriminator_forward.5} parent=27 // pred_check
              _
            $region30: #{discriminator_forward.5} parent=27 // pred_check_branch
              %179 = sbr.rel (0) target = $region32
            $region31: #{discriminator_forward.5} parent=27 // pred_region
              loop: start=0, step=1, limit=1
              $region33: #{discriminator_forward.5} parent=31 // loop_pre_header
                _
              $region34: #{discriminator_forward.5} parent=31 // loop_header
                %s181 = sphi 0, %s185
                %p182 = scmp.ge.s32.totalorder %s181, 1
                %s186 = sphi %s175, %s175
                %s187 = sphi %s169, %s169
              $region35: #{discriminator_forward.5} parent=31 // loop_header_branch
                %184 = sbr.rel (%p182) target = $region39
              $region36: #{discriminator_forward.5} parent=31 // loop_body
                %v188 = vld [vmem:[%s186] sm:$0xff]
                %189 = vst [vmem:[%s187] sm:$0xff] %v188
                %v190 = vld [vmem:[%s186 + $0x8] sm:$0xff]
                %191 = vst [vmem:[%s187 + $0x8] sm:$0xff] %v190
                %v192 = vld [vmem:[%s186 + $0x40] sm:$0xff]
                %193 = vst [vmem:[%s187 + $0x10] sm:$0xff] %v192
                %v194 = vld [vmem:[%s186 + $0x48] sm:$0xff]
                %195 = vst [vmem:[%s187 + $0x18] sm:$0xff] %v194
                %v196 = vld [vmem:[%s186 + $0x80] sm:$0xff]
                %197 = vst [vmem:[%s187 + $0x20] sm:$0xff] %v196
                %v198 = vld [vmem:[%s186 + $0x88] sm:$0xff]
                %199 = vst [vmem:[%s187 + $0x28] sm:$0xff] %v198
                %v200 = vld [vmem:[%s186 + $0xc0] sm:$0xff]
                %201 = vst [vmem:[%s187 + $0x30] sm:$0xff] %v200
                %v202 = vld [vmem:[%s186 + $0xc8] sm:$0xff]
                %203 = vst [vmem:[%s187 + $0x38] sm:$0xff] %v202
              $region37: #{discriminator_forward.5} parent=31 // loop_footer
                %s185 = sadd.s32 1, %s181
              $region38: #{discriminator_forward.5} parent=31 // loop_footer_branch
                %180 = sbr.rel target = $region34
              $region39: #{discriminator_forward.5} parent=31 // loop_exit
                _
            $region32: #{discriminator_forward.5} parent=27 // pred_fallthru
              _
            // Predicated region
            $region40: #{discriminator_forward.5} parent=27 // pred_check
              _
            $region41: #{discriminator_forward.5} parent=27 // pred_check_branch
              %205 = sbr.rel target = $region43
            $region42: #{discriminator_forward.5} parent=27 // pred_region
              _
            $region43: #{discriminator_forward.5} parent=27 // pred_fallthru
              _
          $region28: #{discriminator_forward.5} parent=23 // pred_fallthru
            _
          %206 = vnop
        $region24: #{discriminator_forward.5} parent=19 // pred_fallthru
          _
        // Predicated region
        $region44: #{discriminator_forward.5} parent=19 // pred_check
          %p207 = pneg %p78
        $region45: #{discriminator_forward.5} parent=19 // pred_check_branch
          %209 = sbr.rel (%p207) target = $region47
        $region46: #{discriminator_forward.5} parent=19 // pred_region
          %s210 = smul.u32 64, %s18
          %p211 = scmp.lt.s32.totalorder %s210, 255
          %s212 = scalar_select %p211, %s210, 255
          %p213 = scmp.lt.s32.totalorder %s17, 0
          %s214 = scalar_select %p213, %s17, 0
          %s215 = sadd.s32 %s214, %s212
          %s216 = smul.addr %s215, 4
          %s217 = scalar_lea.vmem %s1, %s216
          %s218 = smul.u32 64, %s18
        $region47: #{discriminator_forward.5} parent=19 // pred_fallthru
          _
      $region20: #{discriminator_forward.5} parent=5 // pred_fallthru
        _
      %p219 = scmp.le.s32.totalorder 1, %s9
      %p220 = scmp.lt.s32.totalorder %s9, 5
      %p221 = pnand %p219, %p220
      %p222 = pneg %p221
      // Predicated region
      $region48: #{discriminator_forward.5} parent=5 // pred_check
        _
      $region49: #{discriminator_forward.5} parent=5 // pred_check_branch
        %224 = sbr.rel (%p221) target = $region51
      $region50: #{discriminator_forward.5} parent=5 // pred_region
        %s225 = ssub.s32 %s9, 1
        %s226 = sand.u32 %s43, 1
        %s227 = sand.u32 %s43, 1
        %s228 = smul.addr %s227, 64
        %s229 = scalar_lea.vmem [#allocation3], %s228
        // Predicated region
        $region52: #{discriminator_forward.5} parent=50 // pred_check
          %p230 = pneg %p56
        $region53: #{discriminator_forward.5} parent=50 // pred_check_branch
          %232 = sbr.rel (%p230) target = $region55
        $region54: #{discriminator_forward.5} parent=50 // pred_region
          _
        $region55: #{discriminator_forward.5} parent=50 // pred_fallthru
          _
        %s233 = sand.u32 %s43, 1
        %s234 = sand.u32 %s43, 1
        %s235 = smul.addr %s234, 64
        %s236 = scalar_lea.vmem [#allocation3], %s235
        %p237 = pneg %p56
        %p238 = pneg %p53
        %s239 = smul.u32 64, %s21
        %p240 = scmp.lt.s32.totalorder %s239, 255
        %s241 = scalar_select %p240, %s239, 255
        %p242 = scmp.lt.s32.totalorder %s20, 0
        %s243 = scalar_select %p242, %s20, 0
        %s244 = sadd.s32 %s243, %s241
        %s245 = smul.addr %s244, 4
        %s246 = scalar_lea.vmem %s1, %s245
        %p247 = pneg %p84
        %p248 = pneg %p81
        %p249 = scmp.lt.s32.totalorder %s20, 0
        %s250 = scalar_select %p249, %s20, 0
        %s251 = scalar_lea.vmem %s2, %s250
        %p252 = pneg %p110
        %p253 = pneg %p107
        %p254 = pneg %p138
        %p255 = pneg %p135
        %s256 = smul.u32 4, %s19
        %p257 = scmp.lt.s32.totalorder %s256, 3
        %s258 = scalar_select %p257, %s256, 3
        %p259 = scmp.lt.s32.totalorder %s20, 0
        %s260 = scalar_select %p259, %s20, 0
        %s261 = sadd.s32 %s260, %s258
        %s262 = smul.addr %s261, 8
        %s263 = scalar_lea.vmem %s3, %s262
        %s264 = smul.u32 4, %s19
        %s265 = smul.u32 4, %s21
        %s266 = smul.u32 64, %s21
        %p267 = scmp.lt.s32.totalorder %s266, 255
        %s268 = scalar_select %p267, %s266, 255
        %p269 = scmp.lt.s32.totalorder %s20, 0
        %s270 = scalar_select %p269, %s20, 0
        %s271 = sadd.s32 %s270, %s268
        %s272 = smul.addr %s271, 4
        %s273 = scalar_lea.vmem %s1, %s272
        %s274 = smul.u32 64, %s21
        %p275 = scmp.lt.s32.totalorder %s20, 0
        %s276 = scalar_select %p275, %s20, 0
        %s277 = scalar_lea.vmem %s2, %s276
        %s278 = smul.u32 4, %s19
        %p279 = scmp.lt.s32.totalorder %s278, 3
        %s280 = scalar_select %p279, %s278, 3
        %p281 = scmp.lt.s32.totalorder %s20, 0
        %s282 = scalar_select %p281, %s20, 0
        %s283 = sadd.s32 %s282, %s280
        %s284 = smul.addr %s283, 8
        %s285 = scalar_lea.vmem %s3, %s284
        %s286 = smul.u32 4, %s19
        %p288 = scmp.eq.s32.totalorder %s21, 0
        // Predicated region
        $region56: #{discriminator_forward.5} parent=50 // pred_check
          %p289 = pneg %p288
        $region57: #{discriminator_forward.5} parent=50 // pred_check_branch
          %291 = sbr.rel (%p289) target = $region59
        $region58: #{discriminator_forward.5} parent=50 // pred_region
          %292 = vst [vmem:[#allocation2] sm:$0xff] 0.0
          %293 = vst [vmem:[#allocation2 + $0x8] sm:$0xff] 0.0
          %294 = vst [vmem:[#allocation2 + $0x10] sm:$0xff] 0.0
          %295 = vst [vmem:[#allocation2 + $0x18] sm:$0xff] 0.0
        $region59: #{discriminator_forward.5} parent=50 // pred_fallthru
          _
        %v296 = vld [vmem:[#allocation2] sm:$0xff]
        %v297 = vld [vmem:[#allocation2 + $0x8] sm:$0xff]
        %v298 = vld [vmem:[#allocation2 + $0x10] sm:$0xff]
        %v299 = vld [vmem:[#allocation2 + $0x18] sm:$0xff]
        %v300 = vld [vmem:[%s229] sm:$0xff]
        %v301 = vld [vmem:[%s229 + $0x8] sm:$0xff]
        %v302 = vld [vmem:[%s229 + $0x10] sm:$0xff]
        %v303 = vld [vmem:[%s229 + $0x18] sm:$0xff]
        %v304 = vld [vmem:[%s229 + $0x20] sm:$0xff]
        %v305 = vld [vmem:[%s229 + $0x28] sm:$0xff]
        %v306 = vld [vmem:[%s229 + $0x30] sm:$0xff]
        %v307 = vld [vmem:[%s229 + $0x38] sm:$0xff]
        %v308 = vld [vmem:[%s273] sm:$0xf]
        %v309 = vld [vmem:[%s273 + $0x4] sm:$0xf]
        %v310 = vld [vmem:[%s273 + $0x8] sm:$0xf]
        %v311 = vld [vmem:[%s273 + $0xc] sm:$0xf]
        %v312 = vld [vmem:[%s273 + $0x10] sm:$0xf]
        %v313 = vld [vmem:[%s273 + $0x14] sm:$0xf]
        %v314 = vld [vmem:[%s273 + $0x18] sm:$0xf]
        %v315 = vld [vmem:[%s273 + $0x1c] sm:$0xf]
        %v316 = vld [vmem:[%s273 + $0x20] sm:$0xf]
        %v317 = vld [vmem:[%s273 + $0x24] sm:$0xf]
        %v318 = vld [vmem:[%s273 + $0x28] sm:$0xf]
        %v319 = vld [vmem:[%s273 + $0x2c] sm:$0xf]
        %v320 = vld [vmem:[%s273 + $0x30] sm:$0xf]
        %v321 = vld [vmem:[%s273 + $0x34] sm:$0xf]
        %v322 = vld [vmem:[%s273 + $0x38] sm:$0xf]
        %v323 = vld [vmem:[%s273 + $0x3c] sm:$0xf]
        %v324 = vld [vmem:[%s273 + $0x40] sm:$0xf]
        %v325 = vld [vmem:[%s273 + $0x44] sm:$0xf]
        %v326 = vld [vmem:[%s273 + $0x48] sm:$0xf]
        %v327 = vld [vmem:[%s273 + $0x4c] sm:$0xf]
        %v328 = vld [vmem:[%s273 + $0x50] sm:$0xf]
        %v329 = vld [vmem:[%s273 + $0x54] sm:$0xf]
        %v330 = vld [vmem:[%s273 + $0x58] sm:$0xf]
        %v331 = vld [vmem:[%s273 + $0x5c] sm:$0xf]
        %v332 = vld [vmem:[%s273 + $0x60] sm:$0xf]
        %v333 = vld [vmem:[%s273 + $0x64] sm:$0xf]
        %v334 = vld [vmem:[%s273 + $0x68] sm:$0xf]
        %v335 = vld [vmem:[%s273 + $0x6c] sm:$0xf]
        %v336 = vld [vmem:[%s273 + $0x70] sm:$0xf]
        %v337 = vld [vmem:[%s273 + $0x74] sm:$0xf]
        %v338 = vld [vmem:[%s273 + $0x78] sm:$0xf]
        %v339 = vld [vmem:[%s273 + $0x7c] sm:$0xf]
        %v340 = vld [vmem:[%s273 + $0x80] sm:$0xf]
        %v341 = vld [vmem:[%s273 + $0x84] sm:$0xf]
        %v342 = vld [vmem:[%s273 + $0x88] sm:$0xf]
        %v343 = vld [vmem:[%s273 + $0x8c] sm:$0xf]
        %v344 = vld [vmem:[%s273 + $0x90] sm:$0xf]
        %v345 = vld [vmem:[%s273 + $0x94] sm:$0xf]
        %v346 = vld [vmem:[%s273 + $0x98] sm:$0xf]
        %v347 = vld [vmem:[%s273 + $0x9c] sm:$0xf]
        %v348 = vld [vmem:[%s273 + $0xa0] sm:$0xf]
        %v349 = vld [vmem:[%s273 + $0xa4] sm:$0xf]
        %v350 = vld [vmem:[%s273 + $0xa8] sm:$0xf]
        %v351 = vld [vmem:[%s273 + $0xac] sm:$0xf]
        %v352 = vld [vmem:[%s273 + $0xb0] sm:$0xf]
        %v353 = vld [vmem:[%s273 + $0xb4] sm:$0xf]
        %v354 = vld [vmem:[%s273 + $0xb8] sm:$0xf]
        %v355 = vld [vmem:[%s273 + $0xbc] sm:$0xf]
        %v356 = vld [vmem:[%s273 + $0xc0] sm:$0xf]
        %v357 = vld [vmem:[%s273 + $0xc4] sm:$0xf]
        %v358 = vld [vmem:[%s273 + $0xc8] sm:$0xf]
        %v359 = vld [vmem:[%s273 + $0xcc] sm:$0xf]
        %v360 = vld [vmem:[%s273 + $0xd0] sm:$0xf]
        %v361 = vld [vmem:[%s273 + $0xd4] sm:$0xf]
        %v362 = vld [vmem:[%s273 + $0xd8] sm:$0xf]
        %v363 = vld [vmem:[%s273 + $0xdc] sm:$0xf]
        %v364 = vld [vmem:[%s273 + $0xe0] sm:$0xf]
        %v365 = vld [vmem:[%s273 + $0xe4] sm:$0xf]
        %v366 = vld [vmem:[%s273 + $0xe8] sm:$0xf]
        %v367 = vld [vmem:[%s273 + $0xec] sm:$0xf]
        %v368 = vld [vmem:[%s273 + $0xf0] sm:$0xf]
        %v369 = vld [vmem:[%s273 + $0xf4] sm:$0xf]
        %v370 = vld [vmem:[%s273 + $0xf8] sm:$0xf]
        %v371 = vld [vmem:[%s273 + $0xfc] sm:$0xf]
        %v380 = vunpack.c.l.b16 %v300
        %v381 = vunpack.c.h.b16 %v300
        %v382 = vunpack.c.l.b16 %v301
        %v383 = vunpack.c.h.b16 %v301
        %v384 = vunpack.c.l.b16 %v302
        %v385 = vunpack.c.h.b16 %v302
        %v386 = vunpack.c.l.b16 %v303
        %v387 = vunpack.c.h.b16 %v303
        %v388 = vunpack.c.l.b16 %v304
        %v389 = vunpack.c.h.b16 %v304
        %v390 = vunpack.c.l.b16 %v305
        %v391 = vunpack.c.h.b16 %v305
        %v392 = vunpack.c.l.b16 %v306
        %v393 = vunpack.c.h.b16 %v306
        %v394 = vunpack.c.l.b16 %v307
        %v395 = vunpack.c.h.b16 %v307
        %v396 = vpack.c.b16 %v384, %v380
        %v397 = vpack.c.b16 %v385, %v381
        %v398 = vpack.c.b16 %v386, %v382
        %v399 = vpack.c.b16 %v387, %v383
        %v400 = vpack.c.b16 %v392, %v388
        %v401 = vpack.c.b16 %v393, %v389
        %v402 = vpack.c.b16 %v394, %v390
        %v403 = vpack.c.b16 %v395, %v391
        %v476 = vunpack.c.l.b16 %v308
        %v477 = vunpack.c.l.b16 %v309
        %v478 = vunpack.c.l.b16 %v310
        %v479 = vunpack.c.l.b16 %v311
        %v480 = vunpack.c.l.b16 %v312
        %v481 = vunpack.c.l.b16 %v313
        %v482 = vunpack.c.l.b16 %v314
        %v483 = vunpack.c.l.b16 %v315
        %v484 = vunpack.c.l.b16 %v316
        %v485 = vunpack.c.l.b16 %v317
        %v486 = vunpack.c.l.b16 %v318
        %v487 = vunpack.c.l.b16 %v319
        %v488 = vunpack.c.l.b16 %v320
        %v489 = vunpack.c.l.b16 %v321
        %v490 = vunpack.c.l.b16 %v322
        %v491 = vunpack.c.l.b16 %v323
        %v492 = vunpack.c.l.b16 %v324
        %v493 = vunpack.c.l.b16 %v325
        %v494 = vunpack.c.l.b16 %v326
        %v495 = vunpack.c.l.b16 %v327
        %v496 = vunpack.c.l.b16 %v328
        %v497 = vunpack.c.l.b16 %v329
        %v498 = vunpack.c.l.b16 %v330
        %v499 = vunpack.c.l.b16 %v331
        %v500 = vunpack.c.l.b16 %v332
        %v501 = vunpack.c.l.b16 %v333
        %v502 = vunpack.c.l.b16 %v334
        %v503 = vunpack.c.l.b16 %v335
        %v504 = vunpack.c.l.b16 %v336
        %v505 = vunpack.c.l.b16 %v337
        %v506 = vunpack.c.l.b16 %v338
        %v507 = vunpack.c.l.b16 %v339
        %v508 = vunpack.c.l.b16 %v340
        %v509 = vunpack.c.l.b16 %v341
        %v510 = vunpack.c.l.b16 %v342
        %v511 = vunpack.c.l.b16 %v343
        %v512 = vunpack.c.l.b16 %v344
        %v513 = vunpack.c.l.b16 %v345
        %v514 = vunpack.c.l.b16 %v346
        %v515 = vunpack.c.l.b16 %v347
        %v516 = vunpack.c.l.b16 %v348
        %v517 = vunpack.c.l.b16 %v349
        %v518 = vunpack.c.l.b16 %v350
        %v519 = vunpack.c.l.b16 %v351
        %v520 = vunpack.c.l.b16 %v352
        %v521 = vunpack.c.l.b16 %v353
        %v522 = vunpack.c.l.b16 %v354
        %v523 = vunpack.c.l.b16 %v355
        %v524 = vunpack.c.l.b16 %v356
        %v525 = vunpack.c.l.b16 %v357
        %v526 = vunpack.c.l.b16 %v358
        %v527 = vunpack.c.l.b16 %v359
        %v528 = vunpack.c.l.b16 %v360
        %v529 = vunpack.c.l.b16 %v361
        %v530 = vunpack.c.l.b16 %v362
        %v531 = vunpack.c.l.b16 %v363
        %v532 = vunpack.c.l.b16 %v364
        %v533 = vunpack.c.l.b16 %v365
        %v534 = vunpack.c.l.b16 %v366
        %v535 = vunpack.c.l.b16 %v367
        %v536 = vunpack.c.l.b16 %v368
        %v537 = vunpack.c.l.b16 %v369
        %v538 = vunpack.c.l.b16 %v370
        %v539 = vunpack.c.l.b16 %v371
        %v540 = vpack.c.b16 %v477, %v476
        %v541 = vpack.c.b16 %v479, %v478
        %v542 = vpack.c.b16 %v481, %v480
        %v543 = vpack.c.b16 %v483, %v482
        %v544 = vpack.c.b16 %v485, %v484
        %v545 = vpack.c.b16 %v487, %v486
        %v546 = vpack.c.b16 %v489, %v488
        %v547 = vpack.c.b16 %v491, %v490
        %v548 = vpack.c.b16 %v493, %v492
        %v549 = vpack.c.b16 %v495, %v494
        %v550 = vpack.c.b16 %v497, %v496
        %v551 = vpack.c.b16 %v499, %v498
        %v552 = vpack.c.b16 %v501, %v500
        %v553 = vpack.c.b16 %v503, %v502
        %v554 = vpack.c.b16 %v505, %v504
        %v555 = vpack.c.b16 %v507, %v506
        %v556 = vpack.c.b16 %v509, %v508
        %v557 = vpack.c.b16 %v511, %v510
        %v558 = vpack.c.b16 %v513, %v512
        %v559 = vpack.c.b16 %v515, %v514
        %v560 = vpack.c.b16 %v517, %v516
        %v561 = vpack.c.b16 %v519, %v518
        %v562 = vpack.c.b16 %v521, %v520
        %v563 = vpack.c.b16 %v523, %v522
        %v564 = vpack.c.b16 %v525, %v524
        %v565 = vpack.c.b16 %v527, %v526
        %v566 = vpack.c.b16 %v529, %v528
        %v567 = vpack.c.b16 %v531, %v530
        %v568 = vpack.c.b16 %v533, %v532
        %v569 = vpack.c.b16 %v535, %v534
        %v570 = vpack.c.b16 %v537, %v536
        %v571 = vpack.c.b16 %v539, %v538
        %604 = vmatprep.subr.bf16.mxu0 0
        %605 = vmatpush1.bf16.msra.mxu0 %v540
        %606 = vmatprep.subr.bf16.mxu0 0
        %607 = vmatpush1.bf16.msra.mxu0 %v541
        %608 = vmatprep.subr.bf16.mxu0 0
        %609 = vmatpush1.bf16.msra.mxu0 %v542
        %610 = vmatprep.subr.bf16.mxu0 0
        %611 = vmatpush1.bf16.msra.mxu0 %v543
        %612 = vmatprep.subr.bf16.mxu0 0
        %613 = vmatpush1.bf16.msra.mxu0 %v544
        %614 = vmatprep.subr.bf16.mxu0 0
        %615 = vmatpush1.bf16.msra.mxu0 %v545
        %616 = vmatprep.subr.bf16.mxu0 0
        %617 = vmatpush1.bf16.msra.mxu0 %v546
        %618 = vmatprep.subr.bf16.mxu0 0
        %619 = vmatpush1.bf16.msra.mxu0 %v547
        %620 = vmatprep.subr.bf16.mxu0 0
        %621 = vmatpush1.bf16.msra.mxu0 %v548
        %622 = vmatprep.subr.bf16.mxu0 0
        %623 = vmatpush1.bf16.msra.mxu0 %v549
        %624 = vmatprep.subr.bf16.mxu0 0
        %625 = vmatpush1.bf16.msra.mxu0 %v550
        %626 = vmatprep.subr.bf16.mxu0 0
        %627 = vmatpush1.bf16.msra.mxu0 %v551
        %628 = vmatprep.subr.bf16.mxu0 0
        %629 = vmatpush1.bf16.msra.mxu0 %v552
        %630 = vmatprep.subr.bf16.mxu0 0
        %631 = vmatpush1.bf16.msra.mxu0 %v553
        %632 = vmatprep.subr.bf16.mxu0 0
        %633 = vmatpush1.bf16.msra.mxu0 %v554
        %634 = vmatprep.subr.bf16.mxu0 0
        %635 = vmatpush1.bf16.msra.mxu0 %v555
        %636 = vmatprep.mubr.bf16.mxu0 %v397
        %637 = vmatmul.mubr.bf16.gmra.mrb[0].mxu0 %v396
        %v638 = vpop.f32.mrb[0].mxu0
        %v639 = vadd.f32 0.0, %v638
        %v640 = vpop.f32.mrb[0].mxu0
        %v641 = vpop.f32.mrb[0].mxu0
        %v642 = vadd.f32 0.0, %v641
        %v643 = vpop.f32.mrb[0].mxu0
        %644 = vmatprep.mubr.bf16.mxu0 %v401
        %645 = vmatmul.mubr.bf16.gmra.mrb[0].mxu0 %v400
        %v646 = vpop.f32.mrb[0].mxu0
        %v647 = vadd.f32 0.0, %v646
        %v648 = vpop.f32.mrb[0].mxu0
        %v649 = vpop.f32.mrb[0].mxu0
        %v650 = vadd.f32 0.0, %v649
        %v651 = vpop.f32.mrb[0].mxu0
        %652 = vdwg.mxu0
        %653 = vmatprep.subr.bf16.mxu0 0
        %654 = vmatpush1.bf16.msra.mxu0 %v556
        %655 = vmatprep.subr.bf16.mxu0 0
        %656 = vmatpush1.bf16.msra.mxu0 %v557
        %657 = vmatprep.subr.bf16.mxu0 0
        %658 = vmatpush1.bf16.msra.mxu0 %v558
        %659 = vmatprep.subr.bf16.mxu0 0
        %660 = vmatpush1.bf16.msra.mxu0 %v559
        %661 = vmatprep.subr.bf16.mxu0 0
        %662 = vmatpush1.bf16.msra.mxu0 %v560
        %663 = vmatprep.subr.bf16.mxu0 0
        %664 = vmatpush1.bf16.msra.mxu0 %v561
        %665 = vmatprep.subr.bf16.mxu0 0
        %666 = vmatpush1.bf16.msra.mxu0 %v562
        %667 = vmatprep.subr.bf16.mxu0 0
        %668 = vmatpush1.bf16.msra.mxu0 %v563
        %669 = vmatprep.subr.bf16.mxu0 0
        %670 = vmatpush1.bf16.msra.mxu0 %v564
        %671 = vmatprep.subr.bf16.mxu0 0
        %672 = vmatpush1.bf16.msra.mxu0 %v565
        %673 = vmatprep.subr.bf16.mxu0 0
        %674 = vmatpush1.bf16.msra.mxu0 %v566
        %675 = vmatprep.subr.bf16.mxu0 0
        %676 = vmatpush1.bf16.msra.mxu0 %v567
        %677 = vmatprep.subr.bf16.mxu0 0
        %678 = vmatpush1.bf16.msra.mxu0 %v568
        %679 = vmatprep.subr.bf16.mxu0 0
        %680 = vmatpush1.bf16.msra.mxu0 %v569
        %681 = vmatprep.subr.bf16.mxu0 0
        %682 = vmatpush1.bf16.msra.mxu0 %v570
        %683 = vmatprep.subr.bf16.mxu0 0
        %684 = vmatpush1.bf16.msra.mxu0 %v571
        %685 = vmatprep.mubr.bf16.mxu0 %v399
        %686 = vmatmul.mubr.bf16.gmra.mrb[0].mxu0 %v398
        %v687 = vpop.f32.mrb[0].mxu0
        %v688 = vadd.f32 %v639, %v687
        %v689 = vpop.f32.mrb[0].mxu0
        %v690 = vpop.f32.mrb[0].mxu0
        %v691 = vadd.f32 %v642, %v690
        %v692 = vpop.f32.mrb[0].mxu0
        %693 = vmatprep.mubr.bf16.mxu0 %v403
        %694 = vmatmul.mubr.bf16.gmra.mrb[0].mxu0 %v402
        %v695 = vpop.f32.mrb[0].mxu0
        %v696 = vadd.f32 %v647, %v695
        %v697 = vpop.f32.mrb[0].mxu0
        %v698 = vpop.f32.mrb[0].mxu0
        %v699 = vadd.f32 %v650, %v698
        %v700 = vpop.f32.mrb[0].mxu0
        %701 = vdwg.mxu0
        %v702 = vadd.f32 %v296, %v688
        %v703 = vadd.f32 %v297, %v691
        %v704 = vadd.f32 %v298, %v696
        %v705 = vadd.f32 %v299, %v699
        %706 = vst [vmem:[#allocation2] sm:$0xff] %v702
        %707 = vst [vmem:[#allocation2 + $0x8] sm:$0xff] %v703
        %708 = vst [vmem:[#allocation2 + $0x10] sm:$0xff] %v704
        %709 = vst [vmem:[#allocation2 + $0x18] sm:$0xff] %v705
        %p710 = scmp.eq.s32.totalorder %s21, 3
        // Predicated region
        $region60: #{discriminator_forward.5} parent=50 // pred_check
          %p711 = pneg %p710
        $region61: #{discriminator_forward.5} parent=50 // pred_check_branch
          %713 = sbr.rel (%p711) target = $region63
        $region62: #{discriminator_forward.5} parent=50 // pred_region
          %v714 = vld [vmem:[#allocation2] sm:$0xff]
          %v715 = vld [vmem:[#allocation2 + $0x8] sm:$0xff]
          %v716 = vld [vmem:[#allocation2 + $0x10] sm:$0xff]
          %v717 = vld [vmem:[#allocation2 + $0x18] sm:$0xff]
          %v718 = vld [vmem:[%s277] sm:$0x1]
          %v720 = vlaneseq
          %v721 = vshrl.u32 %v720, 7
          %v722 = vsub.s32 0, %v721
          %v723 = vrot.slane %v718, %v722
          %v725 = vadd.f32 %v714, %v723
          %v726 = vadd.f32 %v715, %v723
          %v727 = vadd.f32 %v716, %v723
          %v728 = vadd.f32 %v717, %v723
          %729 = vst [vmem:[%s285] sm:$0xff] %v725
          %730 = vst [vmem:[%s285 + $0x8] sm:$0xff] %v726
          %731 = vst [vmem:[%s285 + $0x10] sm:$0xff] %v727
          %732 = vst [vmem:[%s285 + $0x18] sm:$0xff] %v728
        $region63: #{discriminator_forward.5} parent=50 // pred_fallthru
          _
        %s733 = smul.u32 4, %s19
        %p734 = scmp.lt.s32.totalorder %s733, 3
        %s735 = scalar_select %p734, %s733, 3
        %p736 = scmp.lt.s32.totalorder %s20, 0
        %s737 = scalar_select %p736, %s20, 0
        %s738 = sadd.s32 %s737, %s735
        %s739 = smul.addr %s738, 8
        %s740 = scalar_lea.vmem %s3, %s739
        // Predicated region
        $region64: #{discriminator_forward.5} parent=50 // pred_check
          %p741 = pneg %p135
        $region65: #{discriminator_forward.5} parent=50 // pred_check_branch
          %743 = sbr.rel (%p741) target = $region67
        $region66: #{discriminator_forward.5} parent=50 // pred_region
          %s744 = smul.u32 4, %s19
        $region67: #{discriminator_forward.5} parent=50 // pred_fallthru
          _
        // Predicated region
        $region68: #{discriminator_forward.5} parent=50 // pred_check
          %p745 = pneg %p135
        $region69: #{discriminator_forward.5} parent=50 // pred_check_branch
          %747 = sbr.rel (%p745) target = $region71
        $region70: #{discriminator_forward.5} parent=50 // pred_region
          %s748 = smul.u32 4, %s19
          %p749 = scmp.lt.s32.totalorder %s748, 3
          %s750 = scalar_select %p749, %s748, 3
          %p751 = scmp.lt.s32.totalorder %s20, 0
          %s752 = scalar_select %p751, %s20, 0
          %s753 = sadd.s32 %s752, %s750
          %s754 = smul.addr %s753, 8
          %s755 = scalar_lea.vmem %s3, %s754
        $region71: #{discriminator_forward.5} parent=50 // pred_fallthru
          _
      $region51: #{discriminator_forward.5} parent=5 // pred_fallthru
        _
      %p756 = scmp.le.s32.totalorder 2, %s9
      // Predicated region
      $region72: #{discriminator_forward.5} parent=5 // pred_check
        %p757 = pneg %p756
      $region73: #{discriminator_forward.5} parent=5 // pred_check_branch
        %759 = sbr.rel (%p757) target = $region75
      $region74: #{discriminator_forward.5} parent=5 // pred_region
        %s760 = ssub.s32 %s9, 2
      $region75: #{discriminator_forward.5} parent=5 // pred_fallthru
        _
    $region6: #{discriminator_forward.5} parent=1 // loop_footer
      %s13 = sadd.s32 1, %s9
    $region7: #{discriminator_forward.5} parent=1 // loop_footer_branch
      %8 = sbr.rel target = $region3
    $region8: #{discriminator_forward.5} parent=1 // loop_exit
      _

// kernel: discriminator_forward.7
$region0: #{discriminator_forward.7}
  #allocation0 [shape = 'u32[]', space=smem, size = 0x4, offset = 0x4, fixed_abs, tag = 'smem constant byte address 0x4 - core index']
  #allocation1 [shape = 'u32[144,128]{1,0:T(1,128)}', space=vmem, size = 0x12000, scoped, tag = 'internal scratch']
  #allocation2 [shape = 'f32[2,1024]{1,0:T(2,128)}', space=vmem, size = 0x2000, scoped, tag = 'scratch operand']
  %s0 = inlined_call_operand.vmem [shape: bf16[2,2048], index: 0, kind: input, shape index: {}]
  %s1 = inlined_call_operand.vmem [shape: bf16[2048,1024], index: 1, kind: input, shape index: {}]
  %s2 = inlined_call_operand.vmem [shape: f32[1,1024], index: 2, kind: input, shape index: {}]
  %s3 = inlined_call_operand.vmem [shape: bf16[1024,512], index: 3, kind: input, shape index: {}]
  %s4 = inlined_call_operand.vmem [shape: f32[1,512], index: 4, kind: input, shape index: {}]
  %s5 = inlined_call_operand.vmem [shape: bf16[512,128], index: 5, kind: input, shape index: {}]
  %s6 = inlined_call_operand.vmem [shape: f32[1,128], index: 6, kind: input, shape index: {}]
  %s7 = inlined_call_operand.hbm [shape: f32[2,512], index: 7, kind: output, shape index: {0}]
  %s8 = inlined_call_operand.vmem [shape: f32[2,128], index: 8, kind: output, shape index: {1}]
  %9 = xla_tuple %s7, %s8
  %s10 = sld [smem:[#allocation0]]
  $region77: #{discriminator_forward.7} parent=0
    _
  %s12 = ssub.s32 1, %s10
  %s13 = scalar_select 0, %s12, %s10
  $region1: #{discriminator_forward.7} parent=0
    #allocation3 [shape = 'u8[4096]{0}', space=vmem, size = 0x1000, scoped, tag = 'output window, operand 0, single buffered']
    #allocation4 [shape = 's32[2]{0}', space=sflag, size = 0x8, scoped, tag = 'scoped memory for discriminator_forward.7']
    %14 = vsyncpa [#allocation4], 0
    loop: start=0, step=1, limit=6
    $region2: #{discriminator_forward.7} parent=1 // loop_pre_header
      _
    $region3: #{discriminator_forward.7} parent=1 // loop_header
      %s16 = sphi 0, %s20
      %p17 = scmp.ge.s32.totalorder %s16, 6
      %s26 = sphi 0, %s28
      %s29 = sphi 0, %s26
      %s30 = sphi 0, %s29
      %s46 = sphi 0, %s30
      %s52 = sphi 0, %s54
      %s55 = sphi 0, %s52
      %s56 = sphi 0, %s55
      %s72 = sphi 0, %s56
      %s76 = sphi 0, %s76
      %s78 = sphi 0, %s76
      %s79 = sphi 0, %s78
      %s93 = sphi 0, %s79
      %s97 = sphi 0, %s97
      %s99 = sphi 0, %s97
      %s100 = sphi 0, %s99
      %s114 = sphi 0, %s100
      %s118 = sphi 0, %s118
      %s120 = sphi 0, %s118
      %s121 = sphi 0, %s120
      %s135 = sphi 0, %s121
      %s139 = sphi 0, %s139
      %s141 = sphi 0, %s139
      %s142 = sphi 0, %s141
      %s156 = sphi 0, %s142
      %s160 = sphi 0, %s160
      %s162 = sphi 0, %s160
      %s163 = sphi 0, %s162
      %s177 = sphi 0, %s163
      %s181 = sphi 0, %s181
      %s183 = sphi 0, %s181
      %s184 = sphi 0, %s183
      %s198 = sphi 0, %s184
      %s202 = sphi 0, %s202
      %s204 = sphi 0, %s202
      %s205 = sphi 0, %s204
      %s219 = sphi 0, %s205
    $region4: #{discriminator_forward.7} parent=1 // loop_header_branch
      %19 = sbr.rel (%p17) target = $region8
    $region5: #{discriminator_forward.7} parent=1 // loop_body
      %s21 = ssub.s32 %s16, 1
      %s22 = ssub.s32 %s16, 2
      %s23 = sadd.s32 %s16, 1
      %s24 = ssub.s32 %s16, %s23
      %p25 = scmp.eq.s32.totalorder %s24, 0
      %s27 = sadd.s32 %s26, 1
      %s28 = scalar_select %p25, %s26, %s27
      %p31 = pneg %p25
      %p32 = scmp.eq.s32.totalorder %s16, 3
      %p33 = por %p31, %p32
      %p34 = scmp.ne.s32.totalorder %s26, %s29
      %p35 = scmp.eq.s32.totalorder %s16, 0
      %p36 = por %p34, %p35
      %p37 = scmp.ne.s32.totalorder %s26, %s29
      %p38 = scmp.eq.s32.totalorder %s21, 3
      %p39 = por %p37, %p38
      %p40 = scmp.ne.s32.totalorder %s29, %s30
      %p41 = scmp.eq.s32.totalorder %s21, 0
      %p42 = por %p40, %p41
      %p43 = scmp.ne.s32.totalorder %s29, %s30
      %p44 = scmp.eq.s32.totalorder %s22, 3
      %p45 = por %p43, %p44
      %p47 = scmp.ne.s32.totalorder %s30, %s46
      %p48 = scmp.eq.s32.totalorder %s22, 0
      %p49 = por %p47, %p48
      %s50 = ssub.s32 %s16, %s23
      %p51 = scmp.eq.s32.totalorder %s50, 0
      %s53 = sadd.s32 %s52, 1
      %s54 = scalar_select %p51, %s52, %s53
      %p57 = pneg %p51
      %p58 = scmp.eq.s32.totalorder %s16, 3
      %p59 = por %p57, %p58
      %p60 = scmp.ne.s32.totalorder %s52, %s55
      %p61 = scmp.eq.s32.totalorder %s16, 0
      %p62 = por %p60, %p61
      %p63 = scmp.ne.s32.totalorder %s52, %s55
      %p64 = scmp.eq.s32.totalorder %s21, 3
      %p65 = por %p63, %p64
      %p66 = scmp.ne.s32.totalorder %s55, %s56
      %p67 = scmp.eq.s32.totalorder %s21, 0
      %p68 = por %p66, %p67
      %p69 = scmp.ne.s32.totalorder %s55, %s56
      %p70 = scmp.eq.s32.totalorder %s22, 3
      %p71 = por %p69, %p70
      %p73 = scmp.ne.s32.totalorder %s56, %s72
      %p74 = scmp.eq.s32.totalorder %s22, 0
      %p75 = por %p73, %p74
      %s77 = sadd.s32 %s76, 1
      %p80 = scmp.eq.s32.totalorder %s16, 3
      %p81 = scmp.ne.s32.totalorder %s76, %s78
      %p82 = scmp.eq.s32.totalorder %s16, 0
      %p83 = por %p81, %p82
      %p84 = scmp.ne.s32.totalorder %s76, %s78
      %p85 = scmp.eq.s32.totalorder %s21, 3
      %p86 = por %p84, %p85
      %p87 = scmp.ne.s32.totalorder %s78, %s79
      %p88 = scmp.eq.s32.totalorder %s21, 0
      %p89 = por %p87, %p88
      %p90 = scmp.ne.s32.totalorder %s78, %s79
      %p91 = scmp.eq.s32.totalorder %s22, 3
      %p92 = por %p90, %p91
      %p94 = scmp.ne.s32.totalorder %s79, %s93
      %p95 = scmp.eq.s32.totalorder %s22, 0
      %p96 = por %p94, %p95
      %s98 = sadd.s32 %s97, 1
      %p101 = scmp.eq.s32.totalorder %s16, 3
      %p102 = scmp.ne.s32.totalorder %s97, %s99
      %p103 = scmp.eq.s32.totalorder %s16, 0
      %p104 = por %p102, %p103
      %p105 = scmp.ne.s32.totalorder %s97, %s99
      %p106 = scmp.eq.s32.totalorder %s21, 3
      %p107 = por %p105, %p106
      %p108 = scmp.ne.s32.totalorder %s99, %s100
      %p109 = scmp.eq.s32.totalorder %s21, 0
      %p110 = por %p108, %p109
      %p111 = scmp.ne.s32.totalorder %s99, %s100
      %p112 = scmp.eq.s32.totalorder %s22, 3
      %p113 = por %p111, %p112
      %p115 = scmp.ne.s32.totalorder %s100, %s114
      %p116 = scmp.eq.s32.totalorder %s22, 0
      %p117 = por %p115, %p116
      %s119 = sadd.s32 %s118, 1
      %p122 = scmp.eq.s32.totalorder %s16, 3
      %p123 = scmp.ne.s32.totalorder %s118, %s120
      %p124 = scmp.eq.s32.totalorder %s16, 0
      %p125 = por %p123, %p124
      %p126 = scmp.ne.s32.totalorder %s118, %s120
      %p127 = scmp.eq.s32.totalorder %s21, 3
      %p128 = por %p126, %p127
      %p129 = scmp.ne.s32.totalorder %s120, %s121
      %p130 = scmp.eq.s32.totalorder %s21, 0
      %p131 = por %p129, %p130
      %p132 = scmp.ne.s32.totalorder %s120, %s121
      %p133 = scmp.eq.s32.totalorder %s22, 3
      %p134 = por %p132, %p133
      %p136 = scmp.ne.s32.totalorder %s121, %s135
      %p137 = scmp.eq.s32.totalorder %s22, 0
      %p138 = por %p136, %p137
      %s140 = sadd.s32 %s139, 1
      %p143 = scmp.eq.s32.totalorder %s16, 3
      %p144 = scmp.ne.s32.totalorder %s139, %s141
      %p145 = scmp.eq.s32.totalorder %s16, 0
      %p146 = por %p144, %p145
      %p147 = scmp.ne.s32.totalorder %s139, %s141
      %p148 = scmp.eq.s32.totalorder %s21, 3
      %p149 = por %p147, %p148
      %p150 = scmp.ne.s32.totalorder %s141, %s142
      %p151 = scmp.eq.s32.totalorder %s21, 0
      %p152 = por %p150, %p151
      %p153 = scmp.ne.s32.totalorder %s141, %s142
      %p154 = scmp.eq.s32.totalorder %s22, 3
      %p155 = por %p153, %p154
      %p157 = scmp.ne.s32.totalorder %s142, %s156
      %p158 = scmp.eq.s32.totalorder %s22, 0
      %p159 = por %p157, %p158
      %s161 = sadd.s32 %s160, 1
      %p164 = scmp.eq.s32.totalorder %s16, 3
      %p165 = scmp.ne.s32.totalorder %s160, %s162
      %p166 = scmp.eq.s32.totalorder %s16, 0
      %p167 = por %p165, %p166
      %p168 = scmp.ne.s32.totalorder %s160, %s162
      %p169 = scmp.eq.s32.totalorder %s21, 3
      %p170 = por %p168, %p169
      %p171 = scmp.ne.s32.totalorder %s162, %s163
      %p172 = scmp.eq.s32.totalorder %s21, 0
      %p173 = por %p171, %p172
      %p174 = scmp.ne.s32.totalorder %s162, %s163
      %p175 = scmp.eq.s32.totalorder %s22, 3
      %p176 = por %p174, %p175
      %p178 = scmp.ne.s32.totalorder %s163, %s177
      %p179 = scmp.eq.s32.totalorder %s22, 0
      %p180 = por %p178, %p179
      %s182 = sadd.s32 %s181, 1
      %p185 = scmp.eq.s32.totalorder %s16, 3
      %p186 = scmp.ne.s32.totalorder %s181, %s183
      %p187 = scmp.eq.s32.totalorder %s16, 0
      %p188 = por %p186, %p187
      %p189 = scmp.ne.s32.totalorder %s181, %s183
      %p190 = scmp.eq.s32.totalorder %s21, 3
      %p191 = por %p189, %p190
      %p192 = scmp.ne.s32.totalorder %s183, %s184
      %p193 = scmp.eq.s32.totalorder %s21, 0
      %p194 = por %p192, %p193
      %p195 = scmp.ne.s32.totalorder %s183, %s184
      %p196 = scmp.eq.s32.totalorder %s22, 3
      %p197 = por %p195, %p196
      %p199 = scmp.ne.s32.totalorder %s184, %s198
      %p200 = scmp.eq.s32.totalorder %s22, 0
      %p201 = por %p199, %p200
      %s203 = sadd.s32 %s202, 1
      %p206 = scmp.eq.s32.totalorder %s16, 3
      %p207 = scmp.ne.s32.totalorder %s202, %s204
      %p208 = scmp.eq.s32.totalorder %s16, 0
      %p209 = por %p207, %p208
      %p210 = scmp.ne.s32.totalorder %s202, %s204
      %p211 = scmp.eq.s32.totalorder %s21, 3
      %p212 = por %p210, %p211
      %p213 = scmp.ne.s32.totalorder %s204, %s205
      %p214 = scmp.eq.s32.totalorder %s21, 0
      %p215 = por %p213, %p214
      %p216 = scmp.ne.s32.totalorder %s204, %s205
      %p217 = scmp.eq.s32.totalorder %s22, 3
      %p218 = por %p216, %p217
      %p220 = scmp.ne.s32.totalorder %s205, %s219
      %p221 = scmp.eq.s32.totalorder %s22, 0
      %p222 = por %p220, %p221
      %p223 = scmp.le.s32.totalorder 1, %s16
      %p224 = scmp.lt.s32.totalorder %s16, 5
      %p225 = pnand %p223, %p224
      %p226 = pneg %p225
      // Predicated region
      $region9: #{discriminator_forward.7} parent=5 // pred_check
        _
      $region10: #{discriminator_forward.7} parent=5 // pred_check_branch
        %228 = sbr.rel (%p225) target = $region12
      $region11: #{discriminator_forward.7} parent=5 // pred_region
        %s229 = ssub.s32 %s16, 1
        // Predicated region
        $region13: #{discriminator_forward.7} parent=11 // pred_check
          %p230 = pneg %p89
        $region14: #{discriminator_forward.7} parent=11 // pred_check_branch
          %232 = sbr.rel (%p230) target = $region16
        $region15: #{discriminator_forward.7} parent=11 // pred_region
          _
        $region16: #{discriminator_forward.7} parent=11 // pred_fallthru
          _
        // Predicated region
        $region17: #{discriminator_forward.7} parent=11 // pred_check
          %p233 = pneg %p110
        $region18: #{discriminator_forward.7} parent=11 // pred_check_branch
          %235 = sbr.rel (%p233) target = $region20
        $region19: #{discriminator_forward.7} parent=11 // pred_region
          _
        $region20: #{discriminator_forward.7} parent=11 // pred_fallthru
          _
        // Predicated region
        $region21: #{discriminator_forward.7} parent=11 // pred_check
          %p236 = pneg %p131
        $region22: #{discriminator_forward.7} parent=11 // pred_check_branch
          %238 = sbr.rel (%p236) target = $region24
        $region23: #{discriminator_forward.7} parent=11 // pred_region
          _
        $region24: #{discriminator_forward.7} parent=11 // pred_fallthru
          _
        // Predicated region
        $region25: #{discriminator_forward.7} parent=11 // pred_check
          %p239 = pneg %p152
        $region26: #{discriminator_forward.7} parent=11 // pred_check_branch
          %241 = sbr.rel (%p239) target = $region28
        $region27: #{discriminator_forward.7} parent=11 // pred_region
          _
        $region28: #{discriminator_forward.7} parent=11 // pred_fallthru
          _
        // Predicated region
        $region29: #{discriminator_forward.7} parent=11 // pred_check
          %p242 = pneg %p173
        $region30: #{discriminator_forward.7} parent=11 // pred_check_branch
          %244 = sbr.rel (%p242) target = $region32
        $region31: #{discriminator_forward.7} parent=11 // pred_region
          _
        $region32: #{discriminator_forward.7} parent=11 // pred_fallthru
          _
      $region12: #{discriminator_forward.7} parent=5 // pred_fallthru
        _
      %p245 = scmp.lt.s32.totalorder %s16, 4
      // Predicated region
      $region33: #{discriminator_forward.7} parent=5 // pred_check
        %p246 = pneg %p245
      $region34: #{discriminator_forward.7} parent=5 // pred_check_branch
        %248 = sbr.rel (%p246) target = $region36
      $region35: #{discriminator_forward.7} parent=5 // pred_region
        // Predicated region
        $region37: #{discriminator_forward.7} parent=35 // pred_check
          %p249 = pneg %p36
        $region38: #{discriminator_forward.7} parent=35 // pred_check_branch
          %251 = sbr.rel (%p249) target = $region40
        $region39: #{discriminator_forward.7} parent=35 // pred_region
          %s252 = smul.u32 4, %s16
          %p253 = scmp.lt.s32.totalorder %s252, 15
          %s254 = scalar_select %p253, %s252, 15
          %s255 = scalar_lea.vmem %s0, %s254
          %s256 = smul.u32 4, %s16
        $region40: #{discriminator_forward.7} parent=35 // pred_fallthru
          _
        // Predicated region
        $region41: #{discriminator_forward.7} parent=35 // pred_check
          %p257 = pneg %p62
        $region42: #{discriminator_forward.7} parent=35 // pred_check_branch
          %259 = sbr.rel (%p257) target = $region44
        $region43: #{discriminator_forward.7} parent=35 // pred_region
          %s260 = smul.u32 64, %s16
          %p261 = scmp.lt.s32.totalorder %s260, 255
          %s262 = scalar_select %p261, %s260, 255
          %s263 = smul.addr %s262, 8
          %s264 = smul.addr %s263, 4
          %s265 = scalar_lea.vmem %s1, %s264
          %s266 = smul.u32 64, %s16
        $region44: #{discriminator_forward.7} parent=35 // pred_fallthru
          _
      $region36: #{discriminator_forward.7} parent=5 // pred_fallthru
        _
      %p267 = scmp.le.s32.totalorder 1, %s16
      %p268 = scmp.lt.s32.totalorder %s16, 5
      %p269 = pnand %p267, %p268
      %p270 = pneg %p269
      // Predicated region
      $region45: #{discriminator_forward.7} parent=5 // pred_check
        _
      $region46: #{discriminator_forward.7} parent=5 // pred_check_branch
        %272 = sbr.rel (%p269) target = $region48
      $region47: #{discriminator_forward.7} parent=5 // pred_region
        %s273 = ssub.s32 %s16, 1
        %s274 = smul.u32 4, %s21
        %p275 = scmp.lt.s32.totalorder %s274, 15
        %s276 = scalar_select %p275, %s274, 15
        %s277 = scalar_lea.vmem %s0, %s276
        %p278 = pneg %p42
        %p279 = pneg %p39
        %s280 = smul.u32 64, %s21
        %p281 = scmp.lt.s32.totalorder %s280, 255
        %s282 = scalar_select %p281, %s280, 255
        %s283 = smul.addr %s282, 8
        %s284 = smul.addr %s283, 4
        %s285 = scalar_lea.vmem %s1, %s284
        %p286 = pneg %p68
        %p287 = pneg %p65
        %p288 = pneg %p89
        %p289 = pneg %p86
        %p290 = pneg %p110
        %p291 = pneg %p107
        %p292 = pneg %p131
        %p293 = pneg %p128
        %p294 = pneg %p152
        %p295 = pneg %p149
        %p296 = pneg %p173
        %p297 = pneg %p170
        %p298 = pneg %p194
        %p299 = pneg %p191
        %p300 = pneg %p215
        %p301 = pneg %p212
        %s302 = smul.u32 4, %s21
        %p303 = scmp.lt.s32.totalorder %s302, 15
        %s304 = scalar_select %p303, %s302, 15
        %s305 = scalar_lea.vmem %s0, %s304
        %s306 = smul.u32 4, %s21
        %s307 = smul.u32 64, %s21
        %p308 = scmp.lt.s32.totalorder %s307, 255
        %s309 = scalar_select %p308, %s307, 255
        %s310 = smul.addr %s309, 8
        %s311 = smul.addr %s310, 4
        %s312 = scalar_lea.vmem %s1, %s311
        %s313 = smul.u32 64, %s21
        %p315 = scmp.eq.s32.totalorder %s21, 0
        // Predicated region
        $region49: #{discriminator_forward.7} parent=47 // pred_check
          %p316 = pneg %p315
        $region50: #{discriminator_forward.7} parent=47 // pred_check_branch
          %318 = sbr.rel (%p316) target = $region52
        $region51: #{discriminator_forward.7} parent=47 // pred_region
          %319 = vst [vmem:[#allocation2] sm:$0xff] 0.0
          %320 = vst [vmem:[#allocation2 + $0x8] sm:$0xff] 0.0
        $region52: #{discriminator_forward.7} parent=47 // pred_fallthru
          _
        %v321 = vld [vmem:[#allocation2] sm:$0xff]
        %v322 = vld [vmem:[#allocation2 + $0x8] sm:$0xff]
        %v323 = vld [vmem:[%s305] sm:$0xf]
        %v324 = vld [vmem:[%s312] sm:$0xff]
        %v325 = vld [vmem:[%s312 + $0x8] sm:$0xff]
        %v326 = vld [vmem:[%s312 + $0x10] sm:$0xff]
        %v327 = vld [vmem:[%s312 + $0x18] sm:$0xff]
        %v328 = vld [vmem:[%s312 + $0x20] sm:$0xff]
        %v329 = vld [vmem:[%s312 + $0x28] sm:$0xff]
        %v330 = vld [vmem:[%s312 + $0x30] sm:$0xff]
        %v331 = vld [vmem:[%s312 + $0x38] sm:$0xff]
        %v332 = vld [vmem:[%s312 + $0x40] sm:$0xff]
        %v333 = vld [vmem:[%s312 + $0x48] sm:$0xff]
        %v334 = vld [vmem:[%s312 + $0x50] sm:$0xff]
        %v335 = vld [vmem:[%s312 + $0x58] sm:$0xff]
        %v336 = vld [vmem:[%s312 + $0x60] sm:$0xff]
        %v337 = vld [vmem:[%s312 + $0x68] sm:$0xff]
        %v338 = vld [vmem:[%s312 + $0x70] sm:$0xff]
        %v339 = vld [vmem:[%s312 + $0x78] sm:$0xff]
        %v340 = vld [vmem:[%s312 + $0x80] sm:$0xff]
        %v341 = vld [vmem:[%s312 + $0x88] sm:$0xff]
        %v342 = vld [vmem:[%s312 + $0x90] sm:$0xff]
        %v343 = vld [vmem:[%s312 + $0x98] sm:$0xff]
        %v344 = vld [vmem:[%s312 + $0xa0] sm:$0xff]
        %v345 = vld [vmem:[%s312 + $0xa8] sm:$0xff]
        %v346 = vld [vmem:[%s312 + $0xb0] sm:$0xff]
        %v347 = vld [vmem:[%s312 + $0xb8] sm:$0xff]
        %v348 = vld [vmem:[%s312 + $0xc0] sm:$0xff]
        %v349 = vld [vmem:[%s312 + $0xc8] sm:$0xff]
        %v350 = vld [vmem:[%s312 + $0xd0] sm:$0xff]
        %v351 = vld [vmem:[%s312 + $0xd8] sm:$0xff]
        %v352 = vld [vmem:[%s312 + $0xe0] sm:$0xff]
        %v353 = vld [vmem:[%s312 + $0xe8] sm:$0xff]
        %v354 = vld [vmem:[%s312 + $0xf0] sm:$0xff]
        %v355 = vld [vmem:[%s312 + $0xf8] sm:$0xff]
        %v356 = vld [vmem:[%s312 + $0x100] sm:$0xff]
        %v357 = vld [vmem:[%s312 + $0x108] sm:$0xff]
        %v358 = vld [vmem:[%s312 + $0x110] sm:$0xff]
        %v359 = vld [vmem:[%s312 + $0x118] sm:$0xff]
        %v360 = vld [vmem:[%s312 + $0x120] sm:$0xff]
        %v361 = vld [vmem:[%s312 + $0x128] sm:$0xff]
        %v362 = vld [vmem:[%s312 + $0x130] sm:$0xff]
        %v363 = vld [vmem:[%s312 + $0x138] sm:$0xff]
        %v364 = vld [vmem:[%s312 + $0x140] sm:$0xff]
        %v365 = vld [vmem:[%s312 + $0x148] sm:$0xff]
        %v366 = vld [vmem:[%s312 + $0x150] sm:$0xff]
        %v367 = vld [vmem:[%s312 + $0x158] sm:$0xff]
        %v368 = vld [vmem:[%s312 + $0x160] sm:$0xff]
        %v369 = vld [vmem:[%s312 + $0x168] sm:$0xff]
        %v370 = vld [vmem:[%s312 + $0x170] sm:$0xff]
        %v371 = vld [vmem:[%s312 + $0x178] sm:$0xff]
        %v372 = vld [vmem:[%s312 + $0x180] sm:$0xff]
        %v373 = vld [vmem:[%s312 + $0x188] sm:$0xff]
        %v374 = vld [vmem:[%s312 + $0x190] sm:$0xff]
        %v375 = vld [vmem:[%s312 + $0x198] sm:$0xff]
        %v376 = vld [vmem:[%s312 + $0x1a0] sm:$0xff]
        %v377 = vld [vmem:[%s312 + $0x1a8] sm:$0xff]
        %v378 = vld [vmem:[%s312 + $0x1b0] sm:$0xff]
        %v379 = vld [vmem:[%s312 + $0x1b8] sm:$0xff]
        %v380 = vld [vmem:[%s312 + $0x1c0] sm:$0xff]
        %v381 = vld [vmem:[%s312 + $0x1c8] sm:$0xff]
        %v382 = vld [vmem:[%s312 + $0x1d0] sm:$0xff]
        %v383 = vld [vmem:[%s312 + $0x1d8] sm:$0xff]
        %v384 = vld [vmem:[%s312 + $0x1e0] sm:$0xff]
        %v385 = vld [vmem:[%s312 + $0x1e8] sm:$0xff]
        %v386 = vld [vmem:[%s312 + $0x1f0] sm:$0xff]
        %v387 = vld [vmem:[%s312 + $0x1f8] sm:$0xff]
        %v388 = vld [vmem:[%s312 + $0x200] sm:$0xff]
        %v389 = vld [vmem:[%s312 + $0x208] sm:$0xff]
        %v390 = vld [vmem:[%s312 + $0x210] sm:$0xff]
        %v391 = vld [vmem:[%s312 + $0x218] sm:$0xff]
        %v392 = vld [vmem:[%s312 + $0x220] sm:$0xff]
        %v393 = vld [vmem:[%s312 + $0x228] sm:$0xff]
        %v394 = vld [vmem:[%s312 + $0x230] sm:$0xff]
        %v395 = vld [vmem:[%s312 + $0x238] sm:$0xff]
        %v396 = vld [vmem:[%s312 + $0x240] sm:$0xff]
        %v397 = vld [vmem:[%s312 + $0x248] sm:$0xff]
        %v398 = vld [vmem:[%s312 + $0x250] sm:$0xff]
        %v399 = vld [vmem:[%s312 + $0x258] sm:$0xff]
        %v400 = vld [vmem:[%s312 + $0x260] sm:$0xff]
        %v401 = vld [vmem:[%s312 + $0x268] sm:$0xff]
        %v402 = vld [vmem:[%s312 + $0x270] sm:$0xff]
        %v403 = vld [vmem:[%s312 + $0x278] sm:$0xff]
        %v404 = vld [vmem:[%s312 + $0x280] sm:$0xff]
        %v405 = vld [vmem:[%s312 + $0x288] sm:$0xff]
        %v406 = vld [vmem:[%s312 + $0x290] sm:$0xff]
        %v407 = vld [vmem:[%s312 + $0x298] sm:$0xff]
        %v408 = vld [vmem:[%s312 + $0x2a0] sm:$0xff]
        %v409 = vld [vmem:[%s312 + $0x2a8] sm:$0xff]
        %v410 = vld [vmem:[%s312 + $0x2b0] sm:$0xff]
        %v411 = vld [vmem:[%s312 + $0x2b8] sm:$0xff]
        %v412 = vld [vmem:[%s312 + $0x2c0] sm:$0xff]
        %v413 = vld [vmem:[%s312 + $0x2c8] sm:$0xff]
        %v414 = vld [vmem:[%s312 + $0x2d0] sm:$0xff]
        %v415 = vld [vmem:[%s312 + $0x2d8] sm:$0xff]
        %v416 = vld [vmem:[%s312 + $0x2e0] sm:$0xff]
        %v417 = vld [vmem:[%s312 + $0x2e8] sm:$0xff]
        %v418 = vld [vmem:[%s312 + $0x2f0] sm:$0xff]
        %v419 = vld [vmem:[%s312 + $0x2f8] sm:$0xff]
        %v420 = vld [vmem:[%s312 + $0x300] sm:$0xff]
        %v421 = vld [vmem:[%s312 + $0x308] sm:$0xff]
        %v422 = vld [vmem:[%s312 + $0x310] sm:$0xff]
        %v423 = vld [vmem:[%s312 + $0x318] sm:$0xff]
        %v424 = vld [vmem:[%s312 + $0x320] sm:$0xff]
        %v425 = vld [vmem:[%s312 + $0x328] sm:$0xff]
        %v426 = vld [vmem:[%s312 + $0x330] sm:$0xff]
        %v427 = vld [vmem:[%s312 + $0x338] sm:$0xff]
        %v428 = vld [vmem:[%s312 + $0x340] sm:$0xff]
        %v429 = vld [vmem:[%s312 + $0x348] sm:$0xff]
        %v430 = vld [vmem:[%s312 + $0x350] sm:$0xff]
        %v431 = vld [vmem:[%s312 + $0x358] sm:$0xff]
        %v432 = vld [vmem:[%s312 + $0x360] sm:$0xff]
        %v433 = vld [vmem:[%s312 + $0x368] sm:$0xff]
        %v434 = vld [vmem:[%s312 + $0x370] sm:$0xff]
        %v435 = vld [vmem:[%s312 + $0x378] sm:$0xff]
        %v436 = vld [vmem:[%s312 + $0x380] sm:$0xff]
        %v437 = vld [vmem:[%s312 + $0x388] sm:$0xff]
        %v438 = vld [vmem:[%s312 + $0x390] sm:$0xff]
        %v439 = vld [vmem:[%s312 + $0x398] sm:$0xff]
        %v440 = vld [vmem:[%s312 + $0x3a0] sm:$0xff]
        %v441 = vld [vmem:[%s312 + $0x3a8] sm:$0xff]
        %v442 = vld [vmem:[%s312 + $0x3b0] sm:$0xff]
        %v443 = vld [vmem:[%s312 + $0x3b8] sm:$0xff]
        %v444 = vld [vmem:[%s312 + $0x3c0] sm:$0xff]
        %v445 = vld [vmem:[%s312 + $0x3c8] sm:$0xff]
        %v446 = vld [vmem:[%s312 + $0x3d0] sm:$0xff]
        %v447 = vld [vmem:[%s312 + $0x3d8] sm:$0xff]
        %v448 = vld [vmem:[%s312 + $0x3e0] sm:$0xff]
        %v449 = vld [vmem:[%s312 + $0x3e8] sm:$0xff]
        %v450 = vld [vmem:[%s312 + $0x3f0] sm:$0xff]
        %v451 = vld [vmem:[%s312 + $0x3f8] sm:$0xff]
        %v452 = vld [vmem:[%s312 + $0x400] sm:$0xff]
        %v453 = vld [vmem:[%s312 + $0x408] sm:$0xff]
        %v454 = vld [vmem:[%s312 + $0x410] sm:$0xff]
        %v455 = vld [vmem:[%s312 + $0x418] sm:$0xff]
        %v456 = vld [vmem:[%s312 + $0x420] sm:$0xff]
        %v457 = vld [vmem:[%s312 + $0x428] sm:$0xff]
        %v458 = vld [vmem:[%s312 + $0x430] sm:$0xff]
        %v459 = vld [vmem:[%s312 + $0x438] sm:$0xff]
        %v460 = vld [vmem:[%s312 + $0x440] sm:$0xff]
        %v461 = vld [vmem:[%s312 + $0x448] sm:$0xff]
        %v462 = vld [vmem:[%s312 + $0x450] sm:$0xff]
        %v463 = vld [vmem:[%s312 + $0x458] sm:$0xff]
        %v464 = vld [vmem:[%s312 + $0x460] sm:$0xff]
        %v465 = vld [vmem:[%s312 + $0x468] sm:$0xff]
        %v466 = vld [vmem:[%s312 + $0x470] sm:$0xff]
        %v467 = vld [vmem:[%s312 + $0x478] sm:$0xff]
        %v468 = vld [vmem:[%s312 + $0x480] sm:$0xff]
        %v469 = vld [vmem:[%s312 + $0x488] sm:$0xff]
        %v470 = vld [vmem:[%s312 + $0x490] sm:$0xff]
        %v471 = vld [vmem:[%s312 + $0x498] sm:$0xff]
        %v472 = vld [vmem:[%s312 + $0x4a0] sm:$0xff]
        %v473 = vld [vmem:[%s312 + $0x4a8] sm:$0xff]
        %v474 = vld [vmem:[%s312 + $0x4b0] sm:$0xff]
        %v475 = vld [vmem:[%s312 + $0x4b8] sm:$0xff]
        %v476 = vld [vmem:[%s312 + $0x4c0] sm:$0xff]
        %v477 = vld [vmem:[%s312 + $0x4c8] sm:$0xff]
        %v478 = vld [vmem:[%s312 + $0x4d0] sm:$0xff]
        %v479 = vld [vmem:[%s312 + $0x4d8] sm:$0xff]
        %v480 = vld [vmem:[%s312 + $0x4e0] sm:$0xff]
        %v481 = vld [vmem:[%s312 + $0x4e8] sm:$0xff]
        %v482 = vld [vmem:[%s312 + $0x4f0] sm:$0xff]
        %v483 = vld [vmem:[%s312 + $0x4f8] sm:$0xff]
        %v484 = vld [vmem:[%s312 + $0x500] sm:$0xff]
        %v485 = vld [vmem:[%s312 + $0x508] sm:$0xff]
        %v486 = vld [vmem:[%s312 + $0x510] sm:$0xff]
        %v487 = vld [vmem:[%s312 + $0x518] sm:$0xff]
        %v488 = vld [vmem:[%s312 + $0x520] sm:$0xff]
        %v489 = vld [vmem:[%s312 + $0x528] sm:$0xff]
        %v490 = vld [vmem:[%s312 + $0x530] sm:$0xff]
        %v491 = vld [vmem:[%s312 + $0x538] sm:$0xff]
        %v492 = vld [vmem:[%s312 + $0x540] sm:$0xff]
        %v493 = vld [vmem:[%s312 + $0x548] sm:$0xff]
        %v494 = vld [vmem:[%s312 + $0x550] sm:$0xff]
        %v495 = vld [vmem:[%s312 + $0x558] sm:$0xff]
        %v496 = vld [vmem:[%s312 + $0x560] sm:$0xff]
        %v497 = vld [vmem:[%s312 + $0x568] sm:$0xff]
        %v498 = vld [vmem:[%s312 + $0x570] sm:$0xff]
        %v499 = vld [vmem:[%s312 + $0x578] sm:$0xff]
        %v500 = vld [vmem:[%s312 + $0x580] sm:$0xff]
        %v501 = vld [vmem:[%s312 + $0x588] sm:$0xff]
        %v502 = vld [vmem:[%s312 + $0x590] sm:$0xff]
        %v503 = vld [vmem:[%s312 + $0x598] sm:$0xff]
        %v504 = vld [vmem:[%s312 + $0x5a0] sm:$0xff]
        %v505 = vld [vmem:[%s312 + $0x5a8] sm:$0xff]
        %v506 = vld [vmem:[%s312 + $0x5b0] sm:$0xff]
        %v507 = vld [vmem:[%s312 + $0x5b8] sm:$0xff]
        %v508 = vld [vmem:[%s312 + $0x5c0] sm:$0xff]
        %v509 = vld [vmem:[%s312 + $0x5c8] sm:$0xff]
        %v510 = vld [vmem:[%s312 + $0x5d0] sm:$0xff]
        %v511 = vld [vmem:[%s312 + $0x5d8] sm:$0xff]
        %v512 = vld [vmem:[%s312 + $0x5e0] sm:$0xff]
        %v513 = vld [vmem:[%s312 + $0x5e8] sm:$0xff]
        %v514 = vld [vmem:[%s312 + $0x5f0] sm:$0xff]
        %v515 = vld [vmem:[%s312 + $0x5f8] sm:$0xff]
        %v516 = vld [vmem:[%s312 + $0x600] sm:$0xff]
        %v517 = vld [vmem:[%s312 + $0x608] sm:$0xff]
        %v518 = vld [vmem:[%s312 + $0x610] sm:$0xff]
        %v519 = vld [vmem:[%s312 + $0x618] sm:$0xff]
        %v520 = vld [vmem:[%s312 + $0x620] sm:$0xff]
        %v521 = vld [vmem:[%s312 + $0x628] sm:$0xff]
        %v522 = vld [vmem:[%s312 + $0x630] sm:$0xff]
        %v523 = vld [vmem:[%s312 + $0x638] sm:$0xff]
        %v524 = vld [vmem:[%s312 + $0x640] sm:$0xff]
        %v525 = vld [vmem:[%s312 + $0x648] sm:$0xff]
        %v526 = vld [vmem:[%s312 + $0x650] sm:$0xff]
        %v527 = vld [vmem:[%s312 + $0x658] sm:$0xff]
        %v528 = vld [vmem:[%s312 + $0x660] sm:$0xff]
        %v529 = vld [vmem:[%s312 + $0x668] sm:$0xff]
        %v530 = vld [vmem:[%s312 + $0x670] sm:$0xff]
        %v531 = vld [vmem:[%s312 + $0x678] sm:$0xff]
        %v532 = vld [vmem:[%s312 + $0x680] sm:$0xff]
        %v533 = vld [vmem:[%s312 + $0x688] sm:$0xff]
        %v534 = vld [vmem:[%s312 + $0x690] sm:$0xff]
        %v535 = vld [vmem:[%s312 + $0x698] sm:$0xff]
        %v536 = vld [vmem:[%s312 + $0x6a0] sm:$0xff]
        %v537 = vld [vmem:[%s312 + $0x6a8] sm:$0xff]
        %v538 = vld [vmem:[%s312 + $0x6b0] sm:$0xff]
        %v539 = vld [vmem:[%s312 + $0x6b8] sm:$0xff]
        %v540 = vld [vmem:[%s312 + $0x6c0] sm:$0xff]
        %v541 = vld [vmem:[%s312 + $0x6c8] sm:$0xff]
        %v542 = vld [vmem:[%s312 + $0x6d0] sm:$0xff]
        %v543 = vld [vmem:[%s312 + $0x6d8] sm:$0xff]
        %v544 = vld [vmem:[%s312 + $0x6e0] sm:$0xff]
        %v545 = vld [vmem:[%s312 + $0x6e8] sm:$0xff]
        %v546 = vld [vmem:[%s312 + $0x6f0] sm:$0xff]
        %v547 = vld [vmem:[%s312 + $0x6f8] sm:$0xff]
        %v548 = vld [vmem:[%s312 + $0x700] sm:$0xff]
        %v549 = vld [vmem:[%s312 + $0x708] sm:$0xff]
        %v550 = vld [vmem:[%s312 + $0x710] sm:$0xff]
        %v551 = vld [vmem:[%s312 + $0x718] sm:$0xff]
        %v552 = vld [vmem:[%s312 + $0x720] sm:$0xff]
        %v553 = vld [vmem:[%s312 + $0x728] sm:$0xff]
        %v554 = vld [vmem:[%s312 + $0x730] sm:$0xff]
        %v555 = vld [vmem:[%s312 + $0x738] sm:$0xff]
        %v556 = vld [vmem:[%s312 + $0x740] sm:$0xff]
        %v557 = vld [vmem:[%s312 + $0x748] sm:$0xff]
        %v558 = vld [vmem:[%s312 + $0x750] sm:$0xff]
        %v559 = vld [vmem:[%s312 + $0x758] sm:$0xff]
        %v560 = vld [vmem:[%s312 + $0x760] sm:$0xff]
        %v561 = vld [vmem:[%s312 + $0x768] sm:$0xff]
        %v562 = vld [vmem:[%s312 + $0x770] sm:$0xff]
        %v563 = vld [vmem:[%s312 + $0x778] sm:$0xff]
        %v564 = vld [vmem:[%s312 + $0x780] sm:$0xff]
        %v565 = vld [vmem:[%s312 + $0x788] sm:$0xff]
        %v566 = vld [vmem:[%s312 + $0x790] sm:$0xff]
        %v567 = vld [vmem:[%s312 + $0x798] sm:$0xff]
        %v568 = vld [vmem:[%s312 + $0x7a0] sm:$0xff]
        %v569 = vld [vmem:[%s312 + $0x7a8] sm:$0xff]
        %v570 = vld [vmem:[%s312 + $0x7b0] sm:$0xff]
        %v571 = vld [vmem:[%s312 + $0x7b8] sm:$0xff]
        %v572 = vld [vmem:[%s312 + $0x7c0] sm:$0xff]
        %v573 = vld [vmem:[%s312 + $0x7c8] sm:$0xff]
        %v574 = vld [vmem:[%s312 + $0x7d0] sm:$0xff]
        %v575 = vld [vmem:[%s312 + $0x7d8] sm:$0xff]
        %v576 = vld [vmem:[%s312 + $0x7e0] sm:$0xff]
        %v577 = vld [vmem:[%s312 + $0x7e8] sm:$0xff]
        %v578 = vld [vmem:[%s312 + $0x7f0] sm:$0xff]
        %v579 = vld [vmem:[%s312 + $0x7f8] sm:$0xff]
        %v582 = vunpack.c.l.s4 1966171168
        %v583 = vunpack.c.0.s8 %v582
        %v584 = vlaneseq
        %v585 = vshrl.u32 %v584, 7
        %v586 = vsub.s32 %v583, %v585
        %v587 = vrot.slane %v323, %v586
        %v588 = vcombine.high %v587, %v587
        %v590 = vunpack.c.l.s4 1966171168
        %v591 = vunpack.c.0.s8 %v590
        %v592 = vlaneseq
        %v593 = vshrl.u32 %v592, 7
        %v594 = vsub.s32 %v591, %v593
        %v595 = vrot.slane %v587, %v594
        %v597 = vunpack.c.l.s4 1966171168
        %v598 = vunpack.c.0.s8 %v597
        %v599 = vlaneseq
        %v600 = vshrl.u32 %v599, 7
        %v601 = vsub.s32 %v598, %v600
        %v602 = vrot.slane %v588, %v601
        %v603 = vcombine.high %v595, %v595
        %v604 = vcombine.high %v602, %v602
        %v865 = vunpack.c.l.b16 %v324
        %v866 = vunpack.c.h.b16 %v324
        %v867 = vunpack.c.l.b16 %v325
        %v868 = vunpack.c.h.b16 %v325
        %v869 = vunpack.c.l.b16 %v326
        %v870 = vunpack.c.h.b16 %v326
        %v871 = vunpack.c.l.b16 %v327
        %v872 = vunpack.c.h.b16 %v327
        %v873 = vunpack.c.l.b16 %v328
        %v874 = vunpack.c.h.b16 %v328
        %v875 = vunpack.c.l.b16 %v329
        %v876 = vunpack.c.h.b16 %v329
        %v877 = vunpack.c.l.b16 %v330
        %v878 = vunpack.c.h.b16 %v330
        %v879 = vunpack.c.l.b16 %v331
        %v880 = vunpack.c.h.b16 %v331
        %v881 = vunpack.c.l.b16 %v332
        %v882 = vunpack.c.h.b16 %v332
        %v883 = vunpack.c.l.b16 %v333
        %v884 = vunpack.c.h.b16 %v333
        %v885 = vunpack.c.l.b16 %v334
        %v886 = vunpack.c.h.b16 %v334
        %v887 = vunpack.c.l.b16 %v335
        %v888 = vunpack.c.h.b16 %v335
        %v889 = vunpack.c.l.b16 %v336
        %v890 = vunpack.c.h.b16 %v336
        %v891 = vunpack.c.l.b16 %v337
        %v892 = vunpack.c.h.b16 %v337
        %v893 = vunpack.c.l.b16 %v338
        %v894 = vunpack.c.h.b16 %v338
        %v895 = vunpack.c.l.b16 %v339
        %v896 = vunpack.c.h.b16 %v339
        %v897 = vunpack.c.l.b16 %v340
        %v898 = vunpack.c.h.b16 %v340
        %v899 = vunpack.c.l.b16 %v341
        %v900 = vunpack.c.h.b16 %v341
        %v901 = vunpack.c.l.b16 %v342
        %v902 = vunpack.c.h.b16 %v342
        %v903 = vunpack.c.l.b16 %v343
        %v904 = vunpack.c.h.b16 %v343
        %v905 = vunpack.c.l.b16 %v344
        %v906 = vunpack.c.h.b16 %v344
        %v907 = vunpack.c.l.b16 %v345
        %v908 = vunpack.c.h.b16 %v345
        %v909 = vunpack.c.l.b16 %v346
        %v910 = vunpack.c.h.b16 %v346
        %v911 = vunpack.c.l.b16 %v347
        %v912 = vunpack.c.h.b16 %v347
        %v913 = vunpack.c.l.b16 %v348
        %v914 = vunpack.c.h.b16 %v348
        %v915 = vunpack.c.l.b16 %v349
        %v916 = vunpack.c.h.b16 %v349
        %v917 = vunpack.c.l.b16 %v350
        %v918 = vunpack.c.h.b16 %v350
        %v919 = vunpack.c.l.b16 %v351
        %v920 = vunpack.c.h.b16 %v351
        %v921 = vunpack.c.l.b16 %v352
        %v922 = vunpack.c.h.b16 %v352
        %v923 = vunpack.c.l.b16 %v353
        %v924 = vunpack.c.h.b16 %v353
        %v925 = vunpack.c.l.b16 %v354
        %v926 = vunpack.c.h.b16 %v354
        %v927 = vunpack.c.l.b16 %v355
        %v928 = vunpack.c.h.b16 %v355
        %v929 = vunpack.c.l.b16 %v356
        %v930 = vunpack.c.h.b16 %v356
        %v931 = vunpack.c.l.b16 %v357
        %v932 = vunpack.c.h.b16 %v357
        %v933 = vunpack.c.l.b16 %v358
        %v934 = vunpack.c.h.b16 %v358
        %v935 = vunpack.c.l.b16 %v359
        %v936 = vunpack.c.h.b16 %v359
        %v937 = vunpack.c.l.b16 %v360
        %v938 = vunpack.c.h.b16 %v360
        %v939 = vunpack.c.l.b16 %v361
        %v940 = vunpack.c.h.b16 %v361
        %v941 = vunpack.c.l.b16 %v362
        %v942 = vunpack.c.h.b16 %v362
        %v943 = vunpack.c.l.b16 %v363
        %v944 = vunpack.c.h.b16 %v363
        %v945 = vunpack.c.l.b16 %v364
        %v946 = vunpack.c.h.b16 %v364
        %v947 = vunpack.c.l.b16 %v365
        %v948 = vunpack.c.h.b16 %v365
        %v949 = vunpack.c.l.b16 %v366
        %v950 = vunpack.c.h.b16 %v366
        %v951 = vunpack.c.l.b16 %v367
        %v952 = vunpack.c.h.b16 %v367
        %v953 = vunpack.c.l.b16 %v368
        %v954 = vunpack.c.h.b16 %v368
        %v955 = vunpack.c.l.b16 %v369
        %v956 = vunpack.c.h.b16 %v369
        %v957 = vunpack.c.l.b16 %v370
        %v958 = vunpack.c.h.b16 %v370
        %v959 = vunpack.c.l.b16 %v371
        %v960 = vunpack.c.h.b16 %v371
        %v961 = vunpack.c.l.b16 %v372
        %v962 = vunpack.c.h.b16 %v372
        %v963 = vunpack.c.l.b16 %v373
        %v964 = vunpack.c.h.b16 %v373
        %v965 = vunpack.c.l.b16 %v374
        %v966 = vunpack.c.h.b16 %v374
        %v967 = vunpack.c.l.b16 %v375
        %v968 = vunpack.c.h.b16 %v375
        %v969 = vunpack.c.l.b16 %v376
        %v970 = vunpack.c.h.b16 %v376
        %v971 = vunpack.c.l.b16 %v377
        %v972 = vunpack.c.h.b16 %v377
        %v973 = vunpack.c.l.b16 %v378
        %v974 = vunpack.c.h.b16 %v378
        %v975 = vunpack.c.l.b16 %v379
        %v976 = vunpack.c.h.b16 %v379
        %v977 = vunpack.c.l.b16 %v380
        %v978 = vunpack.c.h.b16 %v380
        %v979 = vunpack.c.l.b16 %v381
        %v980 = vunpack.c.h.b16 %v381
        %v981 = vunpack.c.l.b16 %v382
        %v982 = vunpack.c.h.b16 %v382
        %v983 = vunpack.c.l.b16 %v383
        %v984 = vunpack.c.h.b16 %v383
        %v985 = vunpack.c.l.b16 %v384
        %v986 = vunpack.c.h.b16 %v384
        %v987 = vunpack.c.l.b16 %v385
        %v988 = vunpack.c.h.b16 %v385
        %v989 = vunpack.c.l.b16 %v386
        %v990 = vunpack.c.h.b16 %v386
        %v991 = vunpack.c.l.b16 %v387
        %v992 = vunpack.c.h.b16 %v387
        %v993 = vunpack.c.l.b16 %v388
        %v994 = vunpack.c.h.b16 %v388
        %v995 = vunpack.c.l.b16 %v389
        %v996 = vunpack.c.h.b16 %v389
        %v997 = vunpack.c.l.b16 %v390
        %v998 = vunpack.c.h.b16 %v390
        %v999 = vunpack.c.l.b16 %v391
        %v1000 = vunpack.c.h.b16 %v391
        %v1001 = vunpack.c.l.b16 %v392
        %v1002 = vunpack.c.h.b16 %v392
        %v1003 = vunpack.c.l.b16 %v393
        %v1004 = vunpack.c.h.b16 %v393
        %v1005 = vunpack.c.l.b16 %v394
        %v1006 = vunpack.c.h.b16 %v394
        %v1007 = vunpack.c.l.b16 %v395
        %v1008 = vunpack.c.h.b16 %v395
        %v1009 = vunpack.c.l.b16 %v396
        %v1010 = vunpack.c.h.b16 %v396
        %v1011 = vunpack.c.l.b16 %v397
        %v1012 = vunpack.c.h.b16 %v397
        %v1013 = vunpack.c.l.b16 %v398
        %v1014 = vunpack.c.h.b16 %v398
        %v1015 = vunpack.c.l.b16 %v399
        %v1016 = vunpack.c.h.b16 %v399
        %v1017 = vunpack.c.l.b16 %v400
        %v1018 = vunpack.c.h.b16 %v400
        %v1019 = vunpack.c.l.b16 %v401
        %v1020 = vunpack.c.h.b16 %v401
        %v1021 = vunpack.c.l.b16 %v402
        %v1022 = vunpack.c.h.b16 %v402
        %v1023 = vunpack.c.l.b16 %v403
        %v1024 = vunpack.c.h.b16 %v403
        %v1025 = vunpack.c.l.b16 %v404
        %v1026 = vunpack.c.h.b16 %v404
        %v1027 = vunpack.c.l.b16 %v405
        %v1028 = vunpack.c.h.b16 %v405
        %v1029 = vunpack.c.l.b16 %v406
        %v1030 = vunpack.c.h.b16 %v406
        %v1031 = vunpack.c.l.b16 %v407
        %v1032 = vunpack.c.h.b16 %v407
        %v1033 = vunpack.c.l.b16 %v408
        %v1034 = vunpack.c.h.b16 %v408
        %v1035 = vunpack.c.l.b16 %v409
        %v1036 = vunpack.c.h.b16 %v409
        %v1037 = vunpack.c.l.b16 %v410
        %v1038 = vunpack.c.h.b16 %v410
        %v1039 = vunpack.c.l.b16 %v411
        %v1040 = vunpack.c.h.b16 %v411
        %v1041 = vunpack.c.l.b16 %v412
        %v1042 = vunpack.c.h.b16 %v412
        %v1043 = vunpack.c.l.b16 %v413
        %v1044 = vunpack.c.h.b16 %v413
        %v1045 = vunpack.c.l.b16 %v414
        %v1046 = vunpack.c.h.b16 %v414
        %v1047 = vunpack.c.l.b16 %v415
        %v1048 = vunpack.c.h.b16 %v415
        %v1049 = vunpack.c.l.b16 %v416
        %v1050 = vunpack.c.h.b16 %v416
        %v1051 = vunpack.c.l.b16 %v417
        %v1052 = vunpack.c.h.b16 %v417
        %v1053 = vunpack.c.l.b16 %v418
        %v1054 = vunpack.c.h.b16 %v418
        %v1055 = vunpack.c.l.b16 %v419
        %v1056 = vunpack.c.h.b16 %v419
        %v1057 = vunpack.c.l.b16 %v420
        %v1058 = vunpack.c.h.b16 %v420
        %v1059 = vunpack.c.l.b16 %v421
        %v1060 = vunpack.c.h.b16 %v421
        %v1061 = vunpack.c.l.b16 %v422
        %v1062 = vunpack.c.h.b16 %v422
        %v1063 = vunpack.c.l.b16 %v423
        %v1064 = vunpack.c.h.b16 %v423
        %v1065 = vunpack.c.l.b16 %v424
        %v1066 = vunpack.c.h.b16 %v424
        %v1067 = vunpack.c.l.b16 %v425
        %v1068 = vunpack.c.h.b16 %v425
        %v1069 = vunpack.c.l.b16 %v426
        %v1070 = vunpack.c.h.b16 %v426
        %v1071 = vunpack.c.l.b16 %v427
        %v1072 = vunpack.c.h.b16 %v427
        %v1073 = vunpack.c.l.b16 %v428
        %v1074 = vunpack.c.h.b16 %v428
        %v1075 = vunpack.c.l.b16 %v429
        %v1076 = vunpack.c.h.b16 %v429
        %v1077 = vunpack.c.l.b16 %v430
        %v1078 = vunpack.c.h.b16 %v430
        %v1079 = vunpack.c.l.b16 %v431
        %v1080 = vunpack.c.h.b16 %v431
        %v1081 = vunpack.c.l.b16 %v432
        %v1082 = vunpack.c.h.b16 %v432
        %v1083 = vunpack.c.l.b16 %v433
        %v1084 = vunpack.c.h.b16 %v433
        %v1085 = vunpack.c.l.b16 %v434
        %v1086 = vunpack.c.h.b16 %v434
        %v1087 = vunpack.c.l.b16 %v435
        %v1088 = vunpack.c.h.b16 %v435
        %v1089 = vunpack.c.l.b16 %v436
        %v1090 = vunpack.c.h.b16 %v436
        %v1091 = vunpack.c.l.b16 %v437
        %v1092 = vunpack.c.h.b16 %v437
        %v1093 = vunpack.c.l.b16 %v438
        %v1094 = vunpack.c.h.b16 %v438
        %v1095 = vunpack.c.l.b16 %v439
        %v1096 = vunpack.c.h.b16 %v439
        %v1097 = vunpack.c.l.b16 %v440
        %v1098 = vunpack.c.h.b16 %v440
        %v1099 = vunpack.c.l.b16 %v441
        %v1100 = vunpack.c.h.b16 %v441
        %v1101 = vunpack.c.l.b16 %v442
        %v1102 = vunpack.c.h.b16 %v442
        %v1103 = vunpack.c.l.b16 %v443
        %v1104 = vunpack.c.h.b16 %v443
        %v1105 = vunpack.c.l.b16 %v444
        %v1106 = vunpack.c.h.b16 %v444
        %v1107 = vunpack.c.l.b16 %v445
        %v1108 = vunpack.c.h.b16 %v445
        %v1109 = vunpack.c.l.b16 %v446
        %v1110 = vunpack.c.h.b16 %v446
        %v1111 = vunpack.c.l.b16 %v447
        %v1112 = vunpack.c.h.b16 %v447
        %v1113 = vunpack.c.l.b16 %v448
        %v1114 = vunpack.c.h.b16 %v448
        %v1115 = vunpack.c.l.b16 %v449
        %v1116 = vunpack.c.h.b16 %v449
        %v1117 = vunpack.c.l.b16 %v450
        %v1118 = vunpack.c.h.b16 %v450
        %v1119 = vunpack.c.l.b16 %v451
        %v1120 = vunpack.c.h.b16 %v451
        %v1121 = vunpack.c.l.b16 %v452
        %v1122 = vunpack.c.h.b16 %v452
        %v1123 = vunpack.c.l.b16 %v453
        %v1124 = vunpack.c.h.b16 %v453
        %v1125 = vunpack.c.l.b16 %v454
        %v1126 = vunpack.c.h.b16 %v454
        %v1127 = vunpack.c.l.b16 %v455
        %v1128 = vunpack.c.h.b16 %v455
        %v1129 = vunpack.c.l.b16 %v456
        %v1130 = vunpack.c.h.b16 %v456
        %v1131 = vunpack.c.l.b16 %v457
        %v1132 = vunpack.c.h.b16 %v457
        %v1133 = vunpack.c.l.b16 %v458
        %v1134 = vunpack.c.h.b16 %v458
        %v1135 = vunpack.c.l.b16 %v459
        %v1136 = vunpack.c.h.b16 %v459
        %v1137 = vunpack.c.l.b16 %v460
        %v1138 = vunpack.c.h.b16 %v460
        %v1139 = vunpack.c.l.b16 %v461
        %v1140 = vunpack.c.h.b16 %v461
        %v1141 = vunpack.c.l.b16 %v462
        %v1142 = vunpack.c.h.b16 %v462
        %v1143 = vunpack.c.l.b16 %v463
        %v1144 = vunpack.c.h.b16 %v463
        %v1145 = vunpack.c.l.b16 %v464
        %v1146 = vunpack.c.h.b16 %v464
        %v1147 = vunpack.c.l.b16 %v465
        %v1148 = vunpack.c.h.b16 %v465
        %v1149 = vunpack.c.l.b16 %v466
        %v1150 = vunpack.c.h.b16 %v466
        %v1151 = vunpack.c.l.b16 %v467
        %v1152 = vunpack.c.h.b16 %v467
        %v1153 = vunpack.c.l.b16 %v468
        %v1154 = vunpack.c.h.b16 %v468
        %v1155 = vunpack.c.l.b16 %v469
        %v1156 = vunpack.c.h.b16 %v469
        %v1157 = vunpack.c.l.b16 %v470
        %v1158 = vunpack.c.h.b16 %v470
        %v1159 = vunpack.c.l.b16 %v471
        %v1160 = vunpack.c.h.b16 %v471
        %v1161 = vunpack.c.l.b16 %v472
        %v1162 = vunpack.c.h.b16 %v472
        %v1163 = vunpack.c.l.b16 %v473
        %v1164 = vunpack.c.h.b16 %v473
        %v1165 = vunpack.c.l.b16 %v474
        %v1166 = vunpack.c.h.b16 %v474
        %v1167 = vunpack.c.l.b16 %v475
        %v1168 = vunpack.c.h.b16 %v475
        %v1169 = vunpack.c.l.b16 %v476
        %v1170 = vunpack.c.h.b16 %v476
        %v1171 = vunpack.c.l.b16 %v477
        %v1172 = vunpack.c.h.b16 %v477
        %v1173 = vunpack.c.l.b16 %v478
        %v1174 = vunpack.c.h.b16 %v478
        %v1175 = vunpack.c.l.b16 %v479
        %v1176 = vunpack.c.h.b16 %v479
        %v1177 = vunpack.c.l.b16 %v480
        %v1178 = vunpack.c.h.b16 %v480
        %v1179 = vunpack.c.l.b16 %v481
        %v1180 = vunpack.c.h.b16 %v481
        %v1181 = vunpack.c.l.b16 %v482
        %v1182 = vunpack.c.h.b16 %v482
        %v1183 = vunpack.c.l.b16 %v483
        %v1184 = vunpack.c.h.b16 %v483
        %v1185 = vunpack.c.l.b16 %v484
        %v1186 = vunpack.c.h.b16 %v484
        %v1187 = vunpack.c.l.b16 %v485
        %v1188 = vunpack.c.h.b16 %v485
        %v1189 = vunpack.c.l.b16 %v486
        %v1190 = vunpack.c.h.b16 %v486
        %v1191 = vunpack.c.l.b16 %v487
        %v1192 = vunpack.c.h.b16 %v487
        %v1193 = vunpack.c.l.b16 %v488
        %v1194 = vunpack.c.h.b16 %v488
        %v1195 = vunpack.c.l.b16 %v489
        %v1196 = vunpack.c.h.b16 %v489
        %v1197 = vunpack.c.l.b16 %v490
        %v1198 = vunpack.c.h.b16 %v490
        %v1199 = vunpack.c.l.b16 %v491
        %v1200 = vunpack.c.h.b16 %v491
        %v1201 = vunpack.c.l.b16 %v492
        %v1202 = vunpack.c.h.b16 %v492
        %v1203 = vunpack.c.l.b16 %v493
        %v1204 = vunpack.c.h.b16 %v493
        %v1205 = vunpack.c.l.b16 %v494
        %v1206 = vunpack.c.h.b16 %v494
        %v1207 = vunpack.c.l.b16 %v495
        %v1208 = vunpack.c.h.b16 %v495
        %v1209 = vunpack.c.l.b16 %v496
        %v1210 = vunpack.c.h.b16 %v496
        %v1211 = vunpack.c.l.b16 %v497
        %v1212 = vunpack.c.h.b16 %v497
        %v1213 = vunpack.c.l.b16 %v498
        %v1214 = vunpack.c.h.b16 %v498
        %v1215 = vunpack.c.l.b16 %v499
        %v1216 = vunpack.c.h.b16 %v499
        %v1217 = vunpack.c.l.b16 %v500
        %v1218 = vunpack.c.h.b16 %v500
        %v1219 = vunpack.c.l.b16 %v501
        %v1220 = vunpack.c.h.b16 %v501
        %v1221 = vunpack.c.l.b16 %v502
        %v1222 = vunpack.c.h.b16 %v502
        %v1223 = vunpack.c.l.b16 %v503
        %v1224 = vunpack.c.h.b16 %v503
        %v1225 = vunpack.c.l.b16 %v504
        %v1226 = vunpack.c.h.b16 %v504
        %v1227 = vunpack.c.l.b16 %v505
        %v1228 = vunpack.c.h.b16 %v505
        %v1229 = vunpack.c.l.b16 %v506
        %v1230 = vunpack.c.h.b16 %v506
        %v1231 = vunpack.c.l.b16 %v507
        %v1232 = vunpack.c.h.b16 %v507
        %v1233 = vunpack.c.l.b16 %v508
        %v1234 = vunpack.c.h.b16 %v508
        %v1235 = vunpack.c.l.b16 %v509
        %v1236 = vunpack.c.h.b16 %v509
        %v1237 = vunpack.c.l.b16 %v510
        %v1238 = vunpack.c.h.b16 %v510
        %v1239 = vunpack.c.l.b16 %v511
        %v1240 = vunpack.c.h.b16 %v511
        %v1241 = vunpack.c.l.b16 %v512
        %v1242 = vunpack.c.h.b16 %v512
        %v1243 = vunpack.c.l.b16 %v513
        %v1244 = vunpack.c.h.b16 %v513
        %v1245 = vunpack.c.l.b16 %v514
        %v1246 = vunpack.c.h.b16 %v514
        %v1247 = vunpack.c.l.b16 %v515
        %v1248 = vunpack.c.h.b16 %v515
        %v1249 = vunpack.c.l.b16 %v516
        %v1250 = vunpack.c.h.b16 %v516
        %v1251 = vunpack.c.l.b16 %v517
        %v1252 = vunpack.c.h.b16 %v517
        %v1253 = vunpack.c.l.b16 %v518
        %v1254 = vunpack.c.h.b16 %v518
        %v1255 = vunpack.c.l.b16 %v519
        %v1256 = vunpack.c.h.b16 %v519
        %v1257 = vunpack.c.l.b16 %v520
        %v1258 = vunpack.c.h.b16 %v520
        %v1259 = vunpack.c.l.b16 %v521
        %v1260 = vunpack.c.h.b16 %v521
        %v1261 = vunpack.c.l.b16 %v522
        %v1262 = vunpack.c.h.b16 %v522
        %v1263 = vunpack.c.l.b16 %v523
        %v1264 = vunpack.c.h.b16 %v523
        %v1265 = vunpack.c.l.b16 %v524
        %v1266 = vunpack.c.h.b16 %v524
        %v1267 = vunpack.c.l.b16 %v525
        %v1268 = vunpack.c.h.b16 %v525
        %v1269 = vunpack.c.l.b16 %v526
        %v1270 = vunpack.c.h.b16 %v526
        %v1271 = vunpack.c.l.b16 %v527
        %v1272 = vunpack.c.h.b16 %v527
        %v1273 = vunpack.c.l.b16 %v528
        %v1274 = vunpack.c.h.b16 %v528
        %v1275 = vunpack.c.l.b16 %v529
        %v1276 = vunpack.c.h.b16 %v529
        %v1277 = vunpack.c.l.b16 %v530
        %v1278 = vunpack.c.h.b16 %v530
        %v1279 = vunpack.c.l.b16 %v531
        %v1280 = vunpack.c.h.b16 %v531
        %v1281 = vunpack.c.l.b16 %v532
        %v1282 = vunpack.c.h.b16 %v532
        %v1283 = vunpack.c.l.b16 %v533
        %v1284 = vunpack.c.h.b16 %v533
        %v1285 = vunpack.c.l.b16 %v534
        %v1286 = vunpack.c.h.b16 %v534
        %v1287 = vunpack.c.l.b16 %v535
        %v1288 = vunpack.c.h.b16 %v535
        %v1289 = vunpack.c.l.b16 %v536
        %v1290 = vunpack.c.h.b16 %v536
        %v1291 = vunpack.c.l.b16 %v537
        %v1292 = vunpack.c.h.b16 %v537
        %v1293 = vunpack.c.l.b16 %v538
        %v1294 = vunpack.c.h.b16 %v538
        %v1295 = vunpack.c.l.b16 %v539
        %v1296 = vunpack.c.h.b16 %v539
        %v1297 = vunpack.c.l.b16 %v540
        %v1298 = vunpack.c.h.b16 %v540
        %v1299 = vunpack.c.l.b16 %v541
        %v1300 = vunpack.c.h.b16 %v541
        %v1301 = vunpack.c.l.b16 %v542
        %v1302 = vunpack.c.h.b16 %v542
        %v1303 = vunpack.c.l.b16 %v543
        %v1304 = vunpack.c.h.b16 %v543
        %v1305 = vunpack.c.l.b16 %v544
        %v1306 = vunpack.c.h.b16 %v544
        %v1307 = vunpack.c.l.b16 %v545
        %v1308 = vunpack.c.h.b16 %v545
        %v1309 = vunpack.c.l.b16 %v546
        %v1310 = vunpack.c.h.b16 %v546
        %v1311 = vunpack.c.l.b16 %v547
        %v1312 = vunpack.c.h.b16 %v547
        %v1313 = vunpack.c.l.b16 %v548
        %v1314 = vunpack.c.h.b16 %v548
        %v1315 = vunpack.c.l.b16 %v549
        %v1316 = vunpack.c.h.b16 %v549
        %v1317 = vunpack.c.l.b16 %v550
        %v1318 = vunpack.c.h.b16 %v550
        %v1319 = vunpack.c.l.b16 %v551
        %v1320 = vunpack.c.h.b16 %v551
        %v1321 = vunpack.c.l.b16 %v552
        %v1322 = vunpack.c.h.b16 %v552
        %v1323 = vunpack.c.l.b16 %v553
        %v1324 = vunpack.c.h.b16 %v553
        %v1325 = vunpack.c.l.b16 %v554
        %v1326 = vunpack.c.h.b16 %v554
        %v1327 = vunpack.c.l.b16 %v555
        %v1328 = vunpack.c.h.b16 %v555
        %v1329 = vunpack.c.l.b16 %v556
        %v1330 = vunpack.c.h.b16 %v556
        %v1331 = vunpack.c.l.b16 %v557
        %v1332 = vunpack.c.h.b16 %v557
        %v1333 = vunpack.c.l.b16 %v558
        %v1334 = vunpack.c.h.b16 %v558
        %v1335 = vunpack.c.l.b16 %v559
        %v1336 = vunpack.c.h.b16 %v559
        %v1337 = vunpack.c.l.b16 %v560
        %v1338 = vunpack.c.h.b16 %v560
        %v1339 = vunpack.c.l.b16 %v561
        %v1340 = vunpack.c.h.b16 %v561
        %v1341 = vunpack.c.l.b16 %v562
        %v1342 = vunpack.c.h.b16 %v562
        %v1343 = vunpack.c.l.b16 %v563
        %v1344 = vunpack.c.h.b16 %v563
        %v1345 = vunpack.c.l.b16 %v564
        %v1346 = vunpack.c.h.b16 %v564
        %v1347 = vunpack.c.l.b16 %v565
        %v1348 = vunpack.c.h.b16 %v565
        %v1349 = vunpack.c.l.b16 %v566
        %v1350 = vunpack.c.h.b16 %v566
        %v1351 = vunpack.c.l.b16 %v567
        %v1352 = vunpack.c.h.b16 %v567
        %v1353 = vunpack.c.l.b16 %v568
        %v1354 = vunpack.c.h.b16 %v568
        %v1355 = vunpack.c.l.b16 %v569
        %v1356 = vunpack.c.h.b16 %v569
        %v1357 = vunpack.c.l.b16 %v570
        %v1358 = vunpack.c.h.b16 %v570
        %v1359 = vunpack.c.l.b16 %v571
        %v1360 = vunpack.c.h.b16 %v571
        %v1361 = vunpack.c.l.b16 %v572
        %v1362 = vunpack.c.h.b16 %v572
        %v1363 = vunpack.c.l.b16 %v573
        %v1364 = vunpack.c.h.b16 %v573
        %v1365 = vunpack.c.l.b16 %v574
        %v1366 = vunpack.c.h.b16 %v574
        %v1367 = vunpack.c.l.b16 %v575
        %v1368 = vunpack.c.h.b16 %v575
        %v1369 = vunpack.c.l.b16 %v576
        %v1370 = vunpack.c.h.b16 %v576
        %v1371 = vunpack.c.l.b16 %v577
        %v1372 = vunpack.c.h.b16 %v577
        %v1373 = vunpack.c.l.b16 %v578
        %v1374 = vunpack.c.h.b16 %v578
        %v1375 = vunpack.c.l.b16 %v579
        %v1376 = vunpack.c.h.b16 %v579
        %v1377 = vpack.c.b16 %v873, %v865
        %v1378 = vpack.c.b16 %v874, %v866
        %v1379 = vpack.c.b16 %v875, %v867
        %v1380 = vpack.c.b16 %v876, %v868
        %v1381 = vpack.c.b16 %v877, %v869
        %v1382 = vpack.c.b16 %v878, %v870
        %v1383 = vpack.c.b16 %v879, %v871
        %v1384 = vpack.c.b16 %v880, %v872
        %v1385 = vpack.c.b16 %v889, %v881
        %v1386 = vpack.c.b16 %v890, %v882
        %v1387 = vpack.c.b16 %v891, %v883
        %v1388 = vpack.c.b16 %v892, %v884
        %v1389 = vpack.c.b16 %v893, %v885
        %v1390 = vpack.c.b16 %v894, %v886
        %v1391 = vpack.c.b16 %v895, %v887
        %v1392 = vpack.c.b16 %v896, %v888
        %v1393 = vpack.c.b16 %v905, %v897
        %v1394 = vpack.c.b16 %v906, %v898
        %v1395 = vpack.c.b16 %v907, %v899
        %v1396 = vpack.c.b16 %v908, %v900
        %v1397 = vpack.c.b16 %v909, %v901
        %v1398 = vpack.c.b16 %v910, %v902
        %v1399 = vpack.c.b16 %v911, %v903
        %v1400 = vpack.c.b16 %v912, %v904
        %v1401 = vpack.c.b16 %v921, %v913
        %v1402 = vpack.c.b16 %v922, %v914
        %v1403 = vpack.c.b16 %v923, %v915
        %v1404 = vpack.c.b16 %v924, %v916
        %v1405 = vpack.c.b16 %v925, %v917
        %v1406 = vpack.c.b16 %v926, %v918
        %v1407 = vpack.c.b16 %v927, %v919
        %v1408 = vpack.c.b16 %v928, %v920
        %v1409 = vpack.c.b16 %v937, %v929
        %v1410 = vpack.c.b16 %v938, %v930
        %v1411 = vpack.c.b16 %v939, %v931
        %v1412 = vpack.c.b16 %v940, %v932
        %v1413 = vpack.c.b16 %v941, %v933
        %v1414 = vpack.c.b16 %v942, %v934
        %v1415 = vpack.c.b16 %v943, %v935
        %v1416 = vpack.c.b16 %v944, %v936
        %v1417 = vpack.c.b16 %v953, %v945
        %v1418 = vpack.c.b16 %v954, %v946
        %v1419 = vpack.c.b16 %v955, %v947
        %v1420 = vpack.c.b16 %v956, %v948
        %v1421 = vpack.c.b16 %v957, %v949
        %v1422 = vpack.c.b16 %v958, %v950
        %v1423 = vpack.c.b16 %v959, %v951
        %v1424 = vpack.c.b16 %v960, %v952
        %v1425 = vpack.c.b16 %v969, %v961
        %v1426 = vpack.c.b16 %v970, %v962
        %v1427 = vpack.c.b16 %v971, %v963
        %v1428 = vpack.c.b16 %v972, %v964
        %v1429 = vpack.c.b16 %v973, %v965
        %v1430 = vpack.c.b16 %v974, %v966
        %v1431 = vpack.c.b16 %v975, %v967
        %v1432 = vpack.c.b16 %v976, %v968
        %v1433 = vpack.c.b16 %v985, %v977
        %v1434 = vpack.c.b16 %v986, %v978
        %v1435 = vpack.c.b16 %v987, %v979
        %v1436 = vpack.c.b16 %v988, %v980
        %v1437 = vpack.c.b16 %v989, %v981
        %v1438 = vpack.c.b16 %v990, %v982
        %v1439 = vpack.c.b16 %v991, %v983
        %v1440 = vpack.c.b16 %v992, %v984
        %v1441 = vpack.c.b16 %v1001, %v993
        %v1442 = vpack.c.b16 %v1002, %v994
        %v1443 = vpack.c.b16 %v1003, %v995
        %v1444 = vpack.c.b16 %v1004, %v996
        %v1445 = vpack.c.b16 %v1005, %v997
        %v1446 = vpack.c.b16 %v1006, %v998
        %v1447 = vpack.c.b16 %v1007, %v999
        %v1448 = vpack.c.b16 %v1008, %v1000
        %v1449 = vpack.c.b16 %v1017, %v1009
        %v1450 = vpack.c.b16 %v1018, %v1010
        %v1451 = vpack.c.b16 %v1019, %v1011
        %v1452 = vpack.c.b16 %v1020, %v1012
        %v1453 = vpack.c.b16 %v1021, %v1013
        %v1454 = vpack.c.b16 %v1022, %v1014
        %v1455 = vpack.c.b16 %v1023, %v1015
        %v1456 = vpack.c.b16 %v1024, %v1016
        %v1457 = vpack.c.b16 %v1033, %v1025
        %v1458 = vpack.c.b16 %v1034, %v1026
        %v1459 = vpack.c.b16 %v1035, %v1027
        %v1460 = vpack.c.b16 %v1036, %v1028
        %v1461 = vpack.c.b16 %v1037, %v1029
        %v1462 = vpack.c.b16 %v1038, %v1030
        %v1463 = vpack.c.b16 %v1039, %v1031
        %v1464 = vpack.c.b16 %v1040, %v1032
        %v1465 = vpack.c.b16 %v1049, %v1041
        %v1466 = vpack.c.b16 %v1050, %v1042
        %v1467 = vpack.c.b16 %v1051, %v1043
        %v1468 = vpack.c.b16 %v1052, %v1044
        %v1469 = vpack.c.b16 %v1053, %v1045
        %v1470 = vpack.c.b16 %v1054, %v1046
        %v1471 = vpack.c.b16 %v1055, %v1047
        %v1472 = vpack.c.b16 %v1056, %v1048
        %v1473 = vpack.c.b16 %v1065, %v1057
        %v1474 = vpack.c.b16 %v1066, %v1058
        %v1475 = vpack.c.b16 %v1067, %v1059
        %v1476 = vpack.c.b16 %v1068, %v1060
        %v1477 = vpack.c.b16 %v1069, %v1061
        %v1478 = vpack.c.b16 %v1070, %v1062
        %v1479 = vpack.c.b16 %v1071, %v1063
        %v1480 = vpack.c.b16 %v1072, %v1064
        %v1481 = vpack.c.b16 %v1081, %v1073
        %v1482 = vpack.c.b16 %v1082, %v1074
        %v1483 = vpack.c.b16 %v1083, %v1075
        %v1484 = vpack.c.b16 %v1084, %v1076
        %v1485 = vpack.c.b16 %v1085, %v1077
        %v1486 = vpack.c.b16 %v1086, %v1078
        %v1487 = vpack.c.b16 %v1087, %v1079
        %v1488 = vpack.c.b16 %v1088, %v1080
        %v1489 = vpack.c.b16 %v1097, %v1089
        %v1490 = vpack.c.b16 %v1098, %v1090
        %v1491 = vpack.c.b16 %v1099, %v1091
        %v1492 = vpack.c.b16 %v1100, %v1092
        %v1493 = vpack.c.b16 %v1101, %v1093
        %v1494 = vpack.c.b16 %v1102, %v1094
        %v1495 = vpack.c.b16 %v1103, %v1095
        %v1496 = vpack.c.b16 %v1104, %v1096
        %v1497 = vpack.c.b16 %v1113, %v1105
        %v1498 = vpack.c.b16 %v1114, %v1106
        %v1499 = vpack.c.b16 %v1115, %v1107
        %v1500 = vpack.c.b16 %v1116, %v1108
        %v1501 = vpack.c.b16 %v1117, %v1109
        %v1502 = vpack.c.b16 %v1118, %v1110
        %v1503 = vpack.c.b16 %v1119, %v1111
        %v1504 = vpack.c.b16 %v1120, %v1112
        %v1505 = vpack.c.b16 %v1129, %v1121
        %v1506 = vpack.c.b16 %v1130, %v1122
        %v1507 = vpack.c.b16 %v1131, %v1123
        %v1508 = vpack.c.b16 %v1132, %v1124
        %v1509 = vpack.c.b16 %v1133, %v1125
        %v1510 = vpack.c.b16 %v1134, %v1126
        %v1511 = vpack.c.b16 %v1135, %v1127
        %v1512 = vpack.c.b16 %v1136, %v1128
        %v1513 = vpack.c.b16 %v1145, %v1137
        %v1514 = vpack.c.b16 %v1146, %v1138
        %v1515 = vpack.c.b16 %v1147, %v1139
        %v1516 = vpack.c.b16 %v1148, %v1140
        %v1517 = vpack.c.b16 %v1149, %v1141
        %v1518 = vpack.c.b16 %v1150, %v1142
        %v1519 = vpack.c.b16 %v1151, %v1143
        %v1520 = vpack.c.b16 %v1152, %v1144
        %v1521 = vpack.c.b16 %v1161, %v1153
        %v1522 = vpack.c.b16 %v1162, %v1154
        %v1523 = vpack.c.b16 %v1163, %v1155
        %v1524 = vpack.c.b16 %v1164, %v1156
        %v1525 = vpack.c.b16 %v1165, %v1157
        %v1526 = vpack.c.b16 %v1166, %v1158
        %v1527 = vpack.c.b16 %v1167, %v1159
        %v1528 = vpack.c.b16 %v1168, %v1160
        %v1529 = vpack.c.b16 %v1177, %v1169
        %v1530 = vpack.c.b16 %v1178, %v1170
        %v1531 = vpack.c.b16 %v1179, %v1171
        %v1532 = vpack.c.b16 %v1180, %v1172
        %v1533 = vpack.c.b16 %v1181, %v1173
        %v1534 = vpack.c.b16 %v1182, %v1174
        %v1535 = vpack.c.b16 %v1183, %v1175
        %v1536 = vpack.c.b16 %v1184, %v1176
        %v1537 = vpack.c.b16 %v1193, %v1185
        %v1538 = vpack.c.b16 %v1194, %v1186
        %v1539 = vpack.c.b16 %v1195, %v1187
        %v1540 = vpack.c.b16 %v1196, %v1188
        %v1541 = vpack.c.b16 %v1197, %v1189
        %v1542 = vpack.c.b16 %v1198, %v1190
        %v1543 = vpack.c.b16 %v1199, %v1191
        %v1544 = vpack.c.b16 %v1200, %v1192
        %v1545 = vpack.c.b16 %v1209, %v1201
        %v1546 = vpack.c.b16 %v1210, %v1202
        %v1547 = vpack.c.b16 %v1211, %v1203
        %v1548 = vpack.c.b16 %v1212, %v1204
        %v1549 = vpack.c.b16 %v1213, %v1205
        %v1550 = vpack.c.b16 %v1214, %v1206
        %v1551 = vpack.c.b16 %v1215, %v1207
        %v1552 = vpack.c.b16 %v1216, %v1208
        %v1553 = vpack.c.b16 %v1225, %v1217
        %v1554 = vpack.c.b16 %v1226, %v1218
        %v1555 = vpack.c.b16 %v1227, %v1219
        %v1556 = vpack.c.b16 %v1228, %v1220
        %v1557 = vpack.c.b16 %v1229, %v1221
        %v1558 = vpack.c.b16 %v1230, %v1222
        %v1559 = vpack.c.b16 %v1231, %v1223
        %v1560 = vpack.c.b16 %v1232, %v1224
        %v1561 = vpack.c.b16 %v1241, %v1233
        %v1562 = vpack.c.b16 %v1242, %v1234
        %v1563 = vpack.c.b16 %v1243, %v1235
        %v1564 = vpack.c.b16 %v1244, %v1236
        %v1565 = vpack.c.b16 %v1245, %v1237
        %v1566 = vpack.c.b16 %v1246, %v1238
        %v1567 = vpack.c.b16 %v1247, %v1239
        %v1568 = vpack.c.b16 %v1248, %v1240
        %v1569 = vpack.c.b16 %v1257, %v1249
        %v1570 = vpack.c.b16 %v1258, %v1250
        %v1571 = vpack.c.b16 %v1259, %v1251
        %v1572 = vpack.c.b16 %v1260, %v1252
        %v1573 = vpack.c.b16 %v1261, %v1253
        %v1574 = vpack.c.b16 %v1262, %v1254
        %v1575 = vpack.c.b16 %v1263, %v1255
        %v1576 = vpack.c.b16 %v1264, %v1256
        %v1577 = vpack.c.b16 %v1273, %v1265
        %v1578 = vpack.c.b16 %v1274, %v1266
        %v1579 = vpack.c.b16 %v1275, %v1267
        %v1580 = vpack.c.b16 %v1276, %v1268
        %v1581 = vpack.c.b16 %v1277, %v1269
        %v1582 = vpack.c.b16 %v1278, %v1270
        %v1583 = vpack.c.b16 %v1279, %v1271
        %v1584 = vpack.c.b16 %v1280, %v1272
        %v1585 = vpack.c.b16 %v1289, %v1281
        %v1586 = vpack.c.b16 %v1290, %v1282
        %v1587 = vpack.c.b16 %v1291, %v1283
        %v1588 = vpack.c.b16 %v1292, %v1284
        %v1589 = vpack.c.b16 %v1293, %v1285
        %v1590 = vpack.c.b16 %v1294, %v1286
        %v1591 = vpack.c.b16 %v1295, %v1287
        %v1592 = vpack.c.b16 %v1296, %v1288
        %v1593 = vpack.c.b16 %v1305, %v1297
        %v1594 = vpack.c.b16 %v1306, %v1298
        %v1595 = vpack.c.b16 %v1307, %v1299
        %v1596 = vpack.c.b16 %v1308, %v1300
        %v1597 = vpack.c.b16 %v1309, %v1301
        %v1598 = vpack.c.b16 %v1310, %v1302
        %v1599 = vpack.c.b16 %v1311, %v1303
        %v1600 = vpack.c.b16 %v1312, %v1304
        %v1601 = vpack.c.b16 %v1321, %v1313
        %v1602 = vpack.c.b16 %v1322, %v1314
        %v1603 = vpack.c.b16 %v1323, %v1315
        %v1604 = vpack.c.b16 %v1324, %v1316
        %v1605 = vpack.c.b16 %v1325, %v1317
        %v1606 = vpack.c.b16 %v1326, %v1318
        %v1607 = vpack.c.b16 %v1327, %v1319
        %v1608 = vpack.c.b16 %v1328, %v1320
        %v1609 = vpack.c.b16 %v1337, %v1329
        %v1610 = vpack.c.b16 %v1338, %v1330
        %v1611 = vpack.c.b16 %v1339, %v1331
        %v1612 = vpack.c.b16 %v1340, %v1332
        %v1613 = vpack.c.b16 %v1341, %v1333
        %v1614 = vpack.c.b16 %v1342, %v1334
        %v1615 = vpack.c.b16 %v1343, %v1335
        %v1616 = vpack.c.b16 %v1344, %v1336
        %v1617 = vpack.c.b16 %v1353, %v1345
        %v1618 = vpack.c.b16 %v1354, %v1346
        %v1619 = vpack.c.b16 %v1355, %v1347
        %v1620 = vpack.c.b16 %v1356, %v1348
        %v1621 = vpack.c.b16 %v1357, %v1349
        %v1622 = vpack.c.b16 %v1358, %v1350
        %v1623 = vpack.c.b16 %v1359, %v1351
        %v1624 = vpack.c.b16 %v1360, %v1352
        %v1625 = vpack.c.b16 %v1369, %v1361
        %v1626 = vpack.c.b16 %v1370, %v1362
        %v1627 = vpack.c.b16 %v1371, %v1363
        %v1628 = vpack.c.b16 %v1372, %v1364
        %v1629 = vpack.c.b16 %v1373, %v1365
        %v1630 = vpack.c.b16 %v1374, %v1366
        %v1631 = vpack.c.b16 %v1375, %v1367
        %v1632 = vpack.c.b16 %v1376, %v1368
        %1889 = vmatprep.subr.bf16.mxu0 %v1378
        %1890 = vmatpush1.bf16.msra.mxu0 %v1377
        %1891 = vmatprep.subr.bf16.mxu0 %v1386
        %1892 = vmatpush1.bf16.msra.mxu0 %v1385
        %1893 = vmatprep.subr.bf16.mxu0 %v1394
        %1894 = vmatpush1.bf16.msra.mxu0 %v1393
        %1895 = vmatprep.subr.bf16.mxu0 %v1402
        %1896 = vmatpush1.bf16.msra.mxu0 %v1401
        %1897 = vmatprep.subr.bf16.mxu0 %v1410
        %1898 = vmatpush1.bf16.msra.mxu0 %v1409
        %1899 = vmatprep.subr.bf16.mxu0 %v1418
        %1900 = vmatpush1.bf16.msra.mxu0 %v1417
        %1901 = vmatprep.subr.bf16.mxu0 %v1426
        %1902 = vmatpush1.bf16.msra.mxu0 %v1425
        %1903 = vmatprep.subr.bf16.mxu0 %v1434
        %1904 = vmatpush1.bf16.msra.mxu0 %v1433
        %1905 = vmatprep.subr.bf16.mxu0 %v1442
        %1906 = vmatpush1.bf16.msra.mxu0 %v1441
        %1907 = vmatprep.subr.bf16.mxu0 %v1450
        %1908 = vmatpush1.bf16.msra.mxu0 %v1449
        %1909 = vmatprep.subr.bf16.mxu0 %v1458
        %1910 = vmatpush1.bf16.msra.mxu0 %v1457
        %1911 = vmatprep.subr.bf16.mxu0 %v1466
        %1912 = vmatpush1.bf16.msra.mxu0 %v1465
        %1913 = vmatprep.subr.bf16.mxu0 %v1474
        %1914 = vmatpush1.bf16.msra.mxu0 %v1473
        %1915 = vmatprep.subr.bf16.mxu0 %v1482
        %1916 = vmatpush1.bf16.msra.mxu0 %v1481
        %1917 = vmatprep.subr.bf16.mxu0 %v1490
        %1918 = vmatpush1.bf16.msra.mxu0 %v1489
        %1919 = vmatprep.subr.bf16.mxu0 %v1498
        %1920 = vmatpush1.bf16.msra.mxu0 %v1497
        %1921 = vmatprep.mubr.bf16.mxu0 %v602
        %1922 = vmatmul.mubr.bf16.gmra.mrb[0].mxu0 %v595
        %v1923 = vpop.f32.mrb[0].mxu0
        %v1924 = vadd.f32 0.0, %v1923
        %v1925 = vpop.f32.mrb[0].mxu0
        %v1926 = vadd.f32 0.0, %v1925
        %v1927 = vpop.f32.mrb[0].mxu0
        %v1928 = vpop.f32.mrb[0].mxu0
        %1929 = vdwg.mxu0
        %1930 = vmatprep.subr.bf16.mxu0 %v1506
        %1931 = vmatpush1.bf16.msra.mxu0 %v1505
        %1932 = vmatprep.subr.bf16.mxu0 %v1514
        %1933 = vmatpush1.bf16.msra.mxu0 %v1513
        %1934 = vmatprep.subr.bf16.mxu0 %v1522
        %1935 = vmatpush1.bf16.msra.mxu0 %v1521
        %1936 = vmatprep.subr.bf16.mxu0 %v1530
        %1937 = vmatpush1.bf16.msra.mxu0 %v1529
        %1938 = vmatprep.subr.bf16.mxu0 %v1538
        %1939 = vmatpush1.bf16.msra.mxu0 %v1537
        %1940 = vmatprep.subr.bf16.mxu0 %v1546
        %1941 = vmatpush1.bf16.msra.mxu0 %v1545
        %1942 = vmatprep.subr.bf16.mxu0 %v1554
        %1943 = vmatpush1.bf16.msra.mxu0 %v1553
        %1944 = vmatprep.subr.bf16.mxu0 %v1562
        %1945 = vmatpush1.bf16.msra.mxu0 %v1561
        %1946 = vmatprep.subr.bf16.mxu0 %v1570
        %1947 = vmatpush1.bf16.msra.mxu0 %v1569
        %1948 = vmatprep.subr.bf16.mxu0 %v1578
        %1949 = vmatpush1.bf16.msra.mxu0 %v1577
        %1950 = vmatprep.subr.bf16.mxu0 %v1586
        %1951 = vmatpush1.bf16.msra.mxu0 %v1585
        %1952 = vmatprep.subr.bf16.mxu0 %v1594
        %1953 = vmatpush1.bf16.msra.mxu0 %v1593
        %1954 = vmatprep.subr.bf16.mxu0 %v1602
        %1955 = vmatpush1.bf16.msra.mxu0 %v1601
        %1956 = vmatprep.subr.bf16.mxu0 %v1610
        %1957 = vmatpush1.bf16.msra.mxu0 %v1609
        %1958 = vmatprep.subr.bf16.mxu0 %v1618
        %1959 = vmatpush1.bf16.msra.mxu0 %v1617
        %1960 = vmatprep.subr.bf16.mxu0 %v1626
        %1961 = vmatpush1.bf16.msra.mxu0 %v1625
        %1962 = vmatprep.mubr.bf16.mxu0 %v604
        %1963 = vmatmul.mubr.bf16.gmra.mrb[0].mxu0 %v603
        %v1964 = vpop.f32.mrb[0].mxu0
        %v1965 = vadd.f32 %v1924, %v1964
        %v1966 = vpop.f32.mrb[0].mxu0
        %v1967 = vadd.f32 %v1926, %v1966
        %v1968 = vpop.f32.mrb[0].mxu0
        %v1969 = vpop.f32.mrb[0].mxu0
        %1970 = vdwg.mxu0
        %1971 = vmatprep.subr.bf16.mxu0 %v1380
        %1972 = vmatpush1.bf16.msra.mxu0 %v1379
        %1973 = vmatprep.subr.bf16.mxu0 %v1388
        %1974 = vmatpush1.bf16.msra.mxu0 %v1387
        %1975 = vmatprep.subr.bf16.mxu0 %v1396
        %1976 = vmatpush1.bf16.msra.mxu0 %v1395
        %1977 = vmatprep.subr.bf16.mxu0 %v1404
        %1978 = vmatpush1.bf16.msra.mxu0 %v1403
        %1979 = vmatprep.subr.bf16.mxu0 %v1412
        %1980 = vmatpush1.bf16.msra.mxu0 %v1411
        %1981 = vmatprep.subr.bf16.mxu0 %v1420
        %1982 = vmatpush1.bf16.msra.mxu0 %v1419
        %1983 = vmatprep.subr.bf16.mxu0 %v1428
        %1984 = vmatpush1.bf16.msra.mxu0 %v1427
        %1985 = vmatprep.subr.bf16.mxu0 %v1436
        %1986 = vmatpush1.bf16.msra.mxu0 %v1435
        %1987 = vmatprep.subr.bf16.mxu0 %v1444
        %1988 = vmatpush1.bf16.msra.mxu0 %v1443
        %1989 = vmatprep.subr.bf16.mxu0 %v1452
        %1990 = vmatpush1.bf16.msra.mxu0 %v1451
        %1991 = vmatprep.subr.bf16.mxu0 %v1460
        %1992 = vmatpush1.bf16.msra.mxu0 %v1459
        %1993 = vmatprep.subr.bf16.mxu0 %v1468
        %1994 = vmatpush1.bf16.msra.mxu0 %v1467
        %1995 = vmatprep.subr.bf16.mxu0 %v1476
        %1996 = vmatpush1.bf16.msra.mxu0 %v1475
        %1997 = vmatprep.subr.bf16.mxu0 %v1484
        %1998 = vmatpush1.bf16.msra.mxu0 %v1483
        %1999 = vmatprep.subr.bf16.mxu0 %v1492
        %2000 = vmatpush1.bf16.msra.mxu0 %v1491
        %2001 = vmatprep.subr.bf16.mxu0 %v1500
        %2002 = vmatpush1.bf16.msra.mxu0 %v1499
        %2003 = vmatprep.mubr.bf16.mxu0 %v602
        %2004 = vmatmul.mubr.bf16.gmra.mrb[0].mxu0 %v595
        %v2005 = vpop.f32.mrb[0].mxu0
        %v2006 = vadd.f32 0.0, %v2005
        %v2007 = vpop.f32.mrb[0].mxu0
        %v2008 = vadd.f32 0.0, %v2007
        %v2009 = vpop.f32.mrb[0].mxu0
        %v2010 = vpop.f32.mrb[0].mxu0
        %2011 = vdwg.mxu0
        %2012 = vmatprep.subr.bf16.mxu0 %v1508
        %2013 = vmatpush1.bf16.msra.mxu0 %v1507
        %2014 = vmatprep.subr.bf16.mxu0 %v1516
        %2015 = vmatpush1.bf16.msra.mxu0 %v1515
        %2016 = vmatprep.subr.bf16.mxu0 %v1524
        %2017 = vmatpush1.bf16.msra.mxu0 %v1523
        %2018 = vmatprep.subr.bf16.mxu0 %v1532
        %2019 = vmatpush1.bf16.msra.mxu0 %v1531
        %2020 = vmatprep.subr.bf16.mxu0 %v1540
        %2021 = vmatpush1.bf16.msra.mxu0 %v1539
        %2022 = vmatprep.subr.bf16.mxu0 %v1548
        %2023 = vmatpush1.bf16.msra.mxu0 %v1547
        %2024 = vmatprep.subr.bf16.mxu0 %v1556
        %2025 = vmatpush1.bf16.msra.mxu0 %v1555
        %2026 = vmatprep.subr.bf16.mxu0 %v1564
        %2027 = vmatpush1.bf16.msra.mxu0 %v1563
        %2028 = vmatprep.subr.bf16.mxu0 %v1572
        %2029 = vmatpush1.bf16.msra.mxu0 %v1571
        %2030 = vmatprep.subr.bf16.mxu0 %v1580
        %2031 = vmatpush1.bf16.msra.mxu0 %v1579
        %2032 = vmatprep.subr.bf16.mxu0 %v1588
        %2033 = vmatpush1.bf16.msra.mxu0 %v1587
        %2034 = vmatprep.subr.bf16.mxu0 %v1596
        %2035 = vmatpush1.bf16.msra.mxu0 %v1595
        %2036 = vmatprep.subr.bf16.mxu0 %v1604
        %2037 = vmatpush1.bf16.msra.mxu0 %v1603
        %2038 = vmatprep.subr.bf16.mxu0 %v1612
        %2039 = vmatpush1.bf16.msra.mxu0 %v1611
        %2040 = vmatprep.subr.bf16.mxu0 %v1620
        %2041 = vmatpush1.bf16.msra.mxu0 %v1619
        %2042 = vmatprep.subr.bf16.mxu0 %v1628
        %2043 = vmatpush1.bf16.msra.mxu0 %v1627
        %2044 = vmatprep.mubr.bf16.mxu0 %v604
        %2045 = vmatmul.mubr.bf16.gmra.mrb[0].mxu0 %v603
        %v2046 = vpop.f32.mrb[0].mxu0
        %v2047 = vadd.f32 %v2006, %v2046
        %v2048 = vpop.f32.mrb[0].mxu0
        %v2049 = vadd.f32 %v2008, %v2048
        %v2050 = vpop.f32.mrb[0].mxu0
        %v2051 = vpop.f32.mrb[0].mxu0
        %2052 = vdwg.mxu0
        %2053 = vmatprep.subr.bf16.mxu0 %v1382
        %2054 = vmatpush1.bf16.msra.mxu0 %v1381
        %2055 = vmatprep.subr.bf16.mxu0 %v1390
        %2056 = vmatpush1.bf16.msra.mxu0 %v1389
        %2057 = vmatprep.subr.bf16.mxu0 %v1398
        %2058 = vmatpush1.bf16.msra.mxu0 %v1397
        %2059 = vmatprep.subr.bf16.mxu0 %v1406
        %2060 = vmatpush1.bf16.msra.mxu0 %v1405
        %2061 = vmatprep.subr.bf16.mxu0 %v1414
        %2062 = vmatpush1.bf16.msra.mxu0 %v1413
        %2063 = vmatprep.subr.bf16.mxu0 %v1422
        %2064 = vmatpush1.bf16.msra.mxu0 %v1421
        %2065 = vmatprep.subr.bf16.mxu0 %v1430
        %2066 = vmatpush1.bf16.msra.mxu0 %v1429
        %2067 = vmatprep.subr.bf16.mxu0 %v1438
        %2068 = vmatpush1.bf16.msra.mxu0 %v1437
        %2069 = vmatprep.subr.bf16.mxu0 %v1446
        %2070 = vmatpush1.bf16.msra.mxu0 %v1445
        %2071 = vmatprep.subr.bf16.mxu0 %v1454
        %2072 = vmatpush1.bf16.msra.mxu0 %v1453
        %2073 = vmatprep.subr.bf16.mxu0 %v1462
        %2074 = vmatpush1.bf16.msra.mxu0 %v1461
        %2075 = vmatprep.subr.bf16.mxu0 %v1470
        %2076 = vmatpush1.bf16.msra.mxu0 %v1469
        %2077 = vmatprep.subr.bf16.mxu0 %v1478
        %2078 = vmatpush1.bf16.msra.mxu0 %v1477
        %2079 = vmatprep.subr.bf16.mxu0 %v1486
        %2080 = vmatpush1.bf16.msra.mxu0 %v1485
        %2081 = vmatprep.subr.bf16.mxu0 %v1494
        %2082 = vmatpush1.bf16.msra.mxu0 %v1493
        %2083 = vmatprep.subr.bf16.mxu0 %v1502
        %2084 = vmatpush1.bf16.msra.mxu0 %v1501
        %2085 = vmatprep.mubr.bf16.mxu0 %v602
        %2086 = vmatmul.mubr.bf16.gmra.mrb[0].mxu0 %v595
        %v2087 = vpop.f32.mrb[0].mxu0
        %v2088 = vadd.f32 0.0, %v2087
        %v2089 = vpop.f32.mrb[0].mxu0
        %v2090 = vadd.f32 0.0, %v2089
        %v2091 = vpop.f32.mrb[0].mxu0
        %v2092 = vpop.f32.mrb[0].mxu0
        %2093 = vdwg.mxu0
        %2094 = vmatprep.subr.bf16.mxu0 %v1510
        %2095 = vmatpush1.bf16.msra.mxu0 %v1509
        %2096 = vmatprep.subr.bf16.mxu0 %v1518
        %2097 = vmatpush1.bf16.msra.mxu0 %v1517
        %2098 = vmatprep.subr.bf16.mxu0 %v1526
        %2099 = vmatpush1.bf16.msra.mxu0 %v1525
        %2100 = vmatprep.subr.bf16.mxu0 %v1534
        %2101 = vmatpush1.bf16.msra.mxu0 %v1533
        %2102 = vmatprep.subr.bf16.mxu0 %v1542
        %2103 = vmatpush1.bf16.msra.mxu0 %v1541
        %2104 = vmatprep.subr.bf16.mxu0 %v1550
        %2105 = vmatpush1.bf16.msra.mxu0 %v1549
        %2106 = vmatprep.subr.bf16.mxu0 %v1558
        %2107 = vmatpush1.bf16.msra.mxu0 %v1557
        %2108 = vmatprep.subr.bf16.mxu0 %v1566
        %2109 = vmatpush1.bf16.msra.mxu0 %v1565
        %2110 = vmatprep.subr.bf16.mxu0 %v1574
        %2111 = vmatpush1.bf16.msra.mxu0 %v1573
        %2112 = vmatprep.subr.bf16.mxu0 %v1582
        %2113 = vmatpush1.bf16.msra.mxu0 %v1581
        %2114 = vmatprep.subr.bf16.mxu0 %v1590
        %2115 = vmatpush1.bf16.msra.mxu0 %v1589
        %2116 = vmatprep.subr.bf16.mxu0 %v1598
        %2117 = vmatpush1.bf16.msra.mxu0 %v1597
        %2118 = vmatprep.subr.bf16.mxu0 %v1606
        %2119 = vmatpush1.bf16.msra.mxu0 %v1605
        %2120 = vmatprep.subr.bf16.mxu0 %v1614
        %2121 = vmatpush1.bf16.msra.mxu0 %v1613
        %2122 = vmatprep.subr.bf16.mxu0 %v1622
        %2123 = vmatpush1.bf16.msra.mxu0 %v1621
        %2124 = vmatprep.subr.bf16.mxu0 %v1630
        %2125 = vmatpush1.bf16.msra.mxu0 %v1629
        %2126 = vmatprep.mubr.bf16.mxu0 %v604
        %2127 = vmatmul.mubr.bf16.gmra.mrb[0].mxu0 %v603
        %v2128 = vpop.f32.mrb[0].mxu0
        %v2129 = vadd.f32 %v2088, %v2128
        %v2130 = vpop.f32.mrb[0].mxu0
        %v2131 = vadd.f32 %v2090, %v2130
        %v2132 = vpop.f32.mrb[0].mxu0
        %v2133 = vpop.f32.mrb[0].mxu0
        %2134 = vdwg.mxu0
        %2135 = vmatprep.subr.bf16.mxu0 %v1384
        %2136 = vmatpush1.bf16.msra.mxu0 %v1383
        %2137 = vmatprep.subr.bf16.mxu0 %v1392
        %2138 = vmatpush1.bf16.msra.mxu0 %v1391
        %2139 = vmatprep.subr.bf16.mxu0 %v1400
        %2140 = vmatpush1.bf16.msra.mxu0 %v1399
        %2141 = vmatprep.subr.bf16.mxu0 %v1408
        %2142 = vmatpush1.bf16.msra.mxu0 %v1407
        %2143 = vmatprep.subr.bf16.mxu0 %v1416
        %2144 = vmatpush1.bf16.msra.mxu0 %v1415
        %2145 = vmatprep.subr.bf16.mxu0 %v1424
        %2146 = vmatpush1.bf16.msra.mxu0 %v1423
        %2147 = vmatprep.subr.bf16.mxu0 %v1432
        %2148 = vmatpush1.bf16.msra.mxu0 %v1431
        %2149 = vmatprep.subr.bf16.mxu0 %v1440
        %2150 = vmatpush1.bf16.msra.mxu0 %v1439
        %2151 = vmatprep.subr.bf16.mxu0 %v1448
        %2152 = vmatpush1.bf16.msra.mxu0 %v1447
        %2153 = vmatprep.subr.bf16.mxu0 %v1456
        %2154 = vmatpush1.bf16.msra.mxu0 %v1455
        %2155 = vmatprep.subr.bf16.mxu0 %v1464
        %2156 = vmatpush1.bf16.msra.mxu0 %v1463
        %2157 = vmatprep.subr.bf16.mxu0 %v1472
        %2158 = vmatpush1.bf16.msra.mxu0 %v1471
        %2159 = vmatprep.subr.bf16.mxu0 %v1480
        %2160 = vmatpush1.bf16.msra.mxu0 %v1479
        %2161 = vmatprep.subr.bf16.mxu0 %v1488
        %2162 = vmatpush1.bf16.msra.mxu0 %v1487
        %2163 = vmatprep.subr.bf16.mxu0 %v1496
        %2164 = vmatpush1.bf16.msra.mxu0 %v1495
        %2165 = vmatprep.subr.bf16.mxu0 %v1504
        %2166 = vmatpush1.bf16.msra.mxu0 %v1503
        %2167 = vmatprep.mubr.bf16.mxu0 %v602
        %2168 = vmatmul.mubr.bf16.gmra.mrb[0].mxu0 %v595
        %v2169 = vpop.f32.mrb[0].mxu0
        %v2170 = vadd.f32 0.0, %v2169
        %v2171 = vpop.f32.mrb[0].mxu0
        %v2172 = vadd.f32 0.0, %v2171
        %v2173 = vpop.f32.mrb[0].mxu0
        %v2174 = vpop.f32.mrb[0].mxu0
        %2175 = vdwg.mxu0
        %2176 = vmatprep.subr.bf16.mxu0 %v1512
        %2177 = vmatpush1.bf16.msra.mxu0 %v1511
        %2178 = vmatprep.subr.bf16.mxu0 %v1520
        %2179 = vmatpush1.bf16.msra.mxu0 %v1519
        %2180 = vmatprep.subr.bf16.mxu0 %v1528
        %2181 = vmatpush1.bf16.msra.mxu0 %v1527
        %2182 = vmatprep.subr.bf16.mxu0 %v1536
        %2183 = vmatpush1.bf16.msra.mxu0 %v1535
        %2184 = vmatprep.subr.bf16.mxu0 %v1544
        %2185 = vmatpush1.bf16.msra.mxu0 %v1543
        %2186 = vmatprep.subr.bf16.mxu0 %v1552
        %2187 = vmatpush1.bf16.msra.mxu0 %v1551
        %2188 = vmatprep.subr.bf16.mxu0 %v1560
        %2189 = vmatpush1.bf16.msra.mxu0 %v1559
        %2190 = vmatprep.subr.bf16.mxu0 %v1568
        %2191 = vmatpush1.bf16.msra.mxu0 %v1567
        %2192 = vmatprep.subr.bf16.mxu0 %v1576
        %2193 = vmatpush1.bf16.msra.mxu0 %v1575
        %2194 = vmatprep.subr.bf16.mxu0 %v1584
        %2195 = vmatpush1.bf16.msra.mxu0 %v1583
        %2196 = vmatprep.subr.bf16.mxu0 %v1592
        %2197 = vmatpush1.bf16.msra.mxu0 %v1591
        %2198 = vmatprep.subr.bf16.mxu0 %v1600
        %2199 = vmatpush1.bf16.msra.mxu0 %v1599
        %2200 = vmatprep.subr.bf16.mxu0 %v1608
        %2201 = vmatpush1.bf16.msra.mxu0 %v1607
        %2202 = vmatprep.subr.bf16.mxu0 %v1616
        %2203 = vmatpush1.bf16.msra.mxu0 %v1615
        %2204 = vmatprep.subr.bf16.mxu0 %v1624
        %2205 = vmatpush1.bf16.msra.mxu0 %v1623
        %2206 = vmatprep.subr.bf16.mxu0 %v1632
        %2207 = vmatpush1.bf16.msra.mxu0 %v1631
        %2208 = vmatprep.mubr.bf16.mxu0 %v604
        %2209 = vmatmul.mubr.bf16.gmra.mrb[0].mxu0 %v603
        %v2210 = vpop.f32.mrb[0].mxu0
        %v2211 = vadd.f32 %v2170, %v2210
        %v2212 = vpop.f32.mrb[0].mxu0
        %v2213 = vadd.f32 %v2172, %v2212
        %v2214 = vpop.f32.mrb[0].mxu0
        %v2215 = vpop.f32.mrb[0].mxu0
        %2216 = vdwg.mxu0
        %v2225 = vcombine.low %v1965, %v1967
        %v2226 = vcombine.low %v2047, %v2049
        %v2228 = vunpack.c.l.s4 1983009808
        %v2229 = vunpack.c.0.s8 %v2228
        %v2230 = vlaneseq
        %v2231 = vshrl.u32 %v2230, 7
        %v2232 = vsub.s32 %v2229, %v2231
        %v2233 = vrot.slane %v2225, %v2232
        %v2235 = vunpack.c.l.s4 1983009808
        %v2236 = vunpack.c.0.s8 %v2235
        %v2237 = vlaneseq
        %v2238 = vshrl.u32 %v2237, 7
        %v2239 = vsub.s32 %v2236, %v2238
        %v2240 = vrot.slane %v2226, %v2239
        %v2241 = vcombine.low %v2233, %v2240
        %v2242 = vcombine.low %v2129, %v2131
        %v2243 = vcombine.low %v2211, %v2213
        %v2245 = vunpack.c.l.s4 1983009808
        %v2246 = vunpack.c.0.s8 %v2245
        %v2247 = vlaneseq
        %v2248 = vshrl.u32 %v2247, 7
        %v2249 = vsub.s32 %v2246, %v2248
        %v2250 = vrot.slane %v2242, %v2249
        %v2252 = vunpack.c.l.s4 1983009808
        %v2253 = vunpack.c.0.s8 %v2252
        %v2254 = vlaneseq
        %v2255 = vshrl.u32 %v2254, 7
        %v2256 = vsub.s32 %v2253, %v2255
        %v2257 = vrot.slane %v2243, %v2256
        %v2258 = vcombine.low %v2250, %v2257
        %v2261 = vadd.f32 %v321, %v2241
        %v2262 = vadd.f32 %v322, %v2258
        %2263 = vst [vmem:[#allocation2] sm:$0xff] %v2261
        %2264 = vst [vmem:[#allocation2 + $0x8] sm:$0xff] %v2262
        %p2265 = scmp.eq.s32.totalorder %s21, 3
        // Predicated region
        $region53: #{discriminator_forward.7} parent=47 // pred_check
          %p2266 = pneg %p2265
        $region54: #{discriminator_forward.7} parent=47 // pred_check_branch
          %2268 = sbr.rel (%p2266) target = $region56
        $region55: #{discriminator_forward.7} parent=47 // pred_region
          %v2269 = vld [vmem:[#allocation2] sm:$0xff]
          %v2270 = vld [vmem:[#allocation2 + $0x8] sm:$0xff]
          %v2271 = vld [vmem:[%s2] sm:$0xff]
          %v2273 = vlaneseq
          %v2274 = vshrl.u32 %v2273, 7
          %v2275 = vsub.s32 0, %v2274
          %v2276 = vrot.slane %v2271, %v2275
          %v2277 = vlaneseq
          %v2278 = vshrl.u32 %v2277, 7
          %v2279 = vsub.s32 1, %v2278
          %v2280 = vrot.slane %v2271, %v2279
          %v2281 = vlaneseq
          %v2282 = vshrl.u32 %v2281, 7
          %v2283 = vsub.s32 2, %v2282
          %v2284 = vrot.slane %v2271, %v2283
          %v2285 = vlaneseq
          %v2286 = vshrl.u32 %v2285, 7
          %v2287 = vsub.s32 3, %v2286
          %v2288 = vrot.slane %v2271, %v2287
          %v2289 = vlaneseq
          %v2290 = vshrl.u32 %v2289, 7
          %v2291 = vsub.s32 4, %v2290
          %v2292 = vrot.slane %v2271, %v2291
          %v2293 = vlaneseq
          %v2294 = vshrl.u32 %v2293, 7
          %v2295 = vsub.s32 5, %v2294
          %v2296 = vrot.slane %v2271, %v2295
          %v2297 = vlaneseq
          %v2298 = vshrl.u32 %v2297, 7
          %v2299 = vsub.s32 6, %v2298
          %v2300 = vrot.slane %v2271, %v2299
          %v2301 = vlaneseq
          %v2302 = vshrl.u32 %v2301, 7
          %v2303 = vsub.s32 7, %v2302
          %v2304 = vrot.slane %v2271, %v2303
          %v2305 = vcombine.low %v2276, %v2280
          %v2306 = vcombine.low %v2284, %v2288
          %v2308 = vunpack.c.l.s4 1983009808
          %v2309 = vunpack.c.0.s8 %v2308
          %v2310 = vlaneseq
          %v2311 = vshrl.u32 %v2310, 7
          %v2312 = vsub.s32 %v2309, %v2311
          %v2313 = vrot.slane %v2305, %v2312
          %v2315 = vunpack.c.l.s4 1983009808
          %v2316 = vunpack.c.0.s8 %v2315
          %v2317 = vlaneseq
          %v2318 = vshrl.u32 %v2317, 7
          %v2319 = vsub.s32 %v2316, %v2318
          %v2320 = vrot.slane %v2306, %v2319
          %v2321 = vcombine.low %v2313, %v2320
          %v2322 = vcombine.low %v2292, %v2296
          %v2323 = vcombine.low %v2300, %v2304
          %v2325 = vunpack.c.l.s4 1983009808
          %v2326 = vunpack.c.0.s8 %v2325
          %v2327 = vlaneseq
          %v2328 = vshrl.u32 %v2327, 7
          %v2329 = vsub.s32 %v2326, %v2328
          %v2330 = vrot.slane %v2322, %v2329
          %v2332 = vunpack.c.l.s4 1983009808
          %v2333 = vunpack.c.0.s8 %v2332
          %v2334 = vlaneseq
          %v2335 = vshrl.u32 %v2334, 7
          %v2336 = vsub.s32 %v2333, %v2335
          %v2337 = vrot.slane %v2323, %v2336
          %v2338 = vcombine.low %v2330, %v2337
          %v2341 = vadd.f32 %v2269, %v2321
          %v2342 = vadd.f32 %v2270, %v2338
          %v2345 = vcombine.high %v2341, %v2341
          %v2347 = vunpack.c.l.s4 1983009808
          %v2348 = vunpack.c.0.s8 %v2347
          %v2349 = vlaneseq
          %v2350 = vshrl.u32 %v2349, 7
          %v2351 = vsub.s32 %v2348, %v2350
          %v2352 = vrot.slane %v2341, %v2351
          %v2354 = vunpack.c.l.s4 1983009808
          %v2355 = vunpack.c.0.s8 %v2354
          %v2356 = vlaneseq
          %v2357 = vshrl.u32 %v2356, 7
          %v2358 = vsub.s32 %v2355, %v2357
          %v2359 = vrot.slane %v2345, %v2358
          %v2360 = vcombine.high %v2352, %v2352
          %v2361 = vcombine.high %v2359, %v2359
          %v2362 = vcombine.high %v2342, %v2342
          %v2364 = vunpack.c.l.s4 1983009808
          %v2365 = vunpack.c.0.s8 %v2364
          %v2366 = vlaneseq
          %v2367 = vshrl.u32 %v2366, 7
          %v2368 = vsub.s32 %v2365, %v2367
          %v2369 = vrot.slane %v2342, %v2368
          %v2371 = vunpack.c.l.s4 1983009808
          %v2372 = vunpack.c.0.s8 %v2371
          %v2373 = vlaneseq
          %v2374 = vshrl.u32 %v2373, 7
          %v2375 = vsub.s32 %v2372, %v2374
          %v2376 = vrot.slane %v2362, %v2375
          %v2377 = vcombine.high %v2369, %v2369
          %v2378 = vcombine.high %v2376, %v2376
          %vm2387 = vcmask 1041408
          %v2388 = vsel %vm2387, %v2352, 0.0
          %v2389 = vrot.slane %v2388, 4
          %v2390 = vadd.f32 %v2388, %v2389
          %v2391 = vrot.slane %v2390, 2
          %v2392 = vadd.f32 %v2390, %v2391
          %v2393 = vrot.slane %v2392, 1
          %v2394 = vadd.f32 %v2392, %v2393
          %v2395 = vsel %vm2387, %v2360, 0.0
          %v2396 = vrot.slane %v2395, 4
          %v2397 = vadd.f32 %v2395, %v2396
          %v2398 = vrot.slane %v2397, 2
          %v2399 = vadd.f32 %v2397, %v2398
          %v2400 = vrot.slane %v2399, 1
          %v2401 = vadd.f32 %v2399, %v2400
          %v2402 = vsel %vm2387, %v2359, 0.0
          %v2403 = vrot.slane %v2402, 4
          %v2404 = vadd.f32 %v2402, %v2403
          %v2405 = vrot.slane %v2404, 2
          %v2406 = vadd.f32 %v2404, %v2405
          %v2407 = vrot.slane %v2406, 1
          %v2408 = vadd.f32 %v2406, %v2407
          %v2409 = vsel %vm2387, %v2361, 0.0
          %v2410 = vrot.slane %v2409, 4
          %v2411 = vadd.f32 %v2409, %v2410
          %v2412 = vrot.slane %v2411, 2
          %v2413 = vadd.f32 %v2411, %v2412
          %v2414 = vrot.slane %v2413, 1
          %v2415 = vadd.f32 %v2413, %v2414
          %v2416 = vsel %vm2387, %v2369, 0.0
          %v2417 = vrot.slane %v2416, 4
          %v2418 = vadd.f32 %v2416, %v2417
          %v2419 = vrot.slane %v2418, 2
          %v2420 = vadd.f32 %v2418, %v2419
          %v2421 = vrot.slane %v2420, 1
          %v2422 = vadd.f32 %v2420, %v2421
          %v2423 = vsel %vm2387, %v2377, 0.0
          %v2424 = vrot.slane %v2423, 4
          %v2425 = vadd.f32 %v2423, %v2424
          %v2426 = vrot.slane %v2425, 2
          %v2427 = vadd.f32 %v2425, %v2426
          %v2428 = vrot.slane %v2427, 1
          %v2429 = vadd.f32 %v2427, %v2428
          %v2430 = vsel %vm2387, %v2376, 0.0
          %v2431 = vrot.slane %v2430, 4
          %v2432 = vadd.f32 %v2430, %v2431
          %v2433 = vrot.slane %v2432, 2
          %v2434 = vadd.f32 %v2432, %v2433
          %v2435 = vrot.slane %v2434, 1
          %v2436 = vadd.f32 %v2434, %v2435
          %v2437 = vsel %vm2387, %v2378, 0.0
          %v2438 = vrot.slane %v2437, 4
          %v2439 = vadd.f32 %v2437, %v2438
          %v2440 = vrot.slane %v2439, 2
          %v2441 = vadd.f32 %v2439, %v2440
          %v2442 = vrot.slane %v2441, 1
          %v2443 = vadd.f32 %v2441, %v2442
          %v2444 = vrcp.pop 2.0
          %v2445 = vmul.f32 %v2394, %v2444
          %v2446 = vmul.f32 %v2401, %v2444
          %v2447 = vmul.f32 %v2408, %v2444
          %v2448 = vmul.f32 %v2415, %v2444
          %v2449 = vmul.f32 %v2422, %v2444
          %v2450 = vmul.f32 %v2429, %v2444
          %v2451 = vmul.f32 %v2436, %v2444
          %v2452 = vmul.f32 %v2443, %v2444
          %v2453 = vmul.f32 %v2341, %v2341
          %v2454 = vmul.f32 %v2342, %v2342
          %v2457 = vcombine.high %v2453, %v2453
          %v2459 = vunpack.c.l.s4 1983009808
          %v2460 = vunpack.c.0.s8 %v2459
          %v2461 = vlaneseq
          %v2462 = vshrl.u32 %v2461, 7
          %v2463 = vsub.s32 %v2460, %v2462
          %v2464 = vrot.slane %v2453, %v2463
          %v2466 = vunpack.c.l.s4 1983009808
          %v2467 = vunpack.c.0.s8 %v2466
          %v2468 = vlaneseq
          %v2469 = vshrl.u32 %v2468, 7
          %v2470 = vsub.s32 %v2467, %v2469
          %v2471 = vrot.slane %v2457, %v2470
          %v2472 = vcombine.high %v2464, %v2464
          %v2473 = vcombine.high %v2471, %v2471
          %v2474 = vcombine.high %v2454, %v2454
          %v2476 = vunpack.c.l.s4 1983009808
          %v2477 = vunpack.c.0.s8 %v2476
          %v2478 = vlaneseq
          %v2479 = vshrl.u32 %v2478, 7
          %v2480 = vsub.s32 %v2477, %v2479
          %v2481 = vrot.slane %v2454, %v2480
          %v2483 = vunpack.c.l.s4 1983009808
          %v2484 = vunpack.c.0.s8 %v2483
          %v2485 = vlaneseq
          %v2486 = vshrl.u32 %v2485, 7
          %v2487 = vsub.s32 %v2484, %v2486
          %v2488 = vrot.slane %v2474, %v2487
          %v2489 = vcombine.high %v2481, %v2481
          %v2490 = vcombine.high %v2488, %v2488
          %v2499 = vsel %vm2387, %v2464, 0.0
          %v2500 = vrot.slane %v2499, 4
          %v2501 = vadd.f32 %v2499, %v2500
          %v2502 = vrot.slane %v2501, 2
          %v2503 = vadd.f32 %v2501, %v2502
          %v2504 = vrot.slane %v2503, 1
          %v2505 = vadd.f32 %v2503, %v2504
          %v2506 = vsel %vm2387, %v2472, 0.0
          %v2507 = vrot.slane %v2506, 4
          %v2508 = vadd.f32 %v2506, %v2507
          %v2509 = vrot.slane %v2508, 2
          %v2510 = vadd.f32 %v2508, %v2509
          %v2511 = vrot.slane %v2510, 1
          %v2512 = vadd.f32 %v2510, %v2511
          %v2513 = vsel %vm2387, %v2471, 0.0
          %v2514 = vrot.slane %v2513, 4
          %v2515 = vadd.f32 %v2513, %v2514
          %v2516 = vrot.slane %v2515, 2
          %v2517 = vadd.f32 %v2515, %v2516
          %v2518 = vrot.slane %v2517, 1
          %v2519 = vadd.f32 %v2517, %v2518
          %v2520 = vsel %vm2387, %v2473, 0.0
          %v2521 = vrot.slane %v2520, 4
          %v2522 = vadd.f32 %v2520, %v2521
          %v2523 = vrot.slane %v2522, 2
          %v2524 = vadd.f32 %v2522, %v2523
          %v2525 = vrot.slane %v2524, 1
          %v2526 = vadd.f32 %v2524, %v2525
          %v2527 = vsel %vm2387, %v2481, 0.0
          %v2528 = vrot.slane %v2527, 4
          %v2529 = vadd.f32 %v2527, %v2528
          %v2530 = vrot.slane %v2529, 2
          %v2531 = vadd.f32 %v2529, %v2530
          %v2532 = vrot.slane %v2531, 1
          %v2533 = vadd.f32 %v2531, %v2532
          %v2534 = vsel %vm2387, %v2489, 0.0
          %v2535 = vrot.slane %v2534, 4
          %v2536 = vadd.f32 %v2534, %v2535
          %v2537 = vrot.slane %v2536, 2
          %v2538 = vadd.f32 %v2536, %v2537
          %v2539 = vrot.slane %v2538, 1
          %v2540 = vadd.f32 %v2538, %v2539
          %v2541 = vsel %vm2387, %v2488, 0.0
          %v2542 = vrot.slane %v2541, 4
          %v2543 = vadd.f32 %v2541, %v2542
          %v2544 = vrot.slane %v2543, 2
          %v2545 = vadd.f32 %v2543, %v2544
          %v2546 = vrot.slane %v2545, 1
          %v2547 = vadd.f32 %v2545, %v2546
          %v2548 = vsel %vm2387, %v2490, 0.0
          %v2549 = vrot.slane %v2548, 4
          %v2550 = vadd.f32 %v2548, %v2549
          %v2551 = vrot.slane %v2550, 2
          %v2552 = vadd.f32 %v2550, %v2551
          %v2553 = vrot.slane %v2552, 1
          %v2554 = vadd.f32 %v2552, %v2553
          %v2555 = vmul.f32 %v2505, %v2444
          %v2556 = vmul.f32 %v2512, %v2444
          %v2557 = vmul.f32 %v2519, %v2444
          %v2558 = vmul.f32 %v2526, %v2444
          %v2559 = vmul.f32 %v2533, %v2444
          %v2560 = vmul.f32 %v2540, %v2444
          %v2561 = vmul.f32 %v2547, %v2444
          %v2562 = vmul.f32 %v2554, %v2444
          %v2563 = vmul.f32 %v2445, %v2445
          %v2564 = vmul.f32 %v2446, %v2446
          %v2565 = vmul.f32 %v2447, %v2447
          %v2566 = vmul.f32 %v2448, %v2448
          %v2567 = vmul.f32 %v2449, %v2449
          %v2568 = vmul.f32 %v2450, %v2450
          %v2569 = vmul.f32 %v2451, %v2451
          %v2570 = vmul.f32 %v2452, %v2452
          %v2571 = vsub.f32 %v2555, %v2563
          %v2572 = vsub.f32 %v2556, %v2564
          %v2573 = vsub.f32 %v2557, %v2565
          %v2574 = vsub.f32 %v2558, %v2566
          %v2575 = vsub.f32 %v2559, %v2567
          %v2576 = vsub.f32 %v2560, %v2568
          %v2577 = vsub.f32 %v2561, %v2569
          %v2578 = vsub.f32 %v2562, %v2570
          %v2579 = vmax.f32 %v2571, 0.0
          %v2580 = vmax.f32 %v2572, 0.0
          %v2581 = vmax.f32 %v2573, 0.0
          %v2582 = vmax.f32 %v2574, 0.0
          %v2583 = vmax.f32 %v2575, 0.0
          %v2584 = vmax.f32 %v2576, 0.0
          %v2585 = vmax.f32 %v2577, 0.0
          %v2586 = vmax.f32 %v2578, 0.0
          %v2595 = vcombine.low %v2445, %v2446
          %v2596 = vcombine.low %v2447, %v2448
          %v2598 = vunpack.c.l.s4 1983009808
          %v2599 = vunpack.c.0.s8 %v2598
          %v2600 = vlaneseq
          %v2601 = vshrl.u32 %v2600, 7
          %v2602 = vsub.s32 %v2599, %v2601
          %v2603 = vrot.slane %v2595, %v2602
          %v2605 = vunpack.c.l.s4 1983009808
          %v2606 = vunpack.c.0.s8 %v2605
          %v2607 = vlaneseq
          %v2608 = vshrl.u32 %v2607, 7
          %v2609 = vsub.s32 %v2606, %v2608
          %v2610 = vrot.slane %v2596, %v2609
          %v2611 = vcombine.low %v2603, %v2610
          %v2612 = vcombine.low %v2449, %v2450
          %v2613 = vcombine.low %v2451, %v2452
          %v2615 = vunpack.c.l.s4 1983009808
          %v2616 = vunpack.c.0.s8 %v2615
          %v2617 = vlaneseq
          %v2618 = vshrl.u32 %v2617, 7
          %v2619 = vsub.s32 %v2616, %v2618
          %v2620 = vrot.slane %v2612, %v2619
          %v2622 = vunpack.c.l.s4 1983009808
          %v2623 = vunpack.c.0.s8 %v2622
          %v2624 = vlaneseq
          %v2625 = vshrl.u32 %v2624, 7
          %v2626 = vsub.s32 %v2623, %v2625
          %v2627 = vrot.slane %v2613, %v2626
          %v2628 = vcombine.low %v2620, %v2627
          %v2631 = vsub.f32 %v2341, %v2611
          %v2632 = vsub.f32 %v2342, %v2628
          %v2633 = vadd.f32 %v2579, 1e-05
          %v2634 = vadd.f32 %v2580, 1e-05
          %v2635 = vadd.f32 %v2581, 1e-05
          %v2636 = vadd.f32 %v2582, 1e-05
          %v2637 = vadd.f32 %v2583, 1e-05
          %v2638 = vadd.f32 %v2584, 1e-05
          %v2639 = vadd.f32 %v2585, 1e-05
          %v2640 = vadd.f32 %v2586, 1e-05
          %v2641 = vrsqrt.pop %v2633
          %v2642 = vrsqrt.pop %v2634
          %v2643 = vrsqrt.pop %v2635
          %v2644 = vrsqrt.pop %v2636
          %v2645 = vrsqrt.pop %v2637
          %v2646 = vrsqrt.pop %v2638
          %v2647 = vrsqrt.pop %v2639
          %v2648 = vrsqrt.pop %v2640
          %v2657 = vcombine.low %v2641, %v2642
          %v2658 = vcombine.low %v2643, %v2644
          %v2660 = vunpack.c.l.s4 1983009808
          %v2661 = vunpack.c.0.s8 %v2660
          %v2662 = vlaneseq
          %v2663 = vshrl.u32 %v2662, 7
          %v2664 = vsub.s32 %v2661, %v2663
          %v2665 = vrot.slane %v2657, %v2664
          %v2667 = vunpack.c.l.s4 1983009808
          %v2668 = vunpack.c.0.s8 %v2667
          %v2669 = vlaneseq
          %v2670 = vshrl.u32 %v2669, 7
          %v2671 = vsub.s32 %v2668, %v2670
          %v2672 = vrot.slane %v2658, %v2671
          %v2673 = vcombine.low %v2665, %v2672
          %v2674 = vcombine.low %v2645, %v2646
          %v2675 = vcombine.low %v2647, %v2648
          %v2677 = vunpack.c.l.s4 1983009808
          %v2678 = vunpack.c.0.s8 %v2677
          %v2679 = vlaneseq
          %v2680 = vshrl.u32 %v2679, 7
          %v2681 = vsub.s32 %v2678, %v2680
          %v2682 = vrot.slane %v2674, %v2681
          %v2684 = vunpack.c.l.s4 1983009808
          %v2685 = vunpack.c.0.s8 %v2684
          %v2686 = vlaneseq
          %v2687 = vshrl.u32 %v2686, 7
          %v2688 = vsub.s32 %v2685, %v2687
          %v2689 = vrot.slane %v2675, %v2688
          %v2690 = vcombine.low %v2682, %v2689
          %v2693 = vmul.f32 %v2631, %v2673
          %v2694 = vmul.f32 %v2632, %v2690
          %vm2695 = vcmp.gt.f32.partialorder %v2693, 0.0
          %vm2696 = vcmp.gt.f32.partialorder %v2694, 0.0
          %v2697 = vmul.f32 %v2693, 0.2
          %v2698 = vmul.f32 %v2694, 0.2
          %v2699 = vsel %vm2695, %v2693, %v2697
          %v2700 = vsel %vm2696, %v2694, %v2698
          %v2703 = vcombine.high %v2699, %v2699
          %v2705 = vunpack.c.l.s4 1983009808
          %v2706 = vunpack.c.0.s8 %v2705
          %v2707 = vlaneseq
          %v2708 = vshrl.u32 %v2707, 7
          %v2709 = vsub.s32 %v2706, %v2708
          %v2710 = vrot.slane %v2699, %v2709
          %v2712 = vunpack.c.l.s4 1983009808
          %v2713 = vunpack.c.0.s8 %v2712
          %v2714 = vlaneseq
          %v2715 = vshrl.u32 %v2714, 7
          %v2716 = vsub.s32 %v2713, %v2715
          %v2717 = vrot.slane %v2703, %v2716
          %v2718 = vcombine.high %v2710, %v2710
          %v2719 = vcombine.high %v2717, %v2717
          %v2720 = vcombine.high %v2700, %v2700
          %v2722 = vunpack.c.l.s4 1983009808
          %v2723 = vunpack.c.0.s8 %v2722
          %v2724 = vlaneseq
          %v2725 = vshrl.u32 %v2724, 7
          %v2726 = vsub.s32 %v2723, %v2725
          %v2727 = vrot.slane %v2700, %v2726
          %v2729 = vunpack.c.l.s4 1983009808
          %v2730 = vunpack.c.0.s8 %v2729
          %v2731 = vlaneseq
          %v2732 = vshrl.u32 %v2731, 7
          %v2733 = vsub.s32 %v2730, %v2732
          %v2734 = vrot.slane %v2720, %v2733
          %v2735 = vcombine.high %v2727, %v2727
          %v2736 = vcombine.high %v2734, %v2734
          %v2745 = vpack.c.bf16 %v2710, %v2710
          %v2746 = vpack.c.bf16 %v2718, %v2718
          %v2747 = vpack.c.bf16 %v2717, %v2717
          %v2748 = vpack.c.bf16 %v2719, %v2719
          %v2749 = vpack.c.bf16 %v2727, %v2727
          %v2750 = vpack.c.bf16 %v2735, %v2735
          %v2751 = vpack.c.bf16 %v2734, %v2734
          %v2752 = vpack.c.bf16 %v2736, %v2736
          %v2753 = vld [vmem:[%s3] sm:$0xff]
          %v2754 = vld [vmem:[%s3 + $0x8] sm:$0xff]
          %v2755 = vld [vmem:[%s3 + $0x10] sm:$0xff]
          %v2756 = vld [vmem:[%s3 + $0x18] sm:$0xff]
          %v2757 = vld [vmem:[%s3 + $0x20] sm:$0xff]
          %v2758 = vld [vmem:[%s3 + $0x28] sm:$0xff]
          %v2759 = vld [vmem:[%s3 + $0x30] sm:$0xff]
          %v2760 = vld [vmem:[%s3 + $0x38] sm:$0xff]
          %v2761 = vld [vmem:[%s3 + $0x40] sm:$0xff]
          %v2762 = vld [vmem:[%s3 + $0x48] sm:$0xff]
          %v2763 = vld [vmem:[%s3 + $0x50] sm:$0xff]
          %v2764 = vld [vmem:[%s3 + $0x58] sm:$0xff]
          %v2765 = vld [vmem:[%s3 + $0x60] sm:$0xff]
          %v2766 = vld [vmem:[%s3 + $0x68] sm:$0xff]
          %v2767 = vld [vmem:[%s3 + $0x70] sm:$0xff]
          %v2768 = vld [vmem:[%s3 + $0x78] sm:$0xff]
          %v2769 = vld [vmem:[%s3 + $0x80] sm:$0xff]
          %v2770 = vld [vmem:[%s3 + $0x88] sm:$0xff]
          %v2771 = vld [vmem:[%s3 + $0x90] sm:$0xff]
          %v2772 = vld [vmem:[%s3 + $0x98] sm:$0xff]
          %v2773 = vld [vmem:[%s3 + $0xa0] sm:$0xff]
          %v2774 = vld [vmem:[%s3 + $0xa8] sm:$0xff]
          %v2775 = vld [vmem:[%s3 + $0xb0] sm:$0xff]
          %v2776 = vld [vmem:[%s3 + $0xb8] sm:$0xff]
          %v2777 = vld [vmem:[%s3 + $0xc0] sm:$0xff]
          %v2778 = vld [vmem:[%s3 + $0xc8] sm:$0xff]
          %v2779 = vld [vmem:[%s3 + $0xd0] sm:$0xff]
          %v2780 = vld [vmem:[%s3 + $0xd8] sm:$0xff]
          %v2781 = vld [vmem:[%s3 + $0xe0] sm:$0xff]
          %v2782 = vld [vmem:[%s3 + $0xe8] sm:$0xff]
          %v2783 = vld [vmem:[%s3 + $0xf0] sm:$0xff]
          %v2784 = vld [vmem:[%s3 + $0xf8] sm:$0xff]
          %v2785 = vld [vmem:[%s3 + $0x100] sm:$0xff]
          %v2786 = vld [vmem:[%s3 + $0x108] sm:$0xff]
          %v2787 = vld [vmem:[%s3 + $0x110] sm:$0xff]
          %v2788 = vld [vmem:[%s3 + $0x118] sm:$0xff]
          %v2789 = vld [vmem:[%s3 + $0x120] sm:$0xff]
          %v2790 = vld [vmem:[%s3 + $0x128] sm:$0xff]
          %v2791 = vld [vmem:[%s3 + $0x130] sm:$0xff]
          %v2792 = vld [vmem:[%s3 + $0x138] sm:$0xff]
          %v2793 = vld [vmem:[%s3 + $0x140] sm:$0xff]
          %v2794 = vld [vmem:[%s3 + $0x148] sm:$0xff]
          %v2795 = vld [vmem:[%s3 + $0x150] sm:$0xff]
          %v2796 = vld [vmem:[%s3 + $0x158] sm:$0xff]
          %v2797 = vld [vmem:[%s3 + $0x160] sm:$0xff]
          %v2798 = vld [vmem:[%s3 + $0x168] sm:$0xff]
          %v2799 = vld [vmem:[%s3 + $0x170] sm:$0xff]
          %v2800 = vld [vmem:[%s3 + $0x178] sm:$0xff]
          %v2801 = vld [vmem:[%s3 + $0x180] sm:$0xff]
          %v2802 = vld [vmem:[%s3 + $0x188] sm:$0xff]
          %v2803 = vld [vmem:[%s3 + $0x190] sm:$0xff]
          %v2804 = vld [vmem:[%s3 + $0x198] sm:$0xff]
          %v2805 = vld [vmem:[%s3 + $0x1a0] sm:$0xff]
          %v2806 = vld [vmem:[%s3 + $0x1a8] sm:$0xff]
          %v2807 = vld [vmem:[%s3 + $0x1b0] sm:$0xff]
          %v2808 = vld [vmem:[%s3 + $0x1b8] sm:$0xff]
          %v2809 = vld [vmem:[%s3 + $0x1c0] sm:$0xff]
          %v2810 = vld [vmem:[%s3 + $0x1c8] sm:$0xff]
          %v2811 = vld [vmem:[%s3 + $0x1d0] sm:$0xff]
          %v2812 = vld [vmem:[%s3 + $0x1d8] sm:$0xff]
          %v2813 = vld [vmem:[%s3 + $0x1e0] sm:$0xff]
          %v2814 = vld [vmem:[%s3 + $0x1e8] sm:$0xff]
          %v2815 = vld [vmem:[%s3 + $0x1f0] sm:$0xff]
          %v2816 = vld [vmem:[%s3 + $0x1f8] sm:$0xff]
          %v2817 = vld [vmem:[%s3 + $0x200] sm:$0xff]
          %v2818 = vld [vmem:[%s3 + $0x208] sm:$0xff]
          %v2819 = vld [vmem:[%s3 + $0x210] sm:$0xff]
          %v2820 = vld [vmem:[%s3 + $0x218] sm:$0xff]
          %v2821 = vld [vmem:[%s3 + $0x220] sm:$0xff]
          %v2822 = vld [vmem:[%s3 + $0x228] sm:$0xff]
          %v2823 = vld [vmem:[%s3 + $0x230] sm:$0xff]
          %v2824 = vld [vmem:[%s3 + $0x238] sm:$0xff]
          %v2825 = vld [vmem:[%s3 + $0x240] sm:$0xff]
          %v2826 = vld [vmem:[%s3 + $0x248] sm:$0xff]
          %v2827 = vld [vmem:[%s3 + $0x250] sm:$0xff]
          %v2828 = vld [vmem:[%s3 + $0x258] sm:$0xff]
          %v2829 = vld [vmem:[%s3 + $0x260] sm:$0xff]
          %v2830 = vld [vmem:[%s3 + $0x268] sm:$0xff]
          %v2831 = vld [vmem:[%s3 + $0x270] sm:$0xff]
          %v2832 = vld [vmem:[%s3 + $0x278] sm:$0xff]
          %v2833 = vld [vmem:[%s3 + $0x280] sm:$0xff]
          %v2834 = vld [vmem:[%s3 + $0x288] sm:$0xff]
          %v2835 = vld [vmem:[%s3 + $0x290] sm:$0xff]
          %v2836 = vld [vmem:[%s3 + $0x298] sm:$0xff]
          %v2837 = vld [vmem:[%s3 + $0x2a0] sm:$0xff]
          %v2838 = vld [vmem:[%s3 + $0x2a8] sm:$0xff]
          %v2839 = vld [vmem:[%s3 + $0x2b0] sm:$0xff]
          %v2840 = vld [vmem:[%s3 + $0x2b8] sm:$0xff]
          %v2841 = vld [vmem:[%s3 + $0x2c0] sm:$0xff]
          %v2842 = vld [vmem:[%s3 + $0x2c8] sm:$0xff]
          %v2843 = vld [vmem:[%s3 + $0x2d0] sm:$0xff]
          %v2844 = vld [vmem:[%s3 + $0x2d8] sm:$0xff]
          %v2845 = vld [vmem:[%s3 + $0x2e0] sm:$0xff]
          %v2846 = vld [vmem:[%s3 + $0x2e8] sm:$0xff]
          %v2847 = vld [vmem:[%s3 + $0x2f0] sm:$0xff]
          %v2848 = vld [vmem:[%s3 + $0x2f8] sm:$0xff]
          %v2849 = vld [vmem:[%s3 + $0x300] sm:$0xff]
          %v2850 = vld [vmem:[%s3 + $0x308] sm:$0xff]
          %v2851 = vld [vmem:[%s3 + $0x310] sm:$0xff]
          %v2852 = vld [vmem:[%s3 + $0x318] sm:$0xff]
          %v2853 = vld [vmem:[%s3 + $0x320] sm:$0xff]
          %v2854 = vld [vmem:[%s3 + $0x328] sm:$0xff]
          %v2855 = vld [vmem:[%s3 + $0x330] sm:$0xff]
          %v2856 = vld [vmem:[%s3 + $0x338] sm:$0xff]
          %v2857 = vld [vmem:[%s3 + $0x340] sm:$0xff]
          %v2858 = vld [vmem:[%s3 + $0x348] sm:$0xff]
          %v2859 = vld [vmem:[%s3 + $0x350] sm:$0xff]
          %v2860 = vld [vmem:[%s3 + $0x358] sm:$0xff]
          %v2861 = vld [vmem:[%s3 + $0x360] sm:$0xff]
          %v2862 = vld [vmem:[%s3 + $0x368] sm:$0xff]
          %v2863 = vld [vmem:[%s3 + $0x370] sm:$0xff]
          %v2864 = vld [vmem:[%s3 + $0x378] sm:$0xff]
          %v2865 = vld [vmem:[%s3 + $0x380] sm:$0xff]
          %v2866 = vld [vmem:[%s3 + $0x388] sm:$0xff]
          %v2867 = vld [vmem:[%s3 + $0x390] sm:$0xff]
          %v2868 = vld [vmem:[%s3 + $0x398] sm:$0xff]
          %v2869 = vld [vmem:[%s3 + $0x3a0] sm:$0xff]
          %v2870 = vld [vmem:[%s3 + $0x3a8] sm:$0xff]
          %v2871 = vld [vmem:[%s3 + $0x3b0] sm:$0xff]
          %v2872 = vld [vmem:[%s3 + $0x3b8] sm:$0xff]
          %v2873 = vld [vmem:[%s3 + $0x3c0] sm:$0xff]
          %v2874 = vld [vmem:[%s3 + $0x3c8] sm:$0xff]
          %v2875 = vld [vmem:[%s3 + $0x3d0] sm:$0xff]
          %v2876 = vld [vmem:[%s3 + $0x3d8] sm:$0xff]
          %v2877 = vld [vmem:[%s3 + $0x3e0] sm:$0xff]
          %v2878 = vld [vmem:[%s3 + $0x3e8] sm:$0xff]
          %v2879 = vld [vmem:[%s3 + $0x3f0] sm:$0xff]
          %v2880 = vld [vmem:[%s3 + $0x3f8] sm:$0xff]
          %v2881 = vld [vmem:[%s3 + $0x400] sm:$0xff]
          %v2882 = vld [vmem:[%s3 + $0x408] sm:$0xff]
          %v2883 = vld [vmem:[%s3 + $0x410] sm:$0xff]
          %v2884 = vld [vmem:[%s3 + $0x418] sm:$0xff]
          %v2885 = vld [vmem:[%s3 + $0x420] sm:$0xff]
          %v2886 = vld [vmem:[%s3 + $0x428] sm:$0xff]
          %v2887 = vld [vmem:[%s3 + $0x430] sm:$0xff]
          %v2888 = vld [vmem:[%s3 + $0x438] sm:$0xff]
          %v2889 = vld [vmem:[%s3 + $0x440] sm:$0xff]
          %v2890 = vld [vmem:[%s3 + $0x448] sm:$0xff]
          %v2891 = vld [vmem:[%s3 + $0x450] sm:$0xff]
          %v2892 = vld [vmem:[%s3 + $0x458] sm:$0xff]
          %v2893 = vld [vmem:[%s3 + $0x460] sm:$0xff]
          %v2894 = vld [vmem:[%s3 + $0x468] sm:$0xff]
          %v2895 = vld [vmem:[%s3 + $0x470] sm:$0xff]
          %v2896 = vld [vmem:[%s3 + $0x478] sm:$0xff]
          %v2897 = vld [vmem:[%s3 + $0x480] sm:$0xff]
          %v2898 = vld [vmem:[%s3 + $0x488] sm:$0xff]
          %v2899 = vld [vmem:[%s3 + $0x490] sm:$0xff]
          %v2900 = vld [vmem:[%s3 + $0x498] sm:$0xff]
          %v2901 = vld [vmem:[%s3 + $0x4a0] sm:$0xff]
          %v2902 = vld [vmem:[%s3 + $0x4a8] sm:$0xff]
          %v2903 = vld [vmem:[%s3 + $0x4b0] sm:$0xff]
          %v2904 = vld [vmem:[%s3 + $0x4b8] sm:$0xff]
          %v2905 = vld [vmem:[%s3 + $0x4c0] sm:$0xff]
          %v2906 = vld [vmem:[%s3 + $0x4c8] sm:$0xff]
          %v2907 = vld [vmem:[%s3 + $0x4d0] sm:$0xff]
          %v2908 = vld [vmem:[%s3 + $0x4d8] sm:$0xff]
          %v2909 = vld [vmem:[%s3 + $0x4e0] sm:$0xff]
          %v2910 = vld [vmem:[%s3 + $0x4e8] sm:$0xff]
          %v2911 = vld [vmem:[%s3 + $0x4f0] sm:$0xff]
          %v2912 = vld [vmem:[%s3 + $0x4f8] sm:$0xff]
          %v2913 = vld [vmem:[%s3 + $0x500] sm:$0xff]
          %v2914 = vld [vmem:[%s3 + $0x508] sm:$0xff]
          %v2915 = vld [vmem:[%s3 + $0x510] sm:$0xff]
          %v2916 = vld [vmem:[%s3 + $0x518] sm:$0xff]
          %v2917 = vld [vmem:[%s3 + $0x520] sm:$0xff]
          %v2918 = vld [vmem:[%s3 + $0x528] sm:$0xff]
          %v2919 = vld [vmem:[%s3 + $0x530] sm:$0xff]
          %v2920 = vld [vmem:[%s3 + $0x538] sm:$0xff]
          %v2921 = vld [vmem:[%s3 + $0x540] sm:$0xff]
          %v2922 = vld [vmem:[%s3 + $0x548] sm:$0xff]
          %v2923 = vld [vmem:[%s3 + $0x550] sm:$0xff]
          %v2924 = vld [vmem:[%s3 + $0x558] sm:$0xff]
          %v2925 = vld [vmem:[%s3 + $0x560] sm:$0xff]
          %v2926 = vld [vmem:[%s3 + $0x568] sm:$0xff]
          %v2927 = vld [vmem:[%s3 + $0x570] sm:$0xff]
          %v2928 = vld [vmem:[%s3 + $0x578] sm:$0xff]
          %v2929 = vld [vmem:[%s3 + $0x580] sm:$0xff]
          %v2930 = vld [vmem:[%s3 + $0x588] sm:$0xff]
          %v2931 = vld [vmem:[%s3 + $0x590] sm:$0xff]
          %v2932 = vld [vmem:[%s3 + $0x598] sm:$0xff]
          %v2933 = vld [vmem:[%s3 + $0x5a0] sm:$0xff]
          %v2934 = vld [vmem:[%s3 + $0x5a8] sm:$0xff]
          %v2935 = vld [vmem:[%s3 + $0x5b0] sm:$0xff]
          %v2936 = vld [vmem:[%s3 + $0x5b8] sm:$0xff]
          %v2937 = vld [vmem:[%s3 + $0x5c0] sm:$0xff]
          %v2938 = vld [vmem:[%s3 + $0x5c8] sm:$0xff]
          %v2939 = vld [vmem:[%s3 + $0x5d0] sm:$0xff]
          %v2940 = vld [vmem:[%s3 + $0x5d8] sm:$0xff]
          %v2941 = vld [vmem:[%s3 + $0x5e0] sm:$0xff]
          %v2942 = vld [vmem:[%s3 + $0x5e8] sm:$0xff]
          %v2943 = vld [vmem:[%s3 + $0x5f0] sm:$0xff]
          %v2944 = vld [vmem:[%s3 + $0x5f8] sm:$0xff]
          %v2945 = vld [vmem:[%s3 + $0x600] sm:$0xff]
          %v2946 = vld [vmem:[%s3 + $0x608] sm:$0xff]
          %v2947 = vld [vmem:[%s3 + $0x610] sm:$0xff]
          %v2948 = vld [vmem:[%s3 + $0x618] sm:$0xff]
          %v2949 = vld [vmem:[%s3 + $0x620] sm:$0xff]
          %v2950 = vld [vmem:[%s3 + $0x628] sm:$0xff]
          %v2951 = vld [vmem:[%s3 + $0x630] sm:$0xff]
          %v2952 = vld [vmem:[%s3 + $0x638] sm:$0xff]
          %v2953 = vld [vmem:[%s3 + $0x640] sm:$0xff]
          %v2954 = vld [vmem:[%s3 + $0x648] sm:$0xff]
          %v2955 = vld [vmem:[%s3 + $0x650] sm:$0xff]
          %v2956 = vld [vmem:[%s3 + $0x658] sm:$0xff]
          %v2957 = vld [vmem:[%s3 + $0x660] sm:$0xff]
          %v2958 = vld [vmem:[%s3 + $0x668] sm:$0xff]
          %v2959 = vld [vmem:[%s3 + $0x670] sm:$0xff]
          %v2960 = vld [vmem:[%s3 + $0x678] sm:$0xff]
          %v2961 = vld [vmem:[%s3 + $0x680] sm:$0xff]
          %v2962 = vld [vmem:[%s3 + $0x688] sm:$0xff]
          %v2963 = vld [vmem:[%s3 + $0x690] sm:$0xff]
          %v2964 = vld [vmem:[%s3 + $0x698] sm:$0xff]
          %v2965 = vld [vmem:[%s3 + $0x6a0] sm:$0xff]
          %v2966 = vld [vmem:[%s3 + $0x6a8] sm:$0xff]
          %v2967 = vld [vmem:[%s3 + $0x6b0] sm:$0xff]
          %v2968 = vld [vmem:[%s3 + $0x6b8] sm:$0xff]
          %v2969 = vld [vmem:[%s3 + $0x6c0] sm:$0xff]
          %v2970 = vld [vmem:[%s3 + $0x6c8] sm:$0xff]
          %v2971 = vld [vmem:[%s3 + $0x6d0] sm:$0xff]
          %v2972 = vld [vmem:[%s3 + $0x6d8] sm:$0xff]
          %v2973 = vld [vmem:[%s3 + $0x6e0] sm:$0xff]
          %v2974 = vld [vmem:[%s3 + $0x6e8] sm:$0xff]
          %v2975 = vld [vmem:[%s3 + $0x6f0] sm:$0xff]
          %v2976 = vld [vmem:[%s3 + $0x6f8] sm:$0xff]
          %v2977 = vld [vmem:[%s3 + $0x700] sm:$0xff]
          %v2978 = vld [vmem:[%s3 + $0x708] sm:$0xff]
          %v2979 = vld [vmem:[%s3 + $0x710] sm:$0xff]
          %v2980 = vld [vmem:[%s3 + $0x718] sm:$0xff]
          %v2981 = vld [vmem:[%s3 + $0x720] sm:$0xff]
          %v2982 = vld [vmem:[%s3 + $0x728] sm:$0xff]
          %v2983 = vld [vmem:[%s3 + $0x730] sm:$0xff]
          %v2984 = vld [vmem:[%s3 + $0x738] sm:$0xff]
          %v2985 = vld [vmem:[%s3 + $0x740] sm:$0xff]
          %v2986 = vld [vmem:[%s3 + $0x748] sm:$0xff]
          %v2987 = vld [vmem:[%s3 + $0x750] sm:$0xff]
          %v2988 = vld [vmem:[%s3 + $0x758] sm:$0xff]
          %v2989 = vld [vmem:[%s3 + $0x760] sm:$0xff]
          %v2990 = vld [vmem:[%s3 + $0x768] sm:$0xff]
          %v2991 = vld [vmem:[%s3 + $0x770] sm:$0xff]
          %v2992 = vld [vmem:[%s3 + $0x778] sm:$0xff]
          %v2993 = vld [vmem:[%s3 + $0x780] sm:$0xff]
          %v2994 = vld [vmem:[%s3 + $0x788] sm:$0xff]
          %v2995 = vld [vmem:[%s3 + $0x790] sm:$0xff]
          %v2996 = vld [vmem:[%s3 + $0x798] sm:$0xff]
          %v2997 = vld [vmem:[%s3 + $0x7a0] sm:$0xff]
          %v2998 = vld [vmem:[%s3 + $0x7a8] sm:$0xff]
          %v2999 = vld [vmem:[%s3 + $0x7b0] sm:$0xff]
          %v3000 = vld [vmem:[%s3 + $0x7b8] sm:$0xff]
          %v3001 = vld [vmem:[%s3 + $0x7c0] sm:$0xff]
          %v3002 = vld [vmem:[%s3 + $0x7c8] sm:$0xff]
          %v3003 = vld [vmem:[%s3 + $0x7d0] sm:$0xff]
          %v3004 = vld [vmem:[%s3 + $0x7d8] sm:$0xff]
          %v3005 = vld [vmem:[%s3 + $0x7e0] sm:$0xff]
          %v3006 = vld [vmem:[%s3 + $0x7e8] sm:$0xff]
          %v3007 = vld [vmem:[%s3 + $0x7f0] sm:$0xff]
          %v3008 = vld [vmem:[%s3 + $0x7f8] sm:$0xff]
          %v3009 = vld [vmem:[%s4] sm:$0xf]
          %v3011 = vlaneseq
          %v3012 = vshrl.u32 %v3011, 7
          %v3013 = vsub.s32 0, %v3012
          %v3014 = vrot.slane %v3009, %v3013
          %v3015 = vlaneseq
          %v3016 = vshrl.u32 %v3015, 7
          %v3017 = vsub.s32 1, %v3016
          %v3018 = vrot.slane %v3009, %v3017
          %v3019 = vlaneseq
          %v3020 = vshrl.u32 %v3019, 7
          %v3021 = vsub.s32 2, %v3020
          %v3022 = vrot.slane %v3009, %v3021
          %v3023 = vlaneseq
          %v3024 = vshrl.u32 %v3023, 7
          %v3025 = vsub.s32 3, %v3024
          %v3026 = vrot.slane %v3009, %v3025
          %v3287 = vunpack.c.l.b16 %v2753
          %v3288 = vunpack.c.h.b16 %v2753
          %v3289 = vunpack.c.l.b16 %v2754
          %v3290 = vunpack.c.h.b16 %v2754
          %v3291 = vunpack.c.l.b16 %v2755
          %v3292 = vunpack.c.h.b16 %v2755
          %v3293 = vunpack.c.l.b16 %v2756
          %v3294 = vunpack.c.h.b16 %v2756
          %v3295 = vunpack.c.l.b16 %v2757
          %v3296 = vunpack.c.h.b16 %v2757
          %v3297 = vunpack.c.l.b16 %v2758
          %v3298 = vunpack.c.h.b16 %v2758
          %v3299 = vunpack.c.l.b16 %v2759
          %v3300 = vunpack.c.h.b16 %v2759
          %v3301 = vunpack.c.l.b16 %v2760
          %v3302 = vunpack.c.h.b16 %v2760
          %v3303 = vunpack.c.l.b16 %v2761
          %v3304 = vunpack.c.h.b16 %v2761
          %v3305 = vunpack.c.l.b16 %v2762
          %v3306 = vunpack.c.h.b16 %v2762
          %v3307 = vunpack.c.l.b16 %v2763
          %v3308 = vunpack.c.h.b16 %v2763
          %v3309 = vunpack.c.l.b16 %v2764
          %v3310 = vunpack.c.h.b16 %v2764
          %v3311 = vunpack.c.l.b16 %v2765
          %v3312 = vunpack.c.h.b16 %v2765
          %v3313 = vunpack.c.l.b16 %v2766
          %v3314 = vunpack.c.h.b16 %v2766
          %v3315 = vunpack.c.l.b16 %v2767
          %v3316 = vunpack.c.h.b16 %v2767
          %v3317 = vunpack.c.l.b16 %v2768
          %v3318 = vunpack.c.h.b16 %v2768
          %v3319 = vunpack.c.l.b16 %v2769
          %v3320 = vunpack.c.h.b16 %v2769
          %v3321 = vunpack.c.l.b16 %v2770
          %v3322 = vunpack.c.h.b16 %v2770
          %v3323 = vunpack.c.l.b16 %v2771
          %v3324 = vunpack.c.h.b16 %v2771
          %v3325 = vunpack.c.l.b16 %v2772
          %v3326 = vunpack.c.h.b16 %v2772
          %v3327 = vunpack.c.l.b16 %v2773
          %v3328 = vunpack.c.h.b16 %v2773
          %v3329 = vunpack.c.l.b16 %v2774
          %v3330 = vunpack.c.h.b16 %v2774
          %v3331 = vunpack.c.l.b16 %v2775
          %v3332 = vunpack.c.h.b16 %v2775
          %v3333 = vunpack.c.l.b16 %v2776
          %v3334 = vunpack.c.h.b16 %v2776
          %v3335 = vunpack.c.l.b16 %v2777
          %v3336 = vunpack.c.h.b16 %v2777
          %v3337 = vunpack.c.l.b16 %v2778
          %v3338 = vunpack.c.h.b16 %v2778
          %v3339 = vunpack.c.l.b16 %v2779
          %v3340 = vunpack.c.h.b16 %v2779
          %v3341 = vunpack.c.l.b16 %v2780
          %v3342 = vunpack.c.h.b16 %v2780
          %v3343 = vunpack.c.l.b16 %v2781
          %v3344 = vunpack.c.h.b16 %v2781
          %v3345 = vunpack.c.l.b16 %v2782
          %v3346 = vunpack.c.h.b16 %v2782
          %v3347 = vunpack.c.l.b16 %v2783
          %v3348 = vunpack.c.h.b16 %v2783
          %v3349 = vunpack.c.l.b16 %v2784
          %v3350 = vunpack.c.h.b16 %v2784
          %v3351 = vunpack.c.l.b16 %v2785
          %v3352 = vunpack.c.h.b16 %v2785
          %v3353 = vunpack.c.l.b16 %v2786
          %v3354 = vunpack.c.h.b16 %v2786
          %v3355 = vunpack.c.l.b16 %v2787
          %v3356 = vunpack.c.h.b16 %v2787
          %v3357 = vunpack.c.l.b16 %v2788
          %v3358 = vunpack.c.h.b16 %v2788
          %v3359 = vunpack.c.l.b16 %v2789
          %v3360 = vunpack.c.h.b16 %v2789
          %v3361 = vunpack.c.l.b16 %v2790
          %v3362 = vunpack.c.h.b16 %v2790
          %v3363 = vunpack.c.l.b16 %v2791
          %v3364 = vunpack.c.h.b16 %v2791
          %v3365 = vunpack.c.l.b16 %v2792
          %v3366 = vunpack.c.h.b16 %v2792
          %v3367 = vunpack.c.l.b16 %v2793
          %v3368 = vunpack.c.h.b16 %v2793
          %v3369 = vunpack.c.l.b16 %v2794
          %v3370 = vunpack.c.h.b16 %v2794
          %v3371 = vunpack.c.l.b16 %v2795
          %v3372 = vunpack.c.h.b16 %v2795
          %v3373 = vunpack.c.l.b16 %v2796
          %v3374 = vunpack.c.h.b16 %v2796
          %v3375 = vunpack.c.l.b16 %v2797
          %v3376 = vunpack.c.h.b16 %v2797
          %v3377 = vunpack.c.l.b16 %v2798
          %v3378 = vunpack.c.h.b16 %v2798
          %v3379 = vunpack.c.l.b16 %v2799
          %v3380 = vunpack.c.h.b16 %v2799
          %v3381 = vunpack.c.l.b16 %v2800
          %v3382 = vunpack.c.h.b16 %v2800
          %v3383 = vunpack.c.l.b16 %v2801
          %v3384 = vunpack.c.h.b16 %v2801
          %v3385 = vunpack.c.l.b16 %v2802
          %v3386 = vunpack.c.h.b16 %v2802
          %v3387 = vunpack.c.l.b16 %v2803
          %v3388 = vunpack.c.h.b16 %v2803
          %v3389 = vunpack.c.l.b16 %v2804
          %v3390 = vunpack.c.h.b16 %v2804
          %v3391 = vunpack.c.l.b16 %v2805
          %v3392 = vunpack.c.h.b16 %v2805
          %v3393 = vunpack.c.l.b16 %v2806
          %v3394 = vunpack.c.h.b16 %v2806
          %v3395 = vunpack.c.l.b16 %v2807
          %v3396 = vunpack.c.h.b16 %v2807
          %v3397 = vunpack.c.l.b16 %v2808
          %v3398 = vunpack.c.h.b16 %v2808
          %v3399 = vunpack.c.l.b16 %v2809
          %v3400 = vunpack.c.h.b16 %v2809
          %v3401 = vunpack.c.l.b16 %v2810
          %v3402 = vunpack.c.h.b16 %v2810
          %v3403 = vunpack.c.l.b16 %v2811
          %v3404 = vunpack.c.h.b16 %v2811
          %v3405 = vunpack.c.l.b16 %v2812
          %v3406 = vunpack.c.h.b16 %v2812
          %v3407 = vunpack.c.l.b16 %v2813
          %v3408 = vunpack.c.h.b16 %v2813
          %v3409 = vunpack.c.l.b16 %v2814
          %v3410 = vunpack.c.h.b16 %v2814
          %v3411 = vunpack.c.l.b16 %v2815
          %v3412 = vunpack.c.h.b16 %v2815
          %v3413 = vunpack.c.l.b16 %v2816
          %v3414 = vunpack.c.h.b16 %v2816
          %v3415 = vunpack.c.l.b16 %v2817
          %v3416 = vunpack.c.h.b16 %v2817
          %v3417 = vunpack.c.l.b16 %v2818
          %v3418 = vunpack.c.h.b16 %v2818
          %v3419 = vunpack.c.l.b16 %v2819
          %v3420 = vunpack.c.h.b16 %v2819
          %v3421 = vunpack.c.l.b16 %v2820
          %v3422 = vunpack.c.h.b16 %v2820
          %v3423 = vunpack.c.l.b16 %v2821
          %v3424 = vunpack.c.h.b16 %v2821
          %v3425 = vunpack.c.l.b16 %v2822
          %v3426 = vunpack.c.h.b16 %v2822
          %v3427 = vunpack.c.l.b16 %v2823
          %v3428 = vunpack.c.h.b16 %v2823
          %v3429 = vunpack.c.l.b16 %v2824
          %v3430 = vunpack.c.h.b16 %v2824
          %v3431 = vunpack.c.l.b16 %v2825
          %v3432 = vunpack.c.h.b16 %v2825
          %v3433 = vunpack.c.l.b16 %v2826
          %v3434 = vunpack.c.h.b16 %v2826
          %v3435 = vunpack.c.l.b16 %v2827
          %v3436 = vunpack.c.h.b16 %v2827
          %v3437 = vunpack.c.l.b16 %v2828
          %v3438 = vunpack.c.h.b16 %v2828
          %v3439 = vunpack.c.l.b16 %v2829
          %v3440 = vunpack.c.h.b16 %v2829
          %v3441 = vunpack.c.l.b16 %v2830
          %v3442 = vunpack.c.h.b16 %v2830
          %v3443 = vunpack.c.l.b16 %v2831
          %v3444 = vunpack.c.h.b16 %v2831
          %v3445 = vunpack.c.l.b16 %v2832
          %v3446 = vunpack.c.h.b16 %v2832
          %v3447 = vunpack.c.l.b16 %v2833
          %v3448 = vunpack.c.h.b16 %v2833
          %v3449 = vunpack.c.l.b16 %v2834
          %v3450 = vunpack.c.h.b16 %v2834
          %v3451 = vunpack.c.l.b16 %v2835
          %v3452 = vunpack.c.h.b16 %v2835
          %v3453 = vunpack.c.l.b16 %v2836
          %v3454 = vunpack.c.h.b16 %v2836
          %v3455 = vunpack.c.l.b16 %v2837
          %v3456 = vunpack.c.h.b16 %v2837
          %v3457 = vunpack.c.l.b16 %v2838
          %v3458 = vunpack.c.h.b16 %v2838
          %v3459 = vunpack.c.l.b16 %v2839
          %v3460 = vunpack.c.h.b16 %v2839
          %v3461 = vunpack.c.l.b16 %v2840
          %v3462 = vunpack.c.h.b16 %v2840
          %v3463 = vunpack.c.l.b16 %v2841
          %v3464 = vunpack.c.h.b16 %v2841
          %v3465 = vunpack.c.l.b16 %v2842
          %v3466 = vunpack.c.h.b16 %v2842
          %v3467 = vunpack.c.l.b16 %v2843
          %v3468 = vunpack.c.h.b16 %v2843
          %v3469 = vunpack.c.l.b16 %v2844
          %v3470 = vunpack.c.h.b16 %v2844
          %v3471 = vunpack.c.l.b16 %v2845
          %v3472 = vunpack.c.h.b16 %v2845
          %v3473 = vunpack.c.l.b16 %v2846
          %v3474 = vunpack.c.h.b16 %v2846
          %v3475 = vunpack.c.l.b16 %v2847
          %v3476 = vunpack.c.h.b16 %v2847
          %v3477 = vunpack.c.l.b16 %v2848
          %v3478 = vunpack.c.h.b16 %v2848
          %v3479 = vunpack.c.l.b16 %v2849
          %v3480 = vunpack.c.h.b16 %v2849
          %v3481 = vunpack.c.l.b16 %v2850
          %v3482 = vunpack.c.h.b16 %v2850
          %v3483 = vunpack.c.l.b16 %v2851
          %v3484 = vunpack.c.h.b16 %v2851
          %v3485 = vunpack.c.l.b16 %v2852
          %v3486 = vunpack.c.h.b16 %v2852
          %v3487 = vunpack.c.l.b16 %v2853
          %v3488 = vunpack.c.h.b16 %v2853
          %v3489 = vunpack.c.l.b16 %v2854
          %v3490 = vunpack.c.h.b16 %v2854
          %v3491 = vunpack.c.l.b16 %v2855
          %v3492 = vunpack.c.h.b16 %v2855
          %v3493 = vunpack.c.l.b16 %v2856
          %v3494 = vunpack.c.h.b16 %v2856
          %v3495 = vunpack.c.l.b16 %v2857
          %v3496 = vunpack.c.h.b16 %v2857
          %v3497 = vunpack.c.l.b16 %v2858
          %v3498 = vunpack.c.h.b16 %v2858
          %v3499 = vunpack.c.l.b16 %v2859
          %v3500 = vunpack.c.h.b16 %v2859
          %v3501 = vunpack.c.l.b16 %v2860
          %v3502 = vunpack.c.h.b16 %v2860
          %v3503 = vunpack.c.l.b16 %v2861
          %v3504 = vunpack.c.h.b16 %v2861
          %v3505 = vunpack.c.l.b16 %v2862
          %v3506 = vunpack.c.h.b16 %v2862
          %v3507 = vunpack.c.l.b16 %v2863
          %v3508 = vunpack.c.h.b16 %v2863
          %v3509 = vunpack.c.l.b16 %v2864
          %v3510 = vunpack.c.h.b16 %v2864
          %v3511 = vunpack.c.l.b16 %v2865
          %v3512 = vunpack.c.h.b16 %v2865
          %v3513 = vunpack.c.l.b16 %v2866
          %v3514 = vunpack.c.h.b16 %v2866
          %v3515 = vunpack.c.l.b16 %v2867
          %v3516 = vunpack.c.h.b16 %v2867
          %v3517 = vunpack.c.l.b16 %v2868
          %v3518 = vunpack.c.h.b16 %v2868
          %v3519 = vunpack.c.l.b16 %v2869
          %v3520 = vunpack.c.h.b16 %v2869
          %v3521 = vunpack.c.l.b16 %v2870
          %v3522 = vunpack.c.h.b16 %v2870
          %v3523 = vunpack.c.l.b16 %v2871
          %v3524 = vunpack.c.h.b16 %v2871
          %v3525 = vunpack.c.l.b16 %v2872
          %v3526 = vunpack.c.h.b16 %v2872
          %v3527 = vunpack.c.l.b16 %v2873
          %v3528 = vunpack.c.h.b16 %v2873
          %v3529 = vunpack.c.l.b16 %v2874
          %v3530 = vunpack.c.h.b16 %v2874
          %v3531 = vunpack.c.l.b16 %v2875
          %v3532 = vunpack.c.h.b16 %v2875
          %v3533 = vunpack.c.l.b16 %v2876
          %v3534 = vunpack.c.h.b16 %v2876
          %v3535 = vunpack.c.l.b16 %v2877
          %v3536 = vunpack.c.h.b16 %v2877
          %v3537 = vunpack.c.l.b16 %v2878
          %v3538 = vunpack.c.h.b16 %v2878
          %v3539 = vunpack.c.l.b16 %v2879
          %v3540 = vunpack.c.h.b16 %v2879
          %v3541 = vunpack.c.l.b16 %v2880
          %v3542 = vunpack.c.h.b16 %v2880
          %v3543 = vunpack.c.l.b16 %v2881
          %v3544 = vunpack.c.h.b16 %v2881
          %v3545 = vunpack.c.l.b16 %v2882
          %v3546 = vunpack.c.h.b16 %v2882
          %v3547 = vunpack.c.l.b16 %v2883
          %v3548 = vunpack.c.h.b16 %v2883
          %v3549 = vunpack.c.l.b16 %v2884
          %v3550 = vunpack.c.h.b16 %v2884
          %v3551 = vunpack.c.l.b16 %v2885
          %v3552 = vunpack.c.h.b16 %v2885
          %v3553 = vunpack.c.l.b16 %v2886
          %v3554 = vunpack.c.h.b16 %v2886
          %v3555 = vunpack.c.l.b16 %v2887
          %v3556 = vunpack.c.h.b16 %v2887
          %v3557 = vunpack.c.l.b16 %v2888
          %v3558 = vunpack.c.h.b16 %v2888
          %v3559 = vunpack.c.l.b16 %v2889
          %v3560 = vunpack.c.h.b16 %v2889
          %v3561 = vunpack.c.l.b16 %v2890
          %v3562 = vunpack.c.h.b16 %v2890
          %v3563 = vunpack.c.l.b16 %v2891
          %v3564 = vunpack.c.h.b16 %v2891
          %v3565 = vunpack.c.l.b16 %v2892
          %v3566 = vunpack.c.h.b16 %v2892
          %v3567 = vunpack.c.l.b16 %v2893
          %v3568 = vunpack.c.h.b16 %v2893
          %v3569 = vunpack.c.l.b16 %v2894
          %v3570 = vunpack.c.h.b16 %v2894
          %v3571 = vunpack.c.l.b16 %v2895
          %v3572 = vunpack.c.h.b16 %v2895
          %v3573 = vunpack.c.l.b16 %v2896
          %v3574 = vunpack.c.h.b16 %v2896
          %v3575 = vunpack.c.l.b16 %v2897
          %v3576 = vunpack.c.h.b16 %v2897
          %v3577 = vunpack.c.l.b16 %v2898
          %v3578 = vunpack.c.h.b16 %v2898
          %v3579 = vunpack.c.l.b16 %v2899
          %v3580 = vunpack.c.h.b16 %v2899
          %v3581 = vunpack.c.l.b16 %v2900
          %v3582 = vunpack.c.h.b16 %v2900
          %v3583 = vunpack.c.l.b16 %v2901
          %v3584 = vunpack.c.h.b16 %v2901
          %v3585 = vunpack.c.l.b16 %v2902
          %v3586 = vunpack.c.h.b16 %v2902
          %v3587 = vunpack.c.l.b16 %v2903
          %v3588 = vunpack.c.h.b16 %v2903
          %v3589 = vunpack.c.l.b16 %v2904
          %v3590 = vunpack.c.h.b16 %v2904
          %v3591 = vunpack.c.l.b16 %v2905
          %v3592 = vunpack.c.h.b16 %v2905
          %v3593 = vunpack.c.l.b16 %v2906
          %v3594 = vunpack.c.h.b16 %v2906
          %v3595 = vunpack.c.l.b16 %v2907
          %v3596 = vunpack.c.h.b16 %v2907
          %v3597 = vunpack.c.l.b16 %v2908
          %v3598 = vunpack.c.h.b16 %v2908
          %v3599 = vunpack.c.l.b16 %v2909
          %v3600 = vunpack.c.h.b16 %v2909
          %v3601 = vunpack.c.l.b16 %v2910
          %v3602 = vunpack.c.h.b16 %v2910
          %v3603 = vunpack.c.l.b16 %v2911
          %v3604 = vunpack.c.h.b16 %v2911
          %v3605 = vunpack.c.l.b16 %v2912
          %v3606 = vunpack.c.h.b16 %v2912
          %v3607 = vunpack.c.l.b16 %v2913
          %v3608 = vunpack.c.h.b16 %v2913
          %v3609 = vunpack.c.l.b16 %v2914
          %v3610 = vunpack.c.h.b16 %v2914
          %v3611 = vunpack.c.l.b16 %v2915
          %v3612 = vunpack.c.h.b16 %v2915
          %v3613 = vunpack.c.l.b16 %v2916
          %v3614 = vunpack.c.h.b16 %v2916
          %v3615 = vunpack.c.l.b16 %v2917
          %v3616 = vunpack.c.h.b16 %v2917
          %v3617 = vunpack.c.l.b16 %v2918
          %v3618 = vunpack.c.h.b16 %v2918
          %v3619 = vunpack.c.l.b16 %v2919
          %v3620 = vunpack.c.h.b16 %v2919
          %v3621 = vunpack.c.l.b16 %v2920
          %v3622 = vunpack.c.h.b16 %v2920
          %v3623 = vunpack.c.l.b16 %v2921
          %v3624 = vunpack.c.h.b16 %v2921
          %v3625 = vunpack.c.l.b16 %v2922
          %v3626 = vunpack.c.h.b16 %v2922
          %v3627 = vunpack.c.l.b16 %v2923
          %v3628 = vunpack.c.h.b16 %v2923
          %v3629 = vunpack.c.l.b16 %v2924
          %v3630 = vunpack.c.h.b16 %v2924
          %v3631 = vunpack.c.l.b16 %v2925
          %v3632 = vunpack.c.h.b16 %v2925
          %v3633 = vunpack.c.l.b16 %v2926
          %v3634 = vunpack.c.h.b16 %v2926
          %v3635 = vunpack.c.l.b16 %v2927
          %v3636 = vunpack.c.h.b16 %v2927
          %v3637 = vunpack.c.l.b16 %v2928
          %v3638 = vunpack.c.h.b16 %v2928
          %v3639 = vunpack.c.l.b16 %v2929
          %v3640 = vunpack.c.h.b16 %v2929
          %v3641 = vunpack.c.l.b16 %v2930
          %v3642 = vunpack.c.h.b16 %v2930
          %v3643 = vunpack.c.l.b16 %v2931
          %v3644 = vunpack.c.h.b16 %v2931
          %v3645 = vunpack.c.l.b16 %v2932
          %v3646 = vunpack.c.h.b16 %v2932
          %v3647 = vunpack.c.l.b16 %v2933
          %v3648 = vunpack.c.h.b16 %v2933
          %v3649 = vunpack.c.l.b16 %v2934
          %v3650 = vunpack.c.h.b16 %v2934
          %v3651 = vunpack.c.l.b16 %v2935
          %v3652 = vunpack.c.h.b16 %v2935
          %v3653 = vunpack.c.l.b16 %v2936
          %v3654 = vunpack.c.h.b16 %v2936
          %v3655 = vunpack.c.l.b16 %v2937
          %v3656 = vunpack.c.h.b16 %v2937
          %v3657 = vunpack.c.l.b16 %v2938
          %v3658 = vunpack.c.h.b16 %v2938
          %v3659 = vunpack.c.l.b16 %v2939
          %v3660 = vunpack.c.h.b16 %v2939
          %v3661 = vunpack.c.l.b16 %v2940
          %v3662 = vunpack.c.h.b16 %v2940
          %v3663 = vunpack.c.l.b16 %v2941
          %v3664 = vunpack.c.h.b16 %v2941
          %v3665 = vunpack.c.l.b16 %v2942
          %v3666 = vunpack.c.h.b16 %v2942
          %v3667 = vunpack.c.l.b16 %v2943
          %v3668 = vunpack.c.h.b16 %v2943
          %v3669 = vunpack.c.l.b16 %v2944
          %v3670 = vunpack.c.h.b16 %v2944
          %v3671 = vunpack.c.l.b16 %v2945
          %v3672 = vunpack.c.h.b16 %v2945
          %v3673 = vunpack.c.l.b16 %v2946
          %v3674 = vunpack.c.h.b16 %v2946
          %v3675 = vunpack.c.l.b16 %v2947
          %v3676 = vunpack.c.h.b16 %v2947
          %v3677 = vunpack.c.l.b16 %v2948
          %v3678 = vunpack.c.h.b16 %v2948
          %v3679 = vunpack.c.l.b16 %v2949
          %v3680 = vunpack.c.h.b16 %v2949
          %v3681 = vunpack.c.l.b16 %v2950
          %v3682 = vunpack.c.h.b16 %v2950
          %v3683 = vunpack.c.l.b16 %v2951
          %v3684 = vunpack.c.h.b16 %v2951
          %v3685 = vunpack.c.l.b16 %v2952
          %v3686 = vunpack.c.h.b16 %v2952
          %v3687 = vunpack.c.l.b16 %v2953
          %v3688 = vunpack.c.h.b16 %v2953
          %v3689 = vunpack.c.l.b16 %v2954
          %v3690 = vunpack.c.h.b16 %v2954
          %v3691 = vunpack.c.l.b16 %v2955
          %v3692 = vunpack.c.h.b16 %v2955
          %v3693 = vunpack.c.l.b16 %v2956
          %v3694 = vunpack.c.h.b16 %v2956
          %v3695 = vunpack.c.l.b16 %v2957
          %v3696 = vunpack.c.h.b16 %v2957
          %v3697 = vunpack.c.l.b16 %v2958
          %v3698 = vunpack.c.h.b16 %v2958
          %v3699 = vunpack.c.l.b16 %v2959
          %v3700 = vunpack.c.h.b16 %v2959
          %v3701 = vunpack.c.l.b16 %v2960
          %v3702 = vunpack.c.h.b16 %v2960
          %v3703 = vunpack.c.l.b16 %v2961
          %v3704 = vunpack.c.h.b16 %v2961
          %v3705 = vunpack.c.l.b16 %v2962
          %v3706 = vunpack.c.h.b16 %v2962
          %v3707 = vunpack.c.l.b16 %v2963
          %v3708 = vunpack.c.h.b16 %v2963
          %v3709 = vunpack.c.l.b16 %v2964
          %v3710 = vunpack.c.h.b16 %v2964
          %v3711 = vunpack.c.l.b16 %v2965
          %v3712 = vunpack.c.h.b16 %v2965
          %v3713 = vunpack.c.l.b16 %v2966
          %v3714 = vunpack.c.h.b16 %v2966
          %v3715 = vunpack.c.l.b16 %v2967
          %v3716 = vunpack.c.h.b16 %v2967
          %v3717 = vunpack.c.l.b16 %v2968
          %v3718 = vunpack.c.h.b16 %v2968
          %v3719 = vunpack.c.l.b16 %v2969
          %v3720 = vunpack.c.h.b16 %v2969
          %v3721 = vunpack.c.l.b16 %v2970
          %v3722 = vunpack.c.h.b16 %v2970
          %v3723 = vunpack.c.l.b16 %v2971
          %v3724 = vunpack.c.h.b16 %v2971
          %v3725 = vunpack.c.l.b16 %v2972
          %v3726 = vunpack.c.h.b16 %v2972
          %v3727 = vunpack.c.l.b16 %v2973
          %v3728 = vunpack.c.h.b16 %v2973
          %v3729 = vunpack.c.l.b16 %v2974
          %v3730 = vunpack.c.h.b16 %v2974
          %v3731 = vunpack.c.l.b16 %v2975
          %v3732 = vunpack.c.h.b16 %v2975
          %v3733 = vunpack.c.l.b16 %v2976
          %v3734 = vunpack.c.h.b16 %v2976
          %v3735 = vunpack.c.l.b16 %v2977
          %v3736 = vunpack.c.h.b16 %v2977
          %v3737 = vunpack.c.l.b16 %v2978
          %v3738 = vunpack.c.h.b16 %v2978
          %v3739 = vunpack.c.l.b16 %v2979
          %v3740 = vunpack.c.h.b16 %v2979
          %v3741 = vunpack.c.l.b16 %v2980
          %v3742 = vunpack.c.h.b16 %v2980
          %v3743 = vunpack.c.l.b16 %v2981
          %v3744 = vunpack.c.h.b16 %v2981
          %v3745 = vunpack.c.l.b16 %v2982
          %v3746 = vunpack.c.h.b16 %v2982
          %v3747 = vunpack.c.l.b16 %v2983
          %v3748 = vunpack.c.h.b16 %v2983
          %v3749 = vunpack.c.l.b16 %v2984
          %v3750 = vunpack.c.h.b16 %v2984
          %v3751 = vunpack.c.l.b16 %v2985
          %v3752 = vunpack.c.h.b16 %v2985
          %v3753 = vunpack.c.l.b16 %v2986
          %v3754 = vunpack.c.h.b16 %v2986
          %v3755 = vunpack.c.l.b16 %v2987
          %v3756 = vunpack.c.h.b16 %v2987
          %v3757 = vunpack.c.l.b16 %v2988
          %v3758 = vunpack.c.h.b16 %v2988
          %v3759 = vunpack.c.l.b16 %v2989
          %v3760 = vunpack.c.h.b16 %v2989
          %v3761 = vunpack.c.l.b16 %v2990
          %v3762 = vunpack.c.h.b16 %v2990
          %v3763 = vunpack.c.l.b16 %v2991
          %v3764 = vunpack.c.h.b16 %v2991
          %v3765 = vunpack.c.l.b16 %v2992
          %v3766 = vunpack.c.h.b16 %v2992
          %v3767 = vunpack.c.l.b16 %v2993
          %v3768 = vunpack.c.h.b16 %v2993
          %v3769 = vunpack.c.l.b16 %v2994
          %v3770 = vunpack.c.h.b16 %v2994
          %v3771 = vunpack.c.l.b16 %v2995
          %v3772 = vunpack.c.h.b16 %v2995
          %v3773 = vunpack.c.l.b16 %v2996
          %v3774 = vunpack.c.h.b16 %v2996
          %v3775 = vunpack.c.l.b16 %v2997
          %v3776 = vunpack.c.h.b16 %v2997
          %v3777 = vunpack.c.l.b16 %v2998
          %v3778 = vunpack.c.h.b16 %v2998
          %v3779 = vunpack.c.l.b16 %v2999
          %v3780 = vunpack.c.h.b16 %v2999
          %v3781 = vunpack.c.l.b16 %v3000
          %v3782 = vunpack.c.h.b16 %v3000
          %v3783 = vunpack.c.l.b16 %v3001
          %v3784 = vunpack.c.h.b16 %v3001
          %v3785 = vunpack.c.l.b16 %v3002
          %v3786 = vunpack.c.h.b16 %v3002
          %v3787 = vunpack.c.l.b16 %v3003
          %v3788 = vunpack.c.h.b16 %v3003
          %v3789 = vunpack.c.l.b16 %v3004
          %v3790 = vunpack.c.h.b16 %v3004
          %v3791 = vunpack.c.l.b16 %v3005
          %v3792 = vunpack.c.h.b16 %v3005
          %v3793 = vunpack.c.l.b16 %v3006
          %v3794 = vunpack.c.h.b16 %v3006
          %v3795 = vunpack.c.l.b16 %v3007
          %v3796 = vunpack.c.h.b16 %v3007
          %v3797 = vunpack.c.l.b16 %v3008
          %v3798 = vunpack.c.h.b16 %v3008
          %v3799 = vpack.c.b16 %v3291, %v3287
          %v3800 = vpack.c.b16 %v3292, %v3288
          %v3801 = vpack.c.b16 %v3293, %v3289
          %v3802 = vpack.c.b16 %v3294, %v3290
          %v3803 = vpack.c.b16 %v3299, %v3295
          %v3804 = vpack.c.b16 %v3300, %v3296
          %v3805 = vpack.c.b16 %v3301, %v3297
          %v3806 = vpack.c.b16 %v3302, %v3298
          %v3807 = vpack.c.b16 %v3307, %v3303
          %v3808 = vpack.c.b16 %v3308, %v3304
          %v3809 = vpack.c.b16 %v3309, %v3305
          %v3810 = vpack.c.b16 %v3310, %v3306
          %v3811 = vpack.c.b16 %v3315, %v3311
          %v3812 = vpack.c.b16 %v3316, %v3312
          %v3813 = vpack.c.b16 %v3317, %v3313
          %v3814 = vpack.c.b16 %v3318, %v3314
          %v3815 = vpack.c.b16 %v3323, %v3319
          %v3816 = vpack.c.b16 %v3324, %v3320
          %v3817 = vpack.c.b16 %v3325, %v3321
          %v3818 = vpack.c.b16 %v3326, %v3322
          %v3819 = vpack.c.b16 %v3331, %v3327
          %v3820 = vpack.c.b16 %v3332, %v3328
          %v3821 = vpack.c.b16 %v3333, %v3329
          %v3822 = vpack.c.b16 %v3334, %v3330
          %v3823 = vpack.c.b16 %v3339, %v3335
          %v3824 = vpack.c.b16 %v3340, %v3336
          %v3825 = vpack.c.b16 %v3341, %v3337
          %v3826 = vpack.c.b16 %v3342, %v3338
          %v3827 = vpack.c.b16 %v3347, %v3343
          %v3828 = vpack.c.b16 %v3348, %v3344
          %v3829 = vpack.c.b16 %v3349, %v3345
          %v3830 = vpack.c.b16 %v3350, %v3346
          %v3831 = vpack.c.b16 %v3355, %v3351
          %v3832 = vpack.c.b16 %v3356, %v3352
          %v3833 = vpack.c.b16 %v3357, %v3353
          %v3834 = vpack.c.b16 %v3358, %v3354
          %v3835 = vpack.c.b16 %v3363, %v3359
          %v3836 = vpack.c.b16 %v3364, %v3360
          %v3837 = vpack.c.b16 %v3365, %v3361
          %v3838 = vpack.c.b16 %v3366, %v3362
          %v3839 = vpack.c.b16 %v3371, %v3367
          %v3840 = vpack.c.b16 %v3372, %v3368
          %v3841 = vpack.c.b16 %v3373, %v3369
          %v3842 = vpack.c.b16 %v3374, %v3370
          %v3843 = vpack.c.b16 %v3379, %v3375
          %v3844 = vpack.c.b16 %v3380, %v3376
          %v3845 = vpack.c.b16 %v3381, %v3377
          %v3846 = vpack.c.b16 %v3382, %v3378
          %v3847 = vpack.c.b16 %v3387, %v3383
          %v3848 = vpack.c.b16 %v3388, %v3384
          %v3849 = vpack.c.b16 %v3389, %v3385
          %v3850 = vpack.c.b16 %v3390, %v3386
          %v3851 = vpack.c.b16 %v3395, %v3391
          %v3852 = vpack.c.b16 %v3396, %v3392
          %v3853 = vpack.c.b16 %v3397, %v3393
          %v3854 = vpack.c.b16 %v3398, %v3394
          %v3855 = vpack.c.b16 %v3403, %v3399
          %v3856 = vpack.c.b16 %v3404, %v3400
          %v3857 = vpack.c.b16 %v3405, %v3401
          %v3858 = vpack.c.b16 %v3406, %v3402
          %v3859 = vpack.c.b16 %v3411, %v3407
          %v3860 = vpack.c.b16 %v3412, %v3408
          %v3861 = vpack.c.b16 %v3413, %v3409
          %v3862 = vpack.c.b16 %v3414, %v3410
          %v3863 = vpack.c.b16 %v3419, %v3415
          %v3864 = vpack.c.b16 %v3420, %v3416
          %v3865 = vpack.c.b16 %v3421, %v3417
          %v3866 = vpack.c.b16 %v3422, %v3418
          %v3867 = vpack.c.b16 %v3427, %v3423
          %v3868 = vpack.c.b16 %v3428, %v3424
          %v3869 = vpack.c.b16 %v3429, %v3425
          %v3870 = vpack.c.b16 %v3430, %v3426
          %v3871 = vpack.c.b16 %v3435, %v3431
          %v3872 = vpack.c.b16 %v3436, %v3432
          %v3873 = vpack.c.b16 %v3437, %v3433
          %v3874 = vpack.c.b16 %v3438, %v3434
          %v3875 = vpack.c.b16 %v3443, %v3439
          %v3876 = vpack.c.b16 %v3444, %v3440
          %v3877 = vpack.c.b16 %v3445, %v3441
          %v3878 = vpack.c.b16 %v3446, %v3442
          %v3879 = vpack.c.b16 %v3451, %v3447
          %v3880 = vpack.c.b16 %v3452, %v3448
          %v3881 = vpack.c.b16 %v3453, %v3449
          %v3882 = vpack.c.b16 %v3454, %v3450
          %v3883 = vpack.c.b16 %v3459, %v3455
          %v3884 = vpack.c.b16 %v3460, %v3456
          %v3885 = vpack.c.b16 %v3461, %v3457
          %v3886 = vpack.c.b16 %v3462, %v3458
          %v3887 = vpack.c.b16 %v3467, %v3463
          %v3888 = vpack.c.b16 %v3468, %v3464
          %v3889 = vpack.c.b16 %v3469, %v3465
          %v3890 = vpack.c.b16 %v3470, %v3466
          %v3891 = vpack.c.b16 %v3475, %v3471
          %v3892 = vpack.c.b16 %v3476, %v3472
          %v3893 = vpack.c.b16 %v3477, %v3473
          %v3894 = vpack.c.b16 %v3478, %v3474
          %v3895 = vpack.c.b16 %v3483, %v3479
          %v3896 = vpack.c.b16 %v3484, %v3480
          %v3897 = vpack.c.b16 %v3485, %v3481
          %v3898 = vpack.c.b16 %v3486, %v3482
          %v3899 = vpack.c.b16 %v3491, %v3487
          %v3900 = vpack.c.b16 %v3492, %v3488
          %v3901 = vpack.c.b16 %v3493, %v3489
          %v3902 = vpack.c.b16 %v3494, %v3490
          %v3903 = vpack.c.b16 %v3499, %v3495
          %v3904 = vpack.c.b16 %v3500, %v3496
          %v3905 = vpack.c.b16 %v3501, %v3497
          %v3906 = vpack.c.b16 %v3502, %v3498
          %v3907 = vpack.c.b16 %v3507, %v3503
          %v3908 = vpack.c.b16 %v3508, %v3504
          %v3909 = vpack.c.b16 %v3509, %v3505
          %v3910 = vpack.c.b16 %v3510, %v3506
          %v3911 = vpack.c.b16 %v3515, %v3511
          %v3912 = vpack.c.b16 %v3516, %v3512
          %v3913 = vpack.c.b16 %v3517, %v3513
          %v3914 = vpack.c.b16 %v3518, %v3514
          %v3915 = vpack.c.b16 %v3523, %v3519
          %v3916 = vpack.c.b16 %v3524, %v3520
          %v3917 = vpack.c.b16 %v3525, %v3521
          %v3918 = vpack.c.b16 %v3526, %v3522
          %v3919 = vpack.c.b16 %v3531, %v3527
          %v3920 = vpack.c.b16 %v3532, %v3528
          %v3921 = vpack.c.b16 %v3533, %v3529
          %v3922 = vpack.c.b16 %v3534, %v3530
          %v3923 = vpack.c.b16 %v3539, %v3535
          %v3924 = vpack.c.b16 %v3540, %v3536
          %v3925 = vpack.c.b16 %v3541, %v3537
          %v3926 = vpack.c.b16 %v3542, %v3538
          %v3927 = vpack.c.b16 %v3547, %v3543
          %v3928 = vpack.c.b16 %v3548, %v3544
          %v3929 = vpack.c.b16 %v3549, %v3545
          %v3930 = vpack.c.b16 %v3550, %v3546
          %v3931 = vpack.c.b16 %v3555, %v3551
          %v3932 = vpack.c.b16 %v3556, %v3552
          %v3933 = vpack.c.b16 %v3557, %v3553
          %v3934 = vpack.c.b16 %v3558, %v3554
          %v3935 = vpack.c.b16 %v3563, %v3559
          %v3936 = vpack.c.b16 %v3564, %v3560
          %v3937 = vpack.c.b16 %v3565, %v3561
          %v3938 = vpack.c.b16 %v3566, %v3562
          %v3939 = vpack.c.b16 %v3571, %v3567
          %v3940 = vpack.c.b16 %v3572, %v3568
          %v3941 = vpack.c.b16 %v3573, %v3569
          %v3942 = vpack.c.b16 %v3574, %v3570
          %v3943 = vpack.c.b16 %v3579, %v3575
          %v3944 = vpack.c.b16 %v3580, %v3576
          %v3945 = vpack.c.b16 %v3581, %v3577
          %v3946 = vpack.c.b16 %v3582, %v3578
          %v3947 = vpack.c.b16 %v3587, %v3583
          %v3948 = vpack.c.b16 %v3588, %v3584
          %v3949 = vpack.c.b16 %v3589, %v3585
          %v3950 = vpack.c.b16 %v3590, %v3586
          %v3951 = vpack.c.b16 %v3595, %v3591
          %v3952 = vpack.c.b16 %v3596, %v3592
          %v3953 = vpack.c.b16 %v3597, %v3593
          %v3954 = vpack.c.b16 %v3598, %v3594
          %v3955 = vpack.c.b16 %v3603, %v3599
          %v3956 = vpack.c.b16 %v3604, %v3600
          %v3957 = vpack.c.b16 %v3605, %v3601
          %v3958 = vpack.c.b16 %v3606, %v3602
          %v3959 = vpack.c.b16 %v3611, %v3607
          %v3960 = vpack.c.b16 %v3612, %v3608
          %v3961 = vpack.c.b16 %v3613, %v3609
          %v3962 = vpack.c.b16 %v3614, %v3610
          %v3963 = vpack.c.b16 %v3619, %v3615
          %v3964 = vpack.c.b16 %v3620, %v3616
          %v3965 = vpack.c.b16 %v3621, %v3617
          %v3966 = vpack.c.b16 %v3622, %v3618
          %v3967 = vpack.c.b16 %v3627, %v3623
          %v3968 = vpack.c.b16 %v3628, %v3624
          %v3969 = vpack.c.b16 %v3629, %v3625
          %v3970 = vpack.c.b16 %v3630, %v3626
          %v3971 = vpack.c.b16 %v3635, %v3631
          %v3972 = vpack.c.b16 %v3636, %v3632
          %v3973 = vpack.c.b16 %v3637, %v3633
          %v3974 = vpack.c.b16 %v3638, %v3634
          %v3975 = vpack.c.b16 %v3643, %v3639
          %v3976 = vpack.c.b16 %v3644, %v3640
          %v3977 = vpack.c.b16 %v3645, %v3641
          %v3978 = vpack.c.b16 %v3646, %v3642
          %v3979 = vpack.c.b16 %v3651, %v3647
          %v3980 = vpack.c.b16 %v3652, %v3648
          %v3981 = vpack.c.b16 %v3653, %v3649
          %v3982 = vpack.c.b16 %v3654, %v3650
          %v3983 = vpack.c.b16 %v3659, %v3655
          %v3984 = vpack.c.b16 %v3660, %v3656
          %v3985 = vpack.c.b16 %v3661, %v3657
          %v3986 = vpack.c.b16 %v3662, %v3658
          %v3987 = vpack.c.b16 %v3667, %v3663
          %v3988 = vpack.c.b16 %v3668, %v3664
          %v3989 = vpack.c.b16 %v3669, %v3665
          %v3990 = vpack.c.b16 %v3670, %v3666
          %v3991 = vpack.c.b16 %v3675, %v3671
          %v3992 = vpack.c.b16 %v3676, %v3672
          %v3993 = vpack.c.b16 %v3677, %v3673
          %v3994 = vpack.c.b16 %v3678, %v3674
          %v3995 = vpack.c.b16 %v3683, %v3679
          %v3996 = vpack.c.b16 %v3684, %v3680
          %v3997 = vpack.c.b16 %v3685, %v3681
          %v3998 = vpack.c.b16 %v3686, %v3682
          %v3999 = vpack.c.b16 %v3691, %v3687
          %v4000 = vpack.c.b16 %v3692, %v3688
          %v4001 = vpack.c.b16 %v3693, %v3689
          %v4002 = vpack.c.b16 %v3694, %v3690
          %v4003 = vpack.c.b16 %v3699, %v3695
          %v4004 = vpack.c.b16 %v3700, %v3696
          %v4005 = vpack.c.b16 %v3701, %v3697
          %v4006 = vpack.c.b16 %v3702, %v3698
          %v4007 = vpack.c.b16 %v3707, %v3703
          %v4008 = vpack.c.b16 %v3708, %v3704
          %v4009 = vpack.c.b16 %v3709, %v3705
          %v4010 = vpack.c.b16 %v3710, %v3706
          %v4011 = vpack.c.b16 %v3715, %v3711
          %v4012 = vpack.c.b16 %v3716, %v3712
          %v4013 = vpack.c.b16 %v3717, %v3713
          %v4014 = vpack.c.b16 %v3718, %v3714
          %v4015 = vpack.c.b16 %v3723, %v3719
          %v4016 = vpack.c.b16 %v3724, %v3720
          %v4017 = vpack.c.b16 %v3725, %v3721
          %v4018 = vpack.c.b16 %v3726, %v3722
          %v4019 = vpack.c.b16 %v3731, %v3727
          %v4020 = vpack.c.b16 %v3732, %v3728
          %v4021 = vpack.c.b16 %v3733, %v3729
          %v4022 = vpack.c.b16 %v3734, %v3730
          %v4023 = vpack.c.b16 %v3739, %v3735
          %v4024 = vpack.c.b16 %v3740, %v3736
          %v4025 = vpack.c.b16 %v3741, %v3737
          %v4026 = vpack.c.b16 %v3742, %v3738
          %v4027 = vpack.c.b16 %v3747, %v3743
          %v4028 = vpack.c.b16 %v3748, %v3744
          %v4029 = vpack.c.b16 %v3749, %v3745
          %v4030 = vpack.c.b16 %v3750, %v3746
          %v4031 = vpack.c.b16 %v3755, %v3751
          %v4032 = vpack.c.b16 %v3756, %v3752
          %v4033 = vpack.c.b16 %v3757, %v3753
          %v4034 = vpack.c.b16 %v3758, %v3754
          %v4035 = vpack.c.b16 %v3763, %v3759
          %v4036 = vpack.c.b16 %v3764, %v3760
          %v4037 = vpack.c.b16 %v3765, %v3761
          %v4038 = vpack.c.b16 %v3766, %v3762
          %v4039 = vpack.c.b16 %v3771, %v3767
          %v4040 = vpack.c.b16 %v3772, %v3768
          %v4041 = vpack.c.b16 %v3773, %v3769
          %v4042 = vpack.c.b16 %v3774, %v3770
          %v4043 = vpack.c.b16 %v3779, %v3775
          %v4044 = vpack.c.b16 %v3780, %v3776
          %v4045 = vpack.c.b16 %v3781, %v3777
          %v4046 = vpack.c.b16 %v3782, %v3778
          %v4047 = vpack.c.b16 %v3787, %v3783
          %v4048 = vpack.c.b16 %v3788, %v3784
          %v4049 = vpack.c.b16 %v3789, %v3785
          %v4050 = vpack.c.b16 %v3790, %v3786
          %v4051 = vpack.c.b16 %v3795, %v3791
          %v4052 = vpack.c.b16 %v3796, %v3792
          %v4053 = vpack.c.b16 %v3797, %v3793
          %v4054 = vpack.c.b16 %v3798, %v3794
          %4311 = vmatprep.subr.bf16.mxu0 %v3800
          %4312 = vmatpush1.bf16.msra.mxu0 %v3799
          %4313 = vmatprep.subr.bf16.mxu0 %v3804
          %4314 = vmatpush1.bf16.msra.mxu0 %v3803
          %4315 = vmatprep.subr.bf16.mxu0 %v3808
          %4316 = vmatpush1.bf16.msra.mxu0 %v3807
          %4317 = vmatprep.subr.bf16.mxu0 %v3812
          %4318 = vmatpush1.bf16.msra.mxu0 %v3811
          %4319 = vmatprep.subr.bf16.mxu0 %v3816
          %4320 = vmatpush1.bf16.msra.mxu0 %v3815
          %4321 = vmatprep.subr.bf16.mxu0 %v3820
          %4322 = vmatpush1.bf16.msra.mxu0 %v3819
          %4323 = vmatprep.subr.bf16.mxu0 %v3824
          %4324 = vmatpush1.bf16.msra.mxu0 %v3823
          %4325 = vmatprep.subr.bf16.mxu0 %v3828
          %4326 = vmatpush1.bf16.msra.mxu0 %v3827
          %4327 = vmatprep.subr.bf16.mxu0 %v3832
          %4328 = vmatpush1.bf16.msra.mxu0 %v3831
          %4329 = vmatprep.subr.bf16.mxu0 %v3836
          %4330 = vmatpush1.bf16.msra.mxu0 %v3835
          %4331 = vmatprep.subr.bf16.mxu0 %v3840
          %4332 = vmatpush1.bf16.msra.mxu0 %v3839
          %4333 = vmatprep.subr.bf16.mxu0 %v3844
          %4334 = vmatpush1.bf16.msra.mxu0 %v3843
          %4335 = vmatprep.subr.bf16.mxu0 %v3848
          %4336 = vmatpush1.bf16.msra.mxu0 %v3847
          %4337 = vmatprep.subr.bf16.mxu0 %v3852
          %4338 = vmatpush1.bf16.msra.mxu0 %v3851
          %4339 = vmatprep.subr.bf16.mxu0 %v3856
          %4340 = vmatpush1.bf16.msra.mxu0 %v3855
          %4341 = vmatprep.subr.bf16.mxu0 %v3860
          %4342 = vmatpush1.bf16.msra.mxu0 %v3859
          %4343 = vmatprep.mubr.bf16.mxu0 %v2746
          %4344 = vmatmul.mubr.bf16.gmra.mrb[0].mxu0 %v2745
          %v4345 = vpop.f32.mrb[0].mxu0
          %v4346 = vadd.f32 %v3014, %v4345
          %v4347 = vpop.f32.mrb[0].mxu0
          %v4348 = vadd.f32 %v3018, %v4347
          %v4349 = vpop.f32.mrb[0].mxu0
          %v4350 = vpop.f32.mrb[0].mxu0
          %4351 = vdwg.mxu0
          %4352 = vmatprep.subr.bf16.mxu0 %v3864
          %4353 = vmatpush1.bf16.msra.mxu0 %v3863
          %4354 = vmatprep.subr.bf16.mxu0 %v3868
          %4355 = vmatpush1.bf16.msra.mxu0 %v3867
          %4356 = vmatprep.subr.bf16.mxu0 %v3872
          %4357 = vmatpush1.bf16.msra.mxu0 %v3871
          %4358 = vmatprep.subr.bf16.mxu0 %v3876
          %4359 = vmatpush1.bf16.msra.mxu0 %v3875
          %4360 = vmatprep.subr.bf16.mxu0 %v3880
          %4361 = vmatpush1.bf16.msra.mxu0 %v3879
          %4362 = vmatprep.subr.bf16.mxu0 %v3884
          %4363 = vmatpush1.bf16.msra.mxu0 %v3883
          %4364 = vmatprep.subr.bf16.mxu0 %v3888
          %4365 = vmatpush1.bf16.msra.mxu0 %v3887
          %4366 = vmatprep.subr.bf16.mxu0 %v3892
          %4367 = vmatpush1.bf16.msra.mxu0 %v3891
          %4368 = vmatprep.subr.bf16.mxu0 %v3896
          %4369 = vmatpush1.bf16.msra.mxu0 %v3895
          %4370 = vmatprep.subr.bf16.mxu0 %v3900
          %4371 = vmatpush1.bf16.msra.mxu0 %v3899
          %4372 = vmatprep.subr.bf16.mxu0 %v3904
          %4373 = vmatpush1.bf16.msra.mxu0 %v3903
          %4374 = vmatprep.subr.bf16.mxu0 %v3908
          %4375 = vmatpush1.bf16.msra.mxu0 %v3907
          %4376 = vmatprep.subr.bf16.mxu0 %v3912
          %4377 = vmatpush1.bf16.msra.mxu0 %v3911
          %4378 = vmatprep.subr.bf16.mxu0 %v3916
          %4379 = vmatpush1.bf16.msra.mxu0 %v3915
          %4380 = vmatprep.subr.bf16.mxu0 %v3920
          %4381 = vmatpush1.bf16.msra.mxu0 %v3919
          %4382 = vmatprep.subr.bf16.mxu0 %v3924
          %4383 = vmatpush1.bf16.msra.mxu0 %v3923
          %4384 = vmatprep.mubr.bf16.mxu0 %v2748
          %4385 = vmatmul.mubr.bf16.gmra.mrb[0].mxu0 %v2747
          %v4386 = vpop.f32.mrb[0].mxu0
          %v4387 = vadd.f32 %v4346, %v4386
          %v4388 = vpop.f32.mrb[0].mxu0
          %v4389 = vadd.f32 %v4348, %v4388
          %v4390 = vpop.f32.mrb[0].mxu0
          %v4391 = vpop.f32.mrb[0].mxu0
          %4392 = vdwg.mxu0
          %4393 = vmatprep.subr.bf16.mxu0 %v3928
          %4394 = vmatpush1.bf16.msra.mxu0 %v3927
          %4395 = vmatprep.subr.bf16.mxu0 %v3932
          %4396 = vmatpush1.bf16.msra.mxu0 %v3931
          %4397 = vmatprep.subr.bf16.mxu0 %v3936
          %4398 = vmatpush1.bf16.msra.mxu0 %v3935
          %4399 = vmatprep.subr.bf16.mxu0 %v3940
          %4400 = vmatpush1.bf16.msra.mxu0 %v3939
          %4401 = vmatprep.subr.bf16.mxu0 %v3944
          %4402 = vmatpush1.bf16.msra.mxu0 %v3943
          %4403 = vmatprep.subr.bf16.mxu0 %v3948
          %4404 = vmatpush1.bf16.msra.mxu0 %v3947
          %4405 = vmatprep.subr.bf16.mxu0 %v3952
          %4406 = vmatpush1.bf16.msra.mxu0 %v3951
          %4407 = vmatprep.subr.bf16.mxu0 %v3956
          %4408 = vmatpush1.bf16.msra.mxu0 %v3955
          %4409 = vmatprep.subr.bf16.mxu0 %v3960
          %4410 = vmatpush1.bf16.msra.mxu0 %v3959
          %4411 = vmatprep.subr.bf16.mxu0 %v3964
          %4412 = vmatpush1.bf16.msra.mxu0 %v3963
          %4413 = vmatprep.subr.bf16.mxu0 %v3968
          %4414 = vmatpush1.bf16.msra.mxu0 %v3967
          %4415 = vmatprep.subr.bf16.mxu0 %v3972
          %4416 = vmatpush1.bf16.msra.mxu0 %v3971
          %4417 = vmatprep.subr.bf16.mxu0 %v3976
          %4418 = vmatpush1.bf16.msra.mxu0 %v3975
          %4419 = vmatprep.subr.bf16.mxu0 %v3980
          %4420 = vmatpush1.bf16.msra.mxu0 %v3979
          %4421 = vmatprep.subr.bf16.mxu0 %v3984
          %4422 = vmatpush1.bf16.msra.mxu0 %v3983
          %4423 = vmatprep.subr.bf16.mxu0 %v3988
          %4424 = vmatpush1.bf16.msra.mxu0 %v3987
          %4425 = vmatprep.mubr.bf16.mxu0 %v2750
          %4426 = vmatmul.mubr.bf16.gmra.mrb[0].mxu0 %v2749
          %v4427 = vpop.f32.mrb[0].mxu0
          %v4428 = vadd.f32 %v4387, %v4427
          %v4429 = vpop.f32.mrb[0].mxu0
          %v4430 = vadd.f32 %v4389, %v4429
          %v4431 = vpop.f32.mrb[0].mxu0
          %v4432 = vpop.f32.mrb[0].mxu0
          %4433 = vdwg.mxu0
          %4434 = vmatprep.subr.bf16.mxu0 %v3992
          %4435 = vmatpush1.bf16.msra.mxu0 %v3991
          %4436 = vmatprep.subr.bf16.mxu0 %v3996
          %4437 = vmatpush1.bf16.msra.mxu0 %v3995
          %4438 = vmatprep.subr.bf16.mxu0 %v4000
          %4439 = vmatpush1.bf16.msra.mxu0 %v3999
          %4440 = vmatprep.subr.bf16.mxu0 %v4004
          %4441 = vmatpush1.bf16.msra.mxu0 %v4003
          %4442 = vmatprep.subr.bf16.mxu0 %v4008
          %4443 = vmatpush1.bf16.msra.mxu0 %v4007
          %4444 = vmatprep.subr.bf16.mxu0 %v4012
          %4445 = vmatpush1.bf16.msra.mxu0 %v4011
          %4446 = vmatprep.subr.bf16.mxu0 %v4016
          %4447 = vmatpush1.bf16.msra.mxu0 %v4015
          %4448 = vmatprep.subr.bf16.mxu0 %v4020
          %4449 = vmatpush1.bf16.msra.mxu0 %v4019
          %4450 = vmatprep.subr.bf16.mxu0 %v4024
          %4451 = vmatpush1.bf16.msra.mxu0 %v4023
          %4452 = vmatprep.subr.bf16.mxu0 %v4028
          %4453 = vmatpush1.bf16.msra.mxu0 %v4027
          %4454 = vmatprep.subr.bf16.mxu0 %v4032
          %4455 = vmatpush1.bf16.msra.mxu0 %v4031
          %4456 = vmatprep.subr.bf16.mxu0 %v4036
          %4457 = vmatpush1.bf16.msra.mxu0 %v4035
          %4458 = vmatprep.subr.bf16.mxu0 %v4040
          %4459 = vmatpush1.bf16.msra.mxu0 %v4039
          %4460 = vmatprep.subr.bf16.mxu0 %v4044
          %4461 = vmatpush1.bf16.msra.mxu0 %v4043
          %4462 = vmatprep.subr.bf16.mxu0 %v4048
          %4463 = vmatpush1.bf16.msra.mxu0 %v4047
          %4464 = vmatprep.subr.bf16.mxu0 %v4052
          %4465 = vmatpush1.bf16.msra.mxu0 %v4051
          %4466 = vmatprep.mubr.bf16.mxu0 %v2752
          %4467 = vmatmul.mubr.bf16.gmra.mrb[0].mxu0 %v2751
          %v4468 = vpop.f32.mrb[0].mxu0
          %v4469 = vadd.f32 %v4428, %v4468
          %v4470 = vpop.f32.mrb[0].mxu0
          %v4471 = vadd.f32 %v4430, %v4470
          %v4472 = vpop.f32.mrb[0].mxu0
          %v4473 = vpop.f32.mrb[0].mxu0
          %4474 = vdwg.mxu0
          %4475 = vmatprep.subr.bf16.mxu0 %v3802
          %4476 = vmatpush1.bf16.msra.mxu0 %v3801
          %4477 = vmatprep.subr.bf16.mxu0 %v3806
          %4478 = vmatpush1.bf16.msra.mxu0 %v3805
          %4479 = vmatprep.subr.bf16.mxu0 %v3810
          %4480 = vmatpush1.bf16.msra.mxu0 %v3809
          %4481 = vmatprep.subr.bf16.mxu0 %v3814
          %4482 = vmatpush1.bf16.msra.mxu0 %v3813
          %4483 = vmatprep.subr.bf16.mxu0 %v3818
          %4484 = vmatpush1.bf16.msra.mxu0 %v3817
          %4485 = vmatprep.subr.bf16.mxu0 %v3822
          %4486 = vmatpush1.bf16.msra.mxu0 %v3821
          %4487 = vmatprep.subr.bf16.mxu0 %v3826
          %4488 = vmatpush1.bf16.msra.mxu0 %v3825
          %4489 = vmatprep.subr.bf16.mxu0 %v3830
          %4490 = vmatpush1.bf16.msra.mxu0 %v3829
          %4491 = vmatprep.subr.bf16.mxu0 %v3834
          %4492 = vmatpush1.bf16.msra.mxu0 %v3833
          %4493 = vmatprep.subr.bf16.mxu0 %v3838
          %4494 = vmatpush1.bf16.msra.mxu0 %v3837
          %4495 = vmatprep.subr.bf16.mxu0 %v3842
          %4496 = vmatpush1.bf16.msra.mxu0 %v3841
          %4497 = vmatprep.subr.bf16.mxu0 %v3846
          %4498 = vmatpush1.bf16.msra.mxu0 %v3845
          %4499 = vmatprep.subr.bf16.mxu0 %v3850
          %4500 = vmatpush1.bf16.msra.mxu0 %v3849
          %4501 = vmatprep.subr.bf16.mxu0 %v3854
          %4502 = vmatpush1.bf16.msra.mxu0 %v3853
          %4503 = vmatprep.subr.bf16.mxu0 %v3858
          %4504 = vmatpush1.bf16.msra.mxu0 %v3857
          %4505 = vmatprep.subr.bf16.mxu0 %v3862
          %4506 = vmatpush1.bf16.msra.mxu0 %v3861
          %4507 = vmatprep.mubr.bf16.mxu0 %v2746
          %4508 = vmatmul.mubr.bf16.gmra.mrb[0].mxu0 %v2745
          %v4509 = vpop.f32.mrb[0].mxu0
          %v4510 = vadd.f32 %v3022, %v4509
          %v4511 = vpop.f32.mrb[0].mxu0
          %v4512 = vadd.f32 %v3026, %v4511
          %v4513 = vpop.f32.mrb[0].mxu0
          %v4514 = vpop.f32.mrb[0].mxu0
          %4515 = vdwg.mxu0
          %4516 = vmatprep.subr.bf16.mxu0 %v3866
          %4517 = vmatpush1.bf16.msra.mxu0 %v3865
          %4518 = vmatprep.subr.bf16.mxu0 %v3870
          %4519 = vmatpush1.bf16.msra.mxu0 %v3869
          %4520 = vmatprep.subr.bf16.mxu0 %v3874
          %4521 = vmatpush1.bf16.msra.mxu0 %v3873
          %4522 = vmatprep.subr.bf16.mxu0 %v3878
          %4523 = vmatpush1.bf16.msra.mxu0 %v3877
          %4524 = vmatprep.subr.bf16.mxu0 %v3882
          %4525 = vmatpush1.bf16.msra.mxu0 %v3881
          %4526 = vmatprep.subr.bf16.mxu0 %v3886
          %4527 = vmatpush1.bf16.msra.mxu0 %v3885
          %4528 = vmatprep.subr.bf16.mxu0 %v3890
          %4529 = vmatpush1.bf16.msra.mxu0 %v3889
          %4530 = vmatprep.subr.bf16.mxu0 %v3894
          %4531 = vmatpush1.bf16.msra.mxu0 %v3893
          %4532 = vmatprep.subr.bf16.mxu0 %v3898
          %4533 = vmatpush1.bf16.msra.mxu0 %v3897
          %4534 = vmatprep.subr.bf16.mxu0 %v3902
          %4535 = vmatpush1.bf16.msra.mxu0 %v3901
          %4536 = vmatprep.subr.bf16.mxu0 %v3906
          %4537 = vmatpush1.bf16.msra.mxu0 %v3905
          %4538 = vmatprep.subr.bf16.mxu0 %v3910
          %4539 = vmatpush1.bf16.msra.mxu0 %v3909
          %4540 = vmatprep.subr.bf16.mxu0 %v3914
          %4541 = vmatpush1.bf16.msra.mxu0 %v3913
          %4542 = vmatprep.subr.bf16.mxu0 %v3918
          %4543 = vmatpush1.bf16.msra.mxu0 %v3917
          %4544 = vmatprep.subr.bf16.mxu0 %v3922
          %4545 = vmatpush1.bf16.msra.mxu0 %v3921
          %4546 = vmatprep.subr.bf16.mxu0 %v3926
          %4547 = vmatpush1.bf16.msra.mxu0 %v3925
          %4548 = vmatprep.mubr.bf16.mxu0 %v2748
          %4549 = vmatmul.mubr.bf16.gmra.mrb[0].mxu0 %v2747
          %v4550 = vpop.f32.mrb[0].mxu0
          %v4551 = vadd.f32 %v4510, %v4550
          %v4552 = vpop.f32.mrb[0].mxu0
          %v4553 = vadd.f32 %v4512, %v4552
          %v4554 = vpop.f32.mrb[0].mxu0
          %v4555 = vpop.f32.mrb[0].mxu0
          %4556 = vdwg.mxu0
          %4557 = vmatprep.subr.bf16.mxu0 %v3930
          %4558 = vmatpush1.bf16.msra.mxu0 %v3929
          %4559 = vmatprep.subr.bf16.mxu0 %v3934
          %4560 = vmatpush1.bf16.msra.mxu0 %v3933
          %4561 = vmatprep.subr.bf16.mxu0 %v3938
          %4562 = vmatpush1.bf16.msra.mxu0 %v3937
          %4563 = vmatprep.subr.bf16.mxu0 %v3942
          %4564 = vmatpush1.bf16.msra.mxu0 %v3941
          %4565 = vmatprep.subr.bf16.mxu0 %v3946
          %4566 = vmatpush1.bf16.msra.mxu0 %v3945
          %4567 = vmatprep.subr.bf16.mxu0 %v3950
          %4568 = vmatpush1.bf16.msra.mxu0 %v3949
          %4569 = vmatprep.subr.bf16.mxu0 %v3954
          %4570 = vmatpush1.bf16.msra.mxu0 %v3953
          %4571 = vmatprep.subr.bf16.mxu0 %v3958
          %4572 = vmatpush1.bf16.msra.mxu0 %v3957
          %4573 = vmatprep.subr.bf16.mxu0 %v3962
          %4574 = vmatpush1.bf16.msra.mxu0 %v3961
          %4575 = vmatprep.subr.bf16.mxu0 %v3966
          %4576 = vmatpush1.bf16.msra.mxu0 %v3965
          %4577 = vmatprep.subr.bf16.mxu0 %v3970
          %4578 = vmatpush1.bf16.msra.mxu0 %v3969
          %4579 = vmatprep.subr.bf16.mxu0 %v3974
          %4580 = vmatpush1.bf16.msra.mxu0 %v3973
          %4581 = vmatprep.subr.bf16.mxu0 %v3978
          %4582 = vmatpush1.bf16.msra.mxu0 %v3977
          %4583 = vmatprep.subr.bf16.mxu0 %v3982
          %4584 = vmatpush1.bf16.msra.mxu0 %v3981
          %4585 = vmatprep.subr.bf16.mxu0 %v3986
          %4586 = vmatpush1.bf16.msra.mxu0 %v3985
          %4587 = vmatprep.subr.bf16.mxu0 %v3990
          %4588 = vmatpush1.bf16.msra.mxu0 %v3989
          %4589 = vmatprep.mubr.bf16.mxu0 %v2750
          %4590 = vmatmul.mubr.bf16.gmra.mrb[0].mxu0 %v2749
          %v4591 = vpop.f32.mrb[0].mxu0
          %v4592 = vadd.f32 %v4551, %v4591
          %v4593 = vpop.f32.mrb[0].mxu0
          %v4594 = vadd.f32 %v4553, %v4593
          %v4595 = vpop.f32.mrb[0].mxu0
          %v4596 = vpop.f32.mrb[0].mxu0
          %4597 = vdwg.mxu0
          %4598 = vmatprep.subr.bf16.mxu0 %v3994
          %4599 = vmatpush1.bf16.msra.mxu0 %v3993
          %4600 = vmatprep.subr.bf16.mxu0 %v3998
          %4601 = vmatpush1.bf16.msra.mxu0 %v3997
          %4602 = vmatprep.subr.bf16.mxu0 %v4002
          %4603 = vmatpush1.bf16.msra.mxu0 %v4001
          %4604 = vmatprep.subr.bf16.mxu0 %v4006
          %4605 = vmatpush1.bf16.msra.mxu0 %v4005
          %4606 = vmatprep.subr.bf16.mxu0 %v4010
          %4607 = vmatpush1.bf16.msra.mxu0 %v4009
          %4608 = vmatprep.subr.bf16.mxu0 %v4014
          %4609 = vmatpush1.bf16.msra.mxu0 %v4013
          %4610 = vmatprep.subr.bf16.mxu0 %v4018
          %4611 = vmatpush1.bf16.msra.mxu0 %v4017
          %4612 = vmatprep.subr.bf16.mxu0 %v4022
          %4613 = vmatpush1.bf16.msra.mxu0 %v4021
          %4614 = vmatprep.subr.bf16.mxu0 %v4026
          %4615 = vmatpush1.bf16.msra.mxu0 %v4025
          %4616 = vmatprep.subr.bf16.mxu0 %v4030
          %4617 = vmatpush1.bf16.msra.mxu0 %v4029
          %4618 = vmatprep.subr.bf16.mxu0 %v4034
          %4619 = vmatpush1.bf16.msra.mxu0 %v4033
          %4620 = vmatprep.subr.bf16.mxu0 %v4038
          %4621 = vmatpush1.bf16.msra.mxu0 %v4037
          %4622 = vmatprep.subr.bf16.mxu0 %v4042
          %4623 = vmatpush1.bf16.msra.mxu0 %v4041
          %4624 = vmatprep.subr.bf16.mxu0 %v4046
          %4625 = vmatpush1.bf16.msra.mxu0 %v4045
          %4626 = vmatprep.subr.bf16.mxu0 %v4050
          %4627 = vmatpush1.bf16.msra.mxu0 %v4049
          %4628 = vmatprep.subr.bf16.mxu0 %v4054
          %4629 = vmatpush1.bf16.msra.mxu0 %v4053
          %4630 = vmatprep.mubr.bf16.mxu0 %v2752
          %4631 = vmatmul.mubr.bf16.gmra.mrb[0].mxu0 %v2751
          %v4632 = vpop.f32.mrb[0].mxu0
          %v4633 = vadd.f32 %v4592, %v4632
          %v4634 = vpop.f32.mrb[0].mxu0
          %v4635 = vadd.f32 %v4594, %v4634
          %v4636 = vpop.f32.mrb[0].mxu0
          %v4637 = vpop.f32.mrb[0].mxu0
          %4638 = vdwg.mxu0
          %v4643 = vcombine.low %v4469, %v4471
          %v4644 = vcombine.low %v4633, %v4635
          %v4646 = vunpack.c.l.s4 1983009808
          %v4647 = vunpack.c.0.s8 %v4646
          %v4648 = vlaneseq
          %v4649 = vshrl.u32 %v4648, 7
          %v4650 = vsub.s32 %v4647, %v4649
          %v4651 = vrot.slane %v4643, %v4650
          %v4653 = vunpack.c.l.s4 1983009808
          %v4654 = vunpack.c.0.s8 %v4653
          %v4655 = vlaneseq
          %v4656 = vshrl.u32 %v4655, 7
          %v4657 = vsub.s32 %v4654, %v4656
          %v4658 = vrot.slane %v4644, %v4657
          %v4659 = vcombine.low %v4651, %v4658
          %4661 = vst [vmem:[#allocation3] sm:$0xff] %v4659
          %v4662 = vpack.c.bf16 %v4469, %v4469
          %v4663 = vpack.c.bf16 %v4471, %v4471
          %v4664 = vpack.c.bf16 %v4633, %v4633
          %v4665 = vpack.c.bf16 %v4635, %v4635
          %v4666 = vld [vmem:[%s5] sm:$0xf]
          %v4667 = vld [vmem:[%s5 + $0x4] sm:$0xf]
          %v4668 = vld [vmem:[%s5 + $0x8] sm:$0xf]
          %v4669 = vld [vmem:[%s5 + $0xc] sm:$0xf]
          %v4670 = vld [vmem:[%s5 + $0x10] sm:$0xf]
          %v4671 = vld [vmem:[%s5 + $0x14] sm:$0xf]
          %v4672 = vld [vmem:[%s5 + $0x18] sm:$0xf]
          %v4673 = vld [vmem:[%s5 + $0x1c] sm:$0xf]
          %v4674 = vld [vmem:[%s5 + $0x20] sm:$0xf]
          %v4675 = vld [vmem:[%s5 + $0x24] sm:$0xf]
          %v4676 = vld [vmem:[%s5 + $0x28] sm:$0xf]
          %v4677 = vld [vmem:[%s5 + $0x2c] sm:$0xf]
          %v4678 = vld [vmem:[%s5 + $0x30] sm:$0xf]
          %v4679 = vld [vmem:[%s5 + $0x34] sm:$0xf]
          %v4680 = vld [vmem:[%s5 + $0x38] sm:$0xf]
          %v4681 = vld [vmem:[%s5 + $0x3c] sm:$0xf]
          %v4682 = vld [vmem:[%s5 + $0x40] sm:$0xf]
          %v4683 = vld [vmem:[%s5 + $0x44] sm:$0xf]
          %v4684 = vld [vmem:[%s5 + $0x48] sm:$0xf]
          %v4685 = vld [vmem:[%s5 + $0x4c] sm:$0xf]
          %v4686 = vld [vmem:[%s5 + $0x50] sm:$0xf]
          %v4687 = vld [vmem:[%s5 + $0x54] sm:$0xf]
          %v4688 = vld [vmem:[%s5 + $0x58] sm:$0xf]
          %v4689 = vld [vmem:[%s5 + $0x5c] sm:$0xf]
          %v4690 = vld [vmem:[%s5 + $0x60] sm:$0xf]
          %v4691 = vld [vmem:[%s5 + $0x64] sm:$0xf]
          %v4692 = vld [vmem:[%s5 + $0x68] sm:$0xf]
          %v4693 = vld [vmem:[%s5 + $0x6c] sm:$0xf]
          %v4694 = vld [vmem:[%s5 + $0x70] sm:$0xf]
          %v4695 = vld [vmem:[%s5 + $0x74] sm:$0xf]
          %v4696 = vld [vmem:[%s5 + $0x78] sm:$0xf]
          %v4697 = vld [vmem:[%s5 + $0x7c] sm:$0xf]
          %v4698 = vld [vmem:[%s5 + $0x80] sm:$0xf]
          %v4699 = vld [vmem:[%s5 + $0x84] sm:$0xf]
          %v4700 = vld [vmem:[%s5 + $0x88] sm:$0xf]
          %v4701 = vld [vmem:[%s5 + $0x8c] sm:$0xf]
          %v4702 = vld [vmem:[%s5 + $0x90] sm:$0xf]
          %v4703 = vld [vmem:[%s5 + $0x94] sm:$0xf]
          %v4704 = vld [vmem:[%s5 + $0x98] sm:$0xf]
          %v4705 = vld [vmem:[%s5 + $0x9c] sm:$0xf]
          %v4706 = vld [vmem:[%s5 + $0xa0] sm:$0xf]
          %v4707 = vld [vmem:[%s5 + $0xa4] sm:$0xf]
          %v4708 = vld [vmem:[%s5 + $0xa8] sm:$0xf]
          %v4709 = vld [vmem:[%s5 + $0xac] sm:$0xf]
          %v4710 = vld [vmem:[%s5 + $0xb0] sm:$0xf]
          %v4711 = vld [vmem:[%s5 + $0xb4] sm:$0xf]
          %v4712 = vld [vmem:[%s5 + $0xb8] sm:$0xf]
          %v4713 = vld [vmem:[%s5 + $0xbc] sm:$0xf]
          %v4714 = vld [vmem:[%s5 + $0xc0] sm:$0xf]
          %v4715 = vld [vmem:[%s5 + $0xc4] sm:$0xf]
          %v4716 = vld [vmem:[%s5 + $0xc8] sm:$0xf]
          %v4717 = vld [vmem:[%s5 + $0xcc] sm:$0xf]
          %v4718 = vld [vmem:[%s5 + $0xd0] sm:$0xf]
          %v4719 = vld [vmem:[%s5 + $0xd4] sm:$0xf]
          %v4720 = vld [vmem:[%s5 + $0xd8] sm:$0xf]
          %v4721 = vld [vmem:[%s5 + $0xdc] sm:$0xf]
          %v4722 = vld [vmem:[%s5 + $0xe0] sm:$0xf]
          %v4723 = vld [vmem:[%s5 + $0xe4] sm:$0xf]
          %v4724 = vld [vmem:[%s5 + $0xe8] sm:$0xf]
          %v4725 = vld [vmem:[%s5 + $0xec] sm:$0xf]
          %v4726 = vld [vmem:[%s5 + $0xf0] sm:$0xf]
          %v4727 = vld [vmem:[%s5 + $0xf4] sm:$0xf]
          %v4728 = vld [vmem:[%s5 + $0xf8] sm:$0xf]
          %v4729 = vld [vmem:[%s5 + $0xfc] sm:$0xf]
          %v4730 = vld [vmem:[%s6] sm:$0x1]
          %v4732 = vlaneseq
          %v4733 = vshrl.u32 %v4732, 7
          %v4734 = vsub.s32 0, %v4733
          %v4735 = vrot.slane %v4730, %v4734
          %v4801 = vunpack.c.l.b16 %v4666
          %v4802 = vunpack.c.l.b16 %v4667
          %v4803 = vunpack.c.l.b16 %v4668
          %v4804 = vunpack.c.l.b16 %v4669
          %v4805 = vunpack.c.l.b16 %v4670
          %v4806 = vunpack.c.l.b16 %v4671
          %v4807 = vunpack.c.l.b16 %v4672
          %v4808 = vunpack.c.l.b16 %v4673
          %v4809 = vunpack.c.l.b16 %v4674
          %v4810 = vunpack.c.l.b16 %v4675
          %v4811 = vunpack.c.l.b16 %v4676
          %v4812 = vunpack.c.l.b16 %v4677
          %v4813 = vunpack.c.l.b16 %v4678
          %v4814 = vunpack.c.l.b16 %v4679
          %v4815 = vunpack.c.l.b16 %v4680
          %v4816 = vunpack.c.l.b16 %v4681
          %v4817 = vunpack.c.l.b16 %v4682
          %v4818 = vunpack.c.l.b16 %v4683
          %v4819 = vunpack.c.l.b16 %v4684
          %v4820 = vunpack.c.l.b16 %v4685
          %v4821 = vunpack.c.l.b16 %v4686
          %v4822 = vunpack.c.l.b16 %v4687
          %v4823 = vunpack.c.l.b16 %v4688
          %v4824 = vunpack.c.l.b16 %v4689
          %v4825 = vunpack.c.l.b16 %v4690
          %v4826 = vunpack.c.l.b16 %v4691
          %v4827 = vunpack.c.l.b16 %v4692
          %v4828 = vunpack.c.l.b16 %v4693
          %v4829 = vunpack.c.l.b16 %v4694
          %v4830 = vunpack.c.l.b16 %v4695
          %v4831 = vunpack.c.l.b16 %v4696
          %v4832 = vunpack.c.l.b16 %v4697
          %v4833 = vunpack.c.l.b16 %v4698
          %v4834 = vunpack.c.l.b16 %v4699
          %v4835 = vunpack.c.l.b16 %v4700
          %v4836 = vunpack.c.l.b16 %v4701
          %v4837 = vunpack.c.l.b16 %v4702
          %v4838 = vunpack.c.l.b16 %v4703
          %v4839 = vunpack.c.l.b16 %v4704
          %v4840 = vunpack.c.l.b16 %v4705
          %v4841 = vunpack.c.l.b16 %v4706
          %v4842 = vunpack.c.l.b16 %v4707
          %v4843 = vunpack.c.l.b16 %v4708
          %v4844 = vunpack.c.l.b16 %v4709
          %v4845 = vunpack.c.l.b16 %v4710
          %v4846 = vunpack.c.l.b16 %v4711
          %v4847 = vunpack.c.l.b16 %v4712
          %v4848 = vunpack.c.l.b16 %v4713
          %v4849 = vunpack.c.l.b16 %v4714
          %v4850 = vunpack.c.l.b16 %v4715
          %v4851 = vunpack.c.l.b16 %v4716
          %v4852 = vunpack.c.l.b16 %v4717
          %v4853 = vunpack.c.l.b16 %v4718
          %v4854 = vunpack.c.l.b16 %v4719
          %v4855 = vunpack.c.l.b16 %v4720
          %v4856 = vunpack.c.l.b16 %v4721
          %v4857 = vunpack.c.l.b16 %v4722
          %v4858 = vunpack.c.l.b16 %v4723
          %v4859 = vunpack.c.l.b16 %v4724
          %v4860 = vunpack.c.l.b16 %v4725
          %v4861 = vunpack.c.l.b16 %v4726
          %v4862 = vunpack.c.l.b16 %v4727
          %v4863 = vunpack.c.l.b16 %v4728
          %v4864 = vunpack.c.l.b16 %v4729
          %v4865 = vpack.c.b16 %v4802, %v4801
          %v4866 = vpack.c.b16 %v4804, %v4803
          %v4867 = vpack.c.b16 %v4806, %v4805
          %v4868 = vpack.c.b16 %v4808, %v4807
          %v4869 = vpack.c.b16 %v4810, %v4809
          %v4870 = vpack.c.b16 %v4812, %v4811
          %v4871 = vpack.c.b16 %v4814, %v4813
          %v4872 = vpack.c.b16 %v4816, %v4815
          %v4873 = vpack.c.b16 %v4818, %v4817
          %v4874 = vpack.c.b16 %v4820, %v4819
          %v4875 = vpack.c.b16 %v4822, %v4821
          %v4876 = vpack.c.b16 %v4824, %v4823
          %v4877 = vpack.c.b16 %v4826, %v4825
          %v4878 = vpack.c.b16 %v4828, %v4827
          %v4879 = vpack.c.b16 %v4830, %v4829
          %v4880 = vpack.c.b16 %v4832, %v4831
          %v4881 = vpack.c.b16 %v4834, %v4833
          %v4882 = vpack.c.b16 %v4836, %v4835
          %v4883 = vpack.c.b16 %v4838, %v4837
          %v4884 = vpack.c.b16 %v4840, %v4839
          %v4885 = vpack.c.b16 %v4842, %v4841
          %v4886 = vpack.c.b16 %v4844, %v4843
          %v4887 = vpack.c.b16 %v4846, %v4845
          %v4888 = vpack.c.b16 %v4848, %v4847
          %v4889 = vpack.c.b16 %v4850, %v4849
          %v4890 = vpack.c.b16 %v4852, %v4851
          %v4891 = vpack.c.b16 %v4854, %v4853
          %v4892 = vpack.c.b16 %v4856, %v4855
          %v4893 = vpack.c.b16 %v4858, %v4857
          %v4894 = vpack.c.b16 %v4860, %v4859
          %v4895 = vpack.c.b16 %v4862, %v4861
          %v4896 = vpack.c.b16 %v4864, %v4863
          %4929 = vmatprep.subr.bf16.mxu0 0
          %4930 = vmatpush1.bf16.msra.mxu0 %v4865
          %4931 = vmatprep.subr.bf16.mxu0 0
          %4932 = vmatpush1.bf16.msra.mxu0 %v4866
          %4933 = vmatprep.subr.bf16.mxu0 0
          %4934 = vmatpush1.bf16.msra.mxu0 %v4867
          %4935 = vmatprep.subr.bf16.mxu0 0
          %4936 = vmatpush1.bf16.msra.mxu0 %v4868
          %4937 = vmatprep.subr.bf16.mxu0 0
          %4938 = vmatpush1.bf16.msra.mxu0 %v4869
          %4939 = vmatprep.subr.bf16.mxu0 0
          %4940 = vmatpush1.bf16.msra.mxu0 %v4870
          %4941 = vmatprep.subr.bf16.mxu0 0
          %4942 = vmatpush1.bf16.msra.mxu0 %v4871
          %4943 = vmatprep.subr.bf16.mxu0 0
          %4944 = vmatpush1.bf16.msra.mxu0 %v4872
          %4945 = vmatprep.subr.bf16.mxu0 0
          %4946 = vmatpush1.bf16.msra.mxu0 %v4873
          %4947 = vmatprep.subr.bf16.mxu0 0
          %4948 = vmatpush1.bf16.msra.mxu0 %v4874
          %4949 = vmatprep.subr.bf16.mxu0 0
          %4950 = vmatpush1.bf16.msra.mxu0 %v4875
          %4951 = vmatprep.subr.bf16.mxu0 0
          %4952 = vmatpush1.bf16.msra.mxu0 %v4876
          %4953 = vmatprep.subr.bf16.mxu0 0
          %4954 = vmatpush1.bf16.msra.mxu0 %v4877
          %4955 = vmatprep.subr.bf16.mxu0 0
          %4956 = vmatpush1.bf16.msra.mxu0 %v4878
          %4957 = vmatprep.subr.bf16.mxu0 0
          %4958 = vmatpush1.bf16.msra.mxu0 %v4879
          %4959 = vmatprep.subr.bf16.mxu0 0
          %4960 = vmatpush1.bf16.msra.mxu0 %v4880
          %4961 = vmatprep.mubr.bf16.mxu0 %v4663
          %4962 = vmatmul.mubr.bf16.gmra.mrb[0].mxu0 %v4662
          %v4963 = vpop.f32.mrb[0].mxu0
          %v4964 = vadd.f32 %v4735, %v4963
          %v4965 = vpop.f32.mrb[0].mxu0
          %v4966 = vpop.f32.mrb[0].mxu0
          %v4967 = vpop.f32.mrb[0].mxu0
          %4968 = vdwg.mxu0
          %4969 = vmatprep.subr.bf16.mxu0 0
          %4970 = vmatpush1.bf16.msra.mxu0 %v4881
          %4971 = vmatprep.subr.bf16.mxu0 0
          %4972 = vmatpush1.bf16.msra.mxu0 %v4882
          %4973 = vmatprep.subr.bf16.mxu0 0
          %4974 = vmatpush1.bf16.msra.mxu0 %v4883
          %4975 = vmatprep.subr.bf16.mxu0 0
          %4976 = vmatpush1.bf16.msra.mxu0 %v4884
          %4977 = vmatprep.subr.bf16.mxu0 0
          %4978 = vmatpush1.bf16.msra.mxu0 %v4885
          %4979 = vmatprep.subr.bf16.mxu0 0
          %4980 = vmatpush1.bf16.msra.mxu0 %v4886
          %4981 = vmatprep.subr.bf16.mxu0 0
          %4982 = vmatpush1.bf16.msra.mxu0 %v4887
          %4983 = vmatprep.subr.bf16.mxu0 0
          %4984 = vmatpush1.bf16.msra.mxu0 %v4888
          %4985 = vmatprep.subr.bf16.mxu0 0
          %4986 = vmatpush1.bf16.msra.mxu0 %v4889
          %4987 = vmatprep.subr.bf16.mxu0 0
          %4988 = vmatpush1.bf16.msra.mxu0 %v4890
          %4989 = vmatprep.subr.bf16.mxu0 0
          %4990 = vmatpush1.bf16.msra.mxu0 %v4891
          %4991 = vmatprep.subr.bf16.mxu0 0
          %4992 = vmatpush1.bf16.msra.mxu0 %v4892
          %4993 = vmatprep.subr.bf16.mxu0 0
          %4994 = vmatpush1.bf16.msra.mxu0 %v4893
          %4995 = vmatprep.subr.bf16.mxu0 0
          %4996 = vmatpush1.bf16.msra.mxu0 %v4894
          %4997 = vmatprep.subr.bf16.mxu0 0
          %4998 = vmatpush1.bf16.msra.mxu0 %v4895
          %4999 = vmatprep.subr.bf16.mxu0 0
          %5000 = vmatpush1.bf16.msra.mxu0 %v4896
          %5001 = vmatprep.mubr.bf16.mxu0 %v4665
          %5002 = vmatmul.mubr.bf16.gmra.mrb[0].mxu0 %v4664
          %v5003 = vpop.f32.mrb[0].mxu0
          %v5004 = vadd.f32 %v4964, %v5003
          %v5005 = vpop.f32.mrb[0].mxu0
          %v5006 = vpop.f32.mrb[0].mxu0
          %v5007 = vpop.f32.mrb[0].mxu0
          %5008 = vdwg.mxu0
          %v5009 = vmul.f32 %v5004, 0.5
          %v5010 = vtanh.pop %v5009
          %v5011 = vadd.f32 %v5010, 1.0
          %v5012 = vmul.f32 %v5011, 0.5
          %5013 = vst [vmem:[%s8] sm:$0x3] %v5012
        $region56: #{discriminator_forward.7} parent=47 // pred_fallthru
          _
        // Predicated region
        $region57: #{discriminator_forward.7} parent=47 // pred_check
          %p5014 = pneg %p191
        $region58: #{discriminator_forward.7} parent=47 // pred_check_branch
          %5016 = sbr.rel (%p5014) target = $region60
        $region59: #{discriminator_forward.7} parent=47 // pred_region
          %s5018 = ssub.s32 128, 128
          %5019 = vsyncadd [#allocation4], %s5018
          %s5021 = sshll.u32 [#allocation3], 4
          %s5022 = int_to_ptr.vmem [resolvable:$true] %s5021
          %5024 = dma.vmem_to_hbm [thread:$0]  %s5022, 128, %s7, [#allocation4]
        $region60: #{discriminator_forward.7} parent=47 // pred_fallthru
          _
        // Predicated region
        $region61: #{discriminator_forward.7} parent=47 // pred_check
          %p5025 = pneg %p212
        $region62: #{discriminator_forward.7} parent=47 // pred_check_branch
          %5027 = sbr.rel (%p5025) target = $region64
        $region63: #{discriminator_forward.7} parent=47 // pred_region
          _
        $region64: #{discriminator_forward.7} parent=47 // pred_fallthru
          _
        // Predicated region
        $region65: #{discriminator_forward.7} parent=47 // pred_check
          %p5028 = pneg %p191
        $region66: #{discriminator_forward.7} parent=47 // pred_check_branch
          %5030 = sbr.rel (%p5028) target = $region68
        $region67: #{discriminator_forward.7} parent=47 // pred_region
          %5031 = dma.done [#allocation4], 128
        $region68: #{discriminator_forward.7} parent=47 // pred_fallthru
          _
        // Predicated region
        $region69: #{discriminator_forward.7} parent=47 // pred_check
          %p5032 = pneg %p212
        $region70: #{discriminator_forward.7} parent=47 // pred_check_branch
          %5034 = sbr.rel (%p5032) target = $region72
        $region71: #{discriminator_forward.7} parent=47 // pred_region
          _
        $region72: #{discriminator_forward.7} parent=47 // pred_fallthru
          _
      $region48: #{discriminator_forward.7} parent=5 // pred_fallthru
        _
      %p5035 = scmp.le.s32.totalorder 2, %s16
      // Predicated region
      $region73: #{discriminator_forward.7} parent=5 // pred_check
        %p5036 = pneg %p5035
      $region74: #{discriminator_forward.7} parent=5 // pred_check_branch
        %5038 = sbr.rel (%p5036) target = $region76
      $region75: #{discriminator_forward.7} parent=5 // pred_region
        %s5039 = ssub.s32 %s16, 2
      $region76: #{discriminator_forward.7} parent=5 // pred_fallthru
        _
    $region6: #{discriminator_forward.7} parent=1 // loop_footer
      %s20 = sadd.s32 1, %s16
    $region7: #{discriminator_forward.7} parent=1 // loop_footer_branch
      %15 = sbr.rel target = $region3
    $region8: #{discriminator_forward.7} parent=1 // loop_exit
      _
    %5040 = vsyncpa [#allocation4], 1
    %s5041 = scalar_lea.sflag [#allocation4], 1
    %5042 = vsyncpa %s5041, 1

</llo_original>
